<compile_context>
chip_gen: v7x
topology: tpu7x:2x2x1
jax: 0.10.0
libtpu: 0.0.40
codegen_flags: <defaults>
</compile_context>

<pallas_src>
import functools

import jax
import jax.numpy as jnp
from jax.experimental import pallas as pl
from jax.experimental.pallas import tpu as pltpu


C_PAD = 128   # channel lanes (all layer channel counts are zero-padded to this)
N_PAD = 128   # padded num_outputs lanes for a lane-dense final store


def _pad2(m, rows, cols):
    return jnp.pad(m, ((0, rows - m.shape[0]), (0, cols - m.shape[1])))


# ----------------------------------------------------------------------------
# Fused Pallas kernel: all TemporalBlocks + final Linear
# ----------------------------------------------------------------------------
def _tcn_fused_kernel(*refs, L, K, dilations, has_ds):
    """refs layout (all inputs, then the single output):
       x_ref                        : (Bt*L, C)  f32, Bt sequences stacked along sublanes
       per layer i: w1_ref          : (K*C, 2C)  bf16 if has_ds[i] (conv1 taps + fused 1x1 ds)
                                      (K*C,  C)  bf16 otherwise
                    b1_ref          : (1, 2C)/(1, C) f32 (conv1 bias + ds bias when fused)
                    w2_ref          : (K*C, C)   bf16 fused-tap conv2 weights
                    b2_ref          : (1, C)     f32
       wl_ref                       : (C, NP)    bf16 final Linear weight
       bl_ref                       : (1, NP)    f32
       out_ref                      : (Bt, NP)   f32
    """
    NL = len(dilations)
    x_ref = refs[0]
    layer_refs = refs[1:1 + 4 * NL]
    wl_ref, bl_ref, out_ref = refs[1 + 4 * NL: 4 + 4 * NL]

    M, C = x_ref.shape
    Bt = M // L

    # time index within each sequence: ONE iota + one AND/REM (was O(Bt) compare/selects)
    trow = jax.lax.broadcasted_iota(jnp.int32, (M, C), 0)
    if (L & (L - 1)) == 0:
        tmod = trow & (L - 1)
    else:
        tmod = trow % L

    # causal masks, cached per shift so conv1/conv2 of a layer reuse the same set
    mask_cache = {}

    def seq_mask(s):
        if s not in mask_cache:
            mask_cache[s] = tmod >= s
        return mask_cache[s]

    def fused_tap_matmul(v, w_ref, d):
        # conv1d(dilation=d) + chomp (+ optionally the fused 1x1 downsample columns)
        # as ONE MXU matmul over K shifted taps.  Rolls on f32 vregs (no packed-sublane
        # rotates), masking AFTER the roll neutralizes wraparound across sequence starts;
        # taps are narrowed to bf16 so the (M, K*C) slab feeding the MXU is half-width.
        vb = v.astype(jnp.bfloat16)
        taps = []
        for j in range(K):
            s = (K - 1 - j) * d
            if s == 0:
                taps.append(vb)
            else:
                taps.append(
                    jnp.where(seq_mask(s), pltpu.roll(v, s, 0), 0.0).astype(jnp.bfloat16))
        taps = jnp.concatenate(taps, axis=1)                       # (M, K*C) bf16, lane-dense
        return jnp.dot(taps, w_ref[...], preferred_element_type=jnp.float32)

    x = x_ref[...].astype(jnp.float32)
    for i, d in enumerate(dilations):
        # TODO(synk): nn.Dropout has no deterministic forward; implemented as identity (eval).
        w1_ref, b1_ref, w2_ref, b2_ref = layer_refs[4 * i: 4 * i + 4]
        z1 = fused_tap_matmul(x, w1_ref, d) + b1_ref[...]
        if has_ds[i]:
            # lanes 0:C  = conv1 pre-activation; lanes C:2C = 1x1-conv residual (+ its bias)
            h = jnp.maximum(z1[:, :C], 0.0)
            res = z1[:, C:]
        else:
            h = jnp.maximum(z1, 0.0)
            res = x                                                 # identity residual
        h = jnp.maximum(fused_tap_matmul(h, w2_ref, d) + b2_ref[...], 0.0)
        x = jnp.maximum(h + res, 0.0)

    # last time step of every sequence, folded into the MXU as a one-hot selection matmul
    rsel = jax.lax.broadcasted_iota(jnp.int32, (Bt, M), 0)
    csel = jax.lax.broadcasted_iota(jnp.int32, (Bt, M), 1)
    sel = (csel == rsel * L + (L - 1)).astype(jnp.bfloat16)         # (Bt, M) one-hot rows
    last = jnp.dot(sel, x.astype(jnp.bfloat16), preferred_element_type=jnp.float32)

    out_ref[...] = jnp.dot(last.astype(jnp.bfloat16), wl_ref[...],
                           preferred_element_type=jnp.float32) + bl_ref[...]


# ----------------------------------------------------------------------------
# Wrapper
# ----------------------------------------------------------------------------
def _pick_batch_tile(B, L, K, act_budget_bytes=12 << 20):
    """Largest Bt that divides B, is a multiple of 8 (unmasked (Bt,128) stores, sublane-aligned
    (Bt*L,128) input blocks), leaves >= 2 grid steps (v7x megacore + DMA/compute overlap) and
    keeps the per-step activation slab under the budget (v7x: 64 MiB VMEM/TC)."""
    # per activation row: x/h/res f32 + (M,2C) f32 pre-act + bf16 taps + double-buffered input
    row_bytes = C_PAD * (4 + 4 + 8 + 2 * K + 8)
    best = None
    bt = 8
    while bt * 2 <= B:
        if B % bt == 0 and bt * L * row_bytes <= act_budget_bytes:
            best = bt
        bt += 8
    return best if best is not None else B


def tcn_forecaster(x_ncl, net, batch_tile=None):
    """Full TCNForecaster forward.  x_ncl: (B, C_in, L) -> (B, num_outputs)."""
    B, c_in, L = x_ncl.shape
    C, NP, K = net["c_pad"], net["n_pad"], net["K"]
    layers = net["layers"]
    Bt = _pick_batch_tile(B, L, K) if batch_tile is None else batch_tile
    assert B % Bt == 0
    # (8,128) rule: input block (Bt*L, C) and output block (Bt, NP) must be sublane-aligned
    # unless they span the full array.
    assert Bt == B or Bt % 8 == 0, "batch tile must be a multiple of 8 (or the full batch)"

    # layout glue (one-time, tiny): NCL -> (B*L, C_PAD) with lane-dense channels
    x = jnp.transpose(x_ncl, (0, 2, 1))                      # (B, L, Cin)
    x = jnp.pad(x, ((0, 0), (0, 0), (0, C - c_in)))          # zero-pad channels to 128 lanes
    x = x.reshape(B * L, C).astype(jnp.float32)

    operands = [x]
    in_specs = [pl.BlockSpec((Bt * L, C), lambda i: (i, 0))]
    for p in layers:
        for name in ("w1", "b1", "w2", "b2"):
            arr = p[name]
            operands.append(arr)
            in_specs.append(pl.BlockSpec(arr.shape, lambda i: (0, 0)))   # constant index map
    for arr in (net["wl"], net["bl"]):
        operands.append(arr)
        in_specs.append(pl.BlockSpec(arr.shape, lambda i: (0, 0)))

    # VMEM sizing rule (review): activations + double-buffered weights, with headroom,
    # capped well under v7x's 64 MiB/TC.
    weight_bytes = sum(int(p[n].size) * p[n].dtype.itemsize
                       for p in layers for n in ("w1", "b1", "w2", "b2"))
    weight_bytes += int(net["wl"].size) * 2 + int(net["bl"].size) * 4
    M = Bt * L
    act_bytes = M * C * (4 + 4 + 8 + 2 * K) + 2 * M * C * 4 + 2 * Bt * NP * 4
    vmem_limit = int(min(56 << 20, max(16 << 20, 2 * (2 * weight_bytes + act_bytes))))

    kern = functools.partial(_tcn_fused_kernel, L=L, K=K,
                             dilations=net["dilations"], has_ds=net["has_ds"])
    out = pl.pallas_call(
        kern,
        out_shape=jax.ShapeDtypeStruct((B, NP), jnp.float32),
        grid=(B // Bt,),
        in_specs=in_specs,
        out_specs=pl.BlockSpec((Bt, NP), lambda i: (i, 0)),
        compiler_params=pltpu.CompilerParams(
            dimension_semantics=("parallel",),
            vmem_limit_bytes=vmem_limit),
    )(*operands)
    return out[:, :net["num_outputs"]]


# ----------------------------------------------------------------------------
# Deterministic parameter setup (synthetic init; weight_norm folded into weights)
# ----------------------------------------------------------------------------
def init_tcn_params(key, input_feature_num, num_outputs, num_channels, kernel_size=2,
                    c_pad=C_PAD, n_pad=N_PAD):
    assert input_feature_num <= c_pad and max(num_channels) <= c_pad
    assert num_outputs <= n_pad

    def weight_norm_fold(v):
        # weight_norm(dim=0): w = g * v / ||v||, with g = ||v|| at construction -> fold is a no-op
        norm = jnp.sqrt(jnp.sum(v * v, axis=(1, 2), keepdims=True))
        return norm * v / norm

    K = kernel_size
    raw_layers, layers_kern, dilations, has_ds = [], [], [], []
    for i, out_c in enumerate(num_channels):
        in_c = input_feature_num if i == 0 else num_channels[i - 1]
        key, k1, k2, k3, kb1, kb2, kb3 = jax.random.split(key, 7)
        w1 = weight_norm_fold(0.05 * jax.random.normal(k1, (out_c, in_c, K), jnp.float32))
        w2 = weight_norm_fold(0.05 * jax.random.normal(k2, (out_c, out_c, K), jnp.float32))
        b1 = 0.05 * jax.random.normal(kb1, (out_c,), jnp.float32)
        b2 = 0.05 * jax.random.normal(kb2, (out_c,), jnp.float32)
        d = 2 ** i
        ds = in_c != out_c
        if ds:
            wd_mat = (0.05 * jax.random.normal(k3, (out_c, in_c, 1), jnp.float32))[:, :, 0].T
            bd = 0.05 * jax.random.normal(kb3, (out_c,), jnp.float32)
        else:
            wd_mat = jnp.eye(in_c, dtype=jnp.float32)     # never read (identity residual)
            bd = jnp.zeros((out_c,), jnp.float32)

        # raw (unpadded) form for the pure-JAX reference
        raw_layers.append(dict(
            w1=jnp.transpose(w1, (2, 1, 0)),              # (K, Cin, Cout)
            b1=b1.reshape(1, out_c),
            w2=jnp.transpose(w2, (2, 1, 0)),              # (K, Cout, Cout)
            b2=b2.reshape(1, out_c),
            wd=wd_mat, bd=bd.reshape(1, out_c),
            K=K, dilation=d, has_ds=ds))

        # kernel form: fused taps (rows) x output lanes; 1x1 downsample fused as extra N cols
        w1_taps = jnp.concatenate(
            [_pad2(w1[:, :, j].T, c_pad, c_pad) for j in range(K)], axis=0)   # (K*C, C)
        w2_taps = jnp.concatenate(
            [_pad2(w2[:, :, j].T, c_pad, c_pad) for j in range(K)], axis=0)   # (K*C, C)
        b1_pad = _pad2(b1.reshape(1, out_c), 1, c_pad)
        b2_pad = _pad2(b2.reshape(1, out_c), 1, c_pad)
        if ds:
            # downsample reads only the shift-0 tap: rows (K-1)*C .. (K-1)*C + in_c
            ds_block = jnp.pad(wd_mat, (((K - 1) * c_pad, c_pad - in_c), (0, c_pad - out_c)))
            w1_fused = jnp.concatenate([w1_taps, ds_block], axis=1)           # (K*C, 2C)
            b1_fused = jnp.concatenate(
                [b1_pad, _pad2(bd.reshape(1, out_c), 1, c_pad)], axis=1)      # (1, 2C)
        else:
            w1_fused, b1_fused = w1_taps, b1_pad

        layers_kern.append(dict(
            w1=w1_fused.astype(jnp.bfloat16), b1=b1_fused.astype(jnp.float32),
            w2=w2_taps.astype(jnp.bfloat16), b2=b2_pad.astype(jnp.float32)))
        dilations.append(d)
        has_ds.append(ds)

    key, kl, kbl = jax.random.split(key, 3)
    c_last = num_channels[-1]
    w_lin = 0.05 * jax.random.normal(kl, (num_outputs, c_last), jnp.float32)
    b_lin = 0.05 * jax.random.normal(kbl, (num_outputs,), jnp.float32)
    raw_lin = dict(w=w_lin.T, b=b_lin.reshape(1, num_outputs))

    net = dict(
        layers=layers_kern,
        wl=_pad2(w_lin.T, c_pad, n_pad).astype(jnp.bfloat16),
        bl=_pad2(b_lin.reshape(1, num_outputs), 1, n_pad),
        dilations=tuple(dilations), has_ds=tuple(has_ds),
        K=K, c_pad=c_pad, n_pad=n_pad, num_outputs=num_outputs)
    return net, raw_layers, raw_lin


# ----------------------------------------------------------------------------
# Pure-JAX reference (same bf16-operand / f32-accum precision as the kernel)
# ----------------------------------------------------------------------------
def ref_forward(x_ncl, layers, lin):
    f32 = jnp.float32

    def mm(a, w):  # bf16-rounded operands, f32 products/accumulation (MXU semantics)
        return jnp.einsum("blc,cd->bld",
                          a.astype(jnp.bfloat16).astype(f32),
                          w.astype(jnp.bfloat16).astype(f32))

    x = jnp.transpose(x_ncl, (0, 2, 1)).astype(f32)
    for p in layers:
        K, d = p["K"], p["dilation"]
        pad = (K - 1) * d
        L = x.shape[1]
        xp = jnp.pad(x, ((0, 0), (pad, 0), (0, 0)))
        h = sum(mm(xp[:, j * d:j * d + L, :], p["w1"][j]) for j in range(K)) + p["b1"]
        h = jnp.maximum(h, 0.0)
        hp = jnp.pad(h, ((0, 0), (pad, 0), (0, 0)))
        h2 = sum(mm(hp[:, j * d:j * d + L, :], p["w2"][j]) for j in range(K)) + p["b2"]
        h2 = jnp.maximum(h2, 0.0)
        res = mm(x, p["wd"]) + p["bd"] if p["has_ds"] else x
        x = jnp.maximum(h2 + res, 0.0)
    last = x[:, -1, :]
    wl = lin["w"].astype(jnp.bfloat16).astype(f32)
    return last.astype(jnp.bfloat16).astype(f32) @ wl + lin["b"]


if __name__ == "__main__":
    key = jax.random.PRNGKey(0)
    # B chosen so the default batch tile (8) gives grid=(2,): megacore-shardable + overlapped DMA
    B, C_IN, L = 16, 4, 16
    NUM_CHANNELS = (16, 16, 32)   # layer0: downsample, layer1: identity residual, layer2: downsample
    NUM_OUTPUTS = 3

    k_params, k_x = jax.random.split(key)
    net, raw_layers, raw_lin = init_tcn_params(
        k_params, C_IN, NUM_OUTPUTS, NUM_CHANNELS, kernel_size=2)

    x = jax.random.normal(k_x, (B, C_IN, L), jnp.float32)   # PyTorch NCL layout

    y = jax.block_until_ready(tcn_forecaster(x, net))

    y_ref = ref_forward(x, raw_layers, raw_lin)
    assert y.shape == (B, NUM_OUTPUTS), y.shape
    assert jnp.allclose(y, y_ref, rtol=1e-2, atol=1e-3), (y, y_ref)
    print("KERNEL_OK")
</pallas_src>

<mosaic_0001>
module attributes {stable_mosaic.version = 11 : i64} {
  func.func @_tcn_fused_kernel(%arg0: i32, %arg1: memref<128x128xf32, #tpu.memory_space<vmem>>, %arg2: memref<256x256xbf16, #tpu.memory_space<vmem>>, %arg3: memref<1x256xf32, #tpu.memory_space<vmem>>, %arg4: memref<256x128xbf16, #tpu.memory_space<vmem>>, %arg5: memref<1x128xf32, #tpu.memory_space<vmem>>, %arg6: memref<256x128xbf16, #tpu.memory_space<vmem>>, %arg7: memref<1x128xf32, #tpu.memory_space<vmem>>, %arg8: memref<256x128xbf16, #tpu.memory_space<vmem>>, %arg9: memref<1x128xf32, #tpu.memory_space<vmem>>, %arg10: memref<256x256xbf16, #tpu.memory_space<vmem>>, %arg11: memref<1x256xf32, #tpu.memory_space<vmem>>, %arg12: memref<256x128xbf16, #tpu.memory_space<vmem>>, %arg13: memref<1x128xf32, #tpu.memory_space<vmem>>, %arg14: memref<128x128xbf16, #tpu.memory_space<vmem>>, %arg15: memref<1x128xf32, #tpu.memory_space<vmem>>, %arg16: memref<8x128xf32, #tpu.memory_space<vmem>>) attributes {dimension_semantics = [#tpu.dimension_semantics<parallel>], iteration_bounds = array<i64: 2>, scalar_prefetch = 0 : i64, scratch_operands = 0 : i64, tpu.core_type = #tpu.core_type<tc>, window_params = [{transform_indices = @transform_0, window_bounds = array<i64: 128, 128>}, {pipeline_mode = #tpu.pipeline_mode<synchronous>, transform_indices = @transform_1, window_bounds = array<i64: 256, 256>}, {pipeline_mode = #tpu.pipeline_mode<synchronous>, transform_indices = @transform_2, window_bounds = array<i64: 1, 256>}, {pipeline_mode = #tpu.pipeline_mode<synchronous>, transform_indices = @transform_3, window_bounds = array<i64: 256, 128>}, {pipeline_mode = #tpu.pipeline_mode<synchronous>, transform_indices = @transform_4, window_bounds = array<i64: 1, 128>}, {pipeline_mode = #tpu.pipeline_mode<synchronous>, transform_indices = @transform_5, window_bounds = array<i64: 256, 128>}, {pipeline_mode = #tpu.pipeline_mode<synchronous>, transform_indices = @transform_6, window_bounds = array<i64: 1, 128>}, {pipeline_mode = #tpu.pipeline_mode<synchronous>, transform_indices = @transform_7, window_bounds = array<i64: 256, 128>}, {pipeline_mode = #tpu.pipeline_mode<synchronous>, transform_indices = @transform_8, window_bounds = array<i64: 1, 128>}, {pipeline_mode = #tpu.pipeline_mode<synchronous>, transform_indices = @transform_9, window_bounds = array<i64: 256, 256>}, {pipeline_mode = #tpu.pipeline_mode<synchronous>, transform_indices = @transform_10, window_bounds = array<i64: 1, 256>}, {pipeline_mode = #tpu.pipeline_mode<synchronous>, transform_indices = @transform_11, window_bounds = array<i64: 256, 128>}, {pipeline_mode = #tpu.pipeline_mode<synchronous>, transform_indices = @transform_12, window_bounds = array<i64: 1, 128>}, {pipeline_mode = #tpu.pipeline_mode<synchronous>, transform_indices = @transform_13, window_bounds = array<i64: 128, 128>}, {pipeline_mode = #tpu.pipeline_mode<synchronous>, transform_indices = @transform_14, window_bounds = array<i64: 1, 128>}, {transform_indices = @transform_15, window_bounds = array<i64: 8, 128>}]} {
    %0 = tpu.iota {dimensions = array<i32: 0>} : vector<128x128xi32>
    %c15_i32 = arith.constant 15 : i32
    %1 = vector.broadcast %c15_i32 : i32 to vector<128x128xi32>
    %2 = arith.andi %0, %1 : vector<128x128xi32>
    %c0 = arith.constant 0 : index
    %c0_0 = arith.constant 0 : index
    %3 = vector.load %arg1[%c0, %c0_0] : memref<128x128xf32, #tpu.memory_space<vmem>>, vector<128x128xf32>
    %4 = arith.truncf %3 : vector<128x128xf32> to vector<128x128xbf16>
    %c1_i32 = arith.constant 1 : i32
    %5 = vector.broadcast %c1_i32 : i32 to vector<128x128xi32>
    %6 = arith.cmpi sge, %2, %5 : vector<128x128xi32>
    %c1_i32_1 = arith.constant 1 : i32
    %7 = tpu.dynamic_rotate %3 by %c1_i32_1 dim 0 : vector<128x128xf32>, i32 -> vector<128x128xf32>
    %cst = arith.constant 0.000000e+00 : f32
    %8 = vector.broadcast %cst : f32 to vector<128x128xf32>
    %9 = arith.select %6, %7, %8 : vector<128x128xi1>, vector<128x128xf32>
    %10 = arith.truncf %9 : vector<128x128xf32> to vector<128x128xbf16>
    %11 = tpu.concatenate %10, %4 in 1 : vector<128x128xbf16>, vector<128x128xbf16> -> vector<128x256xbf16>
    %c0_2 = arith.constant 0 : index
    %c0_3 = arith.constant 0 : index
    %12 = vector.load %arg2[%c0_2, %c0_3] : memref<256x256xbf16, #tpu.memory_space<vmem>>, vector<256x256xbf16>
    %cst_4 = arith.constant dense<0.000000e+00> : vector<128x256xf32>
    %13 = tpu.matmul %11, %12, %cst_4 {dimension_numbers = #tpu.dot_dimension_numbers<[1], [0], [0], [1], [0, 0, 1, 1], [], []>} : vector<128x256xbf16>, vector<256x256xbf16>, vector<128x256xf32> -> vector<128x256xf32>
    %c0_5 = arith.constant 0 : index
    %c0_6 = arith.constant 0 : index
    %14 = vector.load %arg3[%c0_5, %c0_6] : memref<1x256xf32, #tpu.memory_space<vmem>>, vector<1x256xf32>
    %15 = vector.broadcast %14 : vector<1x256xf32> to vector<128x256xf32>
    %16 = arith.addf %13, %15 : vector<128x256xf32>
    %17 = vector.extract_strided_slice %16 {offsets = [0, 0], sizes = [128, 128], strides = [1, 1]} : vector<128x256xf32> to vector<128x128xf32>
    %cst_7 = arith.constant 0.000000e+00 : f32
    %18 = vector.broadcast %cst_7 : f32 to vector<128x128xf32>
    %19 = arith.maximumf %17, %18 : vector<128x128xf32>
    %20 = vector.extract_strided_slice %16 {offsets = [0, 128], sizes = [128, 128], strides = [1, 1]} : vector<128x256xf32> to vector<128x128xf32>
    %21 = arith.truncf %19 : vector<128x128xf32> to vector<128x128xbf16>
    %c1_i32_8 = arith.constant 1 : i32
    %22 = tpu.dynamic_rotate %19 by %c1_i32_8 dim 0 : vector<128x128xf32>, i32 -> vector<128x128xf32>
    %cst_9 = arith.constant 0.000000e+00 : f32
    %23 = vector.broadcast %cst_9 : f32 to vector<128x128xf32>
    %24 = arith.select %6, %22, %23 : vector<128x128xi1>, vector<128x128xf32>
    %25 = arith.truncf %24 : vector<128x128xf32> to vector<128x128xbf16>
    %26 = tpu.concatenate %25, %21 in 1 : vector<128x128xbf16>, vector<128x128xbf16> -> vector<128x256xbf16>
    %c0_10 = arith.constant 0 : index
    %c0_11 = arith.constant 0 : index
    %27 = vector.load %arg4[%c0_10, %c0_11] : memref<256x128xbf16, #tpu.memory_space<vmem>>, vector<256x128xbf16>
    %cst_12 = arith.constant dense<0.000000e+00> : vector<128x128xf32>
    %28 = tpu.matmul %26, %27, %cst_12 {dimension_numbers = #tpu.dot_dimension_numbers<[1], [0], [0], [1], [0, 0, 1, 1], [], []>} : vector<128x256xbf16>, vector<256x128xbf16>, vector<128x128xf32> -> vector<128x128xf32>
    %c0_13 = arith.constant 0 : index
    %c0_14 = arith.constant 0 : index
    %29 = vector.load %arg5[%c0_13, %c0_14] : memref<1x128xf32, #tpu.memory_space<vmem>>, vector<1x128xf32>
    %30 = vector.broadcast %29 : vector<1x128xf32> to vector<128x128xf32>
    %31 = arith.addf %28, %30 : vector<128x128xf32>
    %cst_15 = arith.constant 0.000000e+00 : f32
    %32 = vector.broadcast %cst_15 : f32 to vector<128x128xf32>
    %33 = arith.maximumf %31, %32 : vector<128x128xf32>
    %34 = arith.addf %33, %20 : vector<128x128xf32>
    %cst_16 = arith.constant 0.000000e+00 : f32
    %35 = vector.broadcast %cst_16 : f32 to vector<128x128xf32>
    %36 = arith.maximumf %34, %35 : vector<128x128xf32>
    %37 = arith.truncf %36 : vector<128x128xf32> to vector<128x128xbf16>
    %c2_i32 = arith.constant 2 : i32
    %38 = vector.broadcast %c2_i32 : i32 to vector<128x128xi32>
    %39 = arith.cmpi sge, %2, %38 : vector<128x128xi32>
    %c2_i32_17 = arith.constant 2 : i32
    %40 = tpu.dynamic_rotate %36 by %c2_i32_17 dim 0 : vector<128x128xf32>, i32 -> vector<128x128xf32>
    %cst_18 = arith.constant 0.000000e+00 : f32
    %41 = vector.broadcast %cst_18 : f32 to vector<128x128xf32>
    %42 = arith.select %39, %40, %41 : vector<128x128xi1>, vector<128x128xf32>
    %43 = arith.truncf %42 : vector<128x128xf32> to vector<128x128xbf16>
    %44 = tpu.concatenate %43, %37 in 1 : vector<128x128xbf16>, vector<128x128xbf16> -> vector<128x256xbf16>
    %c0_19 = arith.constant 0 : index
    %c0_20 = arith.constant 0 : index
    %45 = vector.load %arg6[%c0_19, %c0_20] : memref<256x128xbf16, #tpu.memory_space<vmem>>, vector<256x128xbf16>
    %cst_21 = arith.constant dense<0.000000e+00> : vector<128x128xf32>
    %46 = tpu.matmul %44, %45, %cst_21 {dimension_numbers = #tpu.dot_dimension_numbers<[1], [0], [0], [1], [0, 0, 1, 1], [], []>} : vector<128x256xbf16>, vector<256x128xbf16>, vector<128x128xf32> -> vector<128x128xf32>
    %c0_22 = arith.constant 0 : index
    %c0_23 = arith.constant 0 : index
    %47 = vector.load %arg7[%c0_22, %c0_23] : memref<1x128xf32, #tpu.memory_space<vmem>>, vector<1x128xf32>
    %48 = vector.broadcast %47 : vector<1x128xf32> to vector<128x128xf32>
    %49 = arith.addf %46, %48 : vector<128x128xf32>
    %cst_24 = arith.constant 0.000000e+00 : f32
    %50 = vector.broadcast %cst_24 : f32 to vector<128x128xf32>
    %51 = arith.maximumf %49, %50 : vector<128x128xf32>
    %52 = arith.truncf %51 : vector<128x128xf32> to vector<128x128xbf16>
    %c2_i32_25 = arith.constant 2 : i32
    %53 = tpu.dynamic_rotate %51 by %c2_i32_25 dim 0 : vector<128x128xf32>, i32 -> vector<128x128xf32>
    %cst_26 = arith.constant 0.000000e+00 : f32
    %54 = vector.broadcast %cst_26 : f32 to vector<128x128xf32>
    %55 = arith.select %39, %53, %54 : vector<128x128xi1>, vector<128x128xf32>
    %56 = arith.truncf %55 : vector<128x128xf32> to vector<128x128xbf16>
    %57 = tpu.concatenate %56, %52 in 1 : vector<128x128xbf16>, vector<128x128xbf16> -> vector<128x256xbf16>
    %c0_27 = arith.constant 0 : index
    %c0_28 = arith.constant 0 : index
    %58 = vector.load %arg8[%c0_27, %c0_28] : memref<256x128xbf16, #tpu.memory_space<vmem>>, vector<256x128xbf16>
    %cst_29 = arith.constant dense<0.000000e+00> : vector<128x128xf32>
    %59 = tpu.matmul %57, %58, %cst_29 {dimension_numbers = #tpu.dot_dimension_numbers<[1], [0], [0], [1], [0, 0, 1, 1], [], []>} : vector<128x256xbf16>, vector<256x128xbf16>, vector<128x128xf32> -> vector<128x128xf32>
    %c0_30 = arith.constant 0 : index
    %c0_31 = arith.constant 0 : index
    %60 = vector.load %arg9[%c0_30, %c0_31] : memref<1x128xf32, #tpu.memory_space<vmem>>, vector<1x128xf32>
    %61 = vector.broadcast %60 : vector<1x128xf32> to vector<128x128xf32>
    %62 = arith.addf %59, %61 : vector<128x128xf32>
    %cst_32 = arith.constant 0.000000e+00 : f32
    %63 = vector.broadcast %cst_32 : f32 to vector<128x128xf32>
    %64 = arith.maximumf %62, %63 : vector<128x128xf32>
    %65 = arith.addf %64, %36 : vector<128x128xf32>
    %cst_33 = arith.constant 0.000000e+00 : f32
    %66 = vector.broadcast %cst_33 : f32 to vector<128x128xf32>
    %67 = arith.maximumf %65, %66 : vector<128x128xf32>
    %68 = arith.truncf %67 : vector<128x128xf32> to vector<128x128xbf16>
    %c4_i32 = arith.constant 4 : i32
    %69 = vector.broadcast %c4_i32 : i32 to vector<128x128xi32>
    %70 = arith.cmpi sge, %2, %69 : vector<128x128xi32>
    %c4_i32_34 = arith.constant 4 : i32
    %71 = tpu.dynamic_rotate %67 by %c4_i32_34 dim 0 : vector<128x128xf32>, i32 -> vector<128x128xf32>
    %cst_35 = arith.constant 0.000000e+00 : f32
    %72 = vector.broadcast %cst_35 : f32 to vector<128x128xf32>
    %73 = arith.select %70, %71, %72 : vector<128x128xi1>, vector<128x128xf32>
    %74 = arith.truncf %73 : vector<128x128xf32> to vector<128x128xbf16>
    %75 = tpu.concatenate %74, %68 in 1 : vector<128x128xbf16>, vector<128x128xbf16> -> vector<128x256xbf16>
    %c0_36 = arith.constant 0 : index
    %c0_37 = arith.constant 0 : index
    %76 = vector.load %arg10[%c0_36, %c0_37] : memref<256x256xbf16, #tpu.memory_space<vmem>>, vector<256x256xbf16>
    %cst_38 = arith.constant dense<0.000000e+00> : vector<128x256xf32>
    %77 = tpu.matmul %75, %76, %cst_38 {dimension_numbers = #tpu.dot_dimension_numbers<[1], [0], [0], [1], [0, 0, 1, 1], [], []>} : vector<128x256xbf16>, vector<256x256xbf16>, vector<128x256xf32> -> vector<128x256xf32>
    %c0_39 = arith.constant 0 : index
    %c0_40 = arith.constant 0 : index
    %78 = vector.load %arg11[%c0_39, %c0_40] : memref<1x256xf32, #tpu.memory_space<vmem>>, vector<1x256xf32>
    %79 = vector.broadcast %78 : vector<1x256xf32> to vector<128x256xf32>
    %80 = arith.addf %77, %79 : vector<128x256xf32>
    %81 = vector.extract_strided_slice %80 {offsets = [0, 0], sizes = [128, 128], strides = [1, 1]} : vector<128x256xf32> to vector<128x128xf32>
    %cst_41 = arith.constant 0.000000e+00 : f32
    %82 = vector.broadcast %cst_41 : f32 to vector<128x128xf32>
    %83 = arith.maximumf %81, %82 : vector<128x128xf32>
    %84 = vector.extract_strided_slice %80 {offsets = [0, 128], sizes = [128, 128], strides = [1, 1]} : vector<128x256xf32> to vector<128x128xf32>
    %85 = arith.truncf %83 : vector<128x128xf32> to vector<128x128xbf16>
    %c4_i32_42 = arith.constant 4 : i32
    %86 = tpu.dynamic_rotate %83 by %c4_i32_42 dim 0 : vector<128x128xf32>, i32 -> vector<128x128xf32>
    %cst_43 = arith.constant 0.000000e+00 : f32
    %87 = vector.broadcast %cst_43 : f32 to vector<128x128xf32>
    %88 = arith.select %70, %86, %87 : vector<128x128xi1>, vector<128x128xf32>
    %89 = arith.truncf %88 : vector<128x128xf32> to vector<128x128xbf16>
    %90 = tpu.concatenate %89, %85 in 1 : vector<128x128xbf16>, vector<128x128xbf16> -> vector<128x256xbf16>
    %c0_44 = arith.constant 0 : index
    %c0_45 = arith.constant 0 : index
    %91 = vector.load %arg12[%c0_44, %c0_45] : memref<256x128xbf16, #tpu.memory_space<vmem>>, vector<256x128xbf16>
    %cst_46 = arith.constant dense<0.000000e+00> : vector<128x128xf32>
    %92 = tpu.matmul %90, %91, %cst_46 {dimension_numbers = #tpu.dot_dimension_numbers<[1], [0], [0], [1], [0, 0, 1, 1], [], []>} : vector<128x256xbf16>, vector<256x128xbf16>, vector<128x128xf32> -> vector<128x128xf32>
    %c0_47 = arith.constant 0 : index
    %c0_48 = arith.constant 0 : index
    %93 = vector.load %arg13[%c0_47, %c0_48] : memref<1x128xf32, #tpu.memory_space<vmem>>, vector<1x128xf32>
    %94 = vector.broadcast %93 : vector<1x128xf32> to vector<128x128xf32>
    %95 = arith.addf %92, %94 : vector<128x128xf32>
    %cst_49 = arith.constant 0.000000e+00 : f32
    %96 = vector.broadcast %cst_49 : f32 to vector<128x128xf32>
    %97 = arith.maximumf %95, %96 : vector<128x128xf32>
    %98 = arith.addf %97, %84 : vector<128x128xf32>
    %cst_50 = arith.constant 0.000000e+00 : f32
    %99 = vector.broadcast %cst_50 : f32 to vector<128x128xf32>
    %100 = arith.maximumf %98, %99 : vector<128x128xf32>
    %101 = tpu.iota {dimensions = array<i32: 0>} : vector<8x128xi32>
    %102 = tpu.iota {dimensions = array<i32: 1>} : vector<8x128xi32>
    %c16_i32 = arith.constant 16 : i32
    %103 = vector.broadcast %c16_i32 : i32 to vector<8x128xi32>
    %104 = arith.muli %101, %103 : vector<8x128xi32>
    %c15_i32_51 = arith.constant 15 : i32
    %105 = vector.broadcast %c15_i32_51 : i32 to vector<8x128xi32>
    %106 = arith.addi %104, %105 : vector<8x128xi32>
    %107 = arith.cmpi eq, %102, %106 : vector<8x128xi32>
    %108 = arith.extui %107 : vector<8x128xi1> to vector<8x128xi32>
    %109 = arith.sitofp %108 : vector<8x128xi32> to vector<8x128xf32>
    %110 = arith.truncf %109 : vector<8x128xf32> to vector<8x128xbf16>
    %111 = arith.truncf %100 : vector<128x128xf32> to vector<128x128xbf16>
    %cst_52 = arith.constant dense<0.000000e+00> : vector<8x128xf32>
    %112 = tpu.matmul %110, %111, %cst_52 {dimension_numbers = #tpu.dot_dimension_numbers<[1], [0], [0], [1], [0, 0, 1, 1], [], []>} : vector<8x128xbf16>, vector<128x128xbf16>, vector<8x128xf32> -> vector<8x128xf32>
    %113 = arith.truncf %112 : vector<8x128xf32> to vector<8x128xbf16>
    %c0_53 = arith.constant 0 : index
    %c0_54 = arith.constant 0 : index
    %114 = vector.load %arg14[%c0_53, %c0_54] : memref<128x128xbf16, #tpu.memory_space<vmem>>, vector<128x128xbf16>
    %cst_55 = arith.constant dense<0.000000e+00> : vector<8x128xf32>
    %115 = tpu.matmul %113, %114, %cst_55 {dimension_numbers = #tpu.dot_dimension_numbers<[1], [0], [0], [1], [0, 0, 1, 1], [], []>} : vector<8x128xbf16>, vector<128x128xbf16>, vector<8x128xf32> -> vector<8x128xf32>
    %c0_56 = arith.constant 0 : index
    %c0_57 = arith.constant 0 : index
    %116 = vector.load %arg15[%c0_56, %c0_57] : memref<1x128xf32, #tpu.memory_space<vmem>>, vector<1x128xf32>
    %117 = vector.broadcast %116 : vector<1x128xf32> to vector<8x128xf32>
    %118 = arith.addf %115, %117 : vector<8x128xf32>
    %c0_58 = arith.constant 0 : index
    %c0_59 = arith.constant 0 : index
    %119 = vector.load %arg16[%c0_58, %c0_59] : memref<8x128xf32, #tpu.memory_space<vmem>>, vector<8x128xf32>
    tpu.vector_store %arg16[%c0_58, %c0_59], %118 {strides = array<i32>} : memref<8x128xf32, #tpu.memory_space<vmem>>, vector<8x128xf32>,
    return
  }
  func.func @transform_0(%arg0: i32) -> (i32, i32) {
    %c0_i32 = arith.constant 0 : i32
    %c0_i32_0 = arith.constant 0 : i32
    return %arg0, %c0_i32 : i32, i32
  }
  func.func @transform_1(%arg0: i32) -> (i32, i32) {
    %c0_i32 = arith.constant 0 : i32
    %c0_i32_0 = arith.constant 0 : i32
    %c0_i32_1 = arith.constant 0 : i32
    return %c0_i32, %c0_i32_0 : i32, i32
  }
  func.func @transform_2(%arg0: i32) -> (i32, i32) {
    %c0_i32 = arith.constant 0 : i32
    %c0_i32_0 = arith.constant 0 : i32
    %c0_i32_1 = arith.constant 0 : i32
    return %c0_i32, %c0_i32_0 : i32, i32
  }
  func.func @transform_3(%arg0: i32) -> (i32, i32) {
    %c0_i32 = arith.constant 0 : i32
    %c0_i32_0 = arith.constant 0 : i32
    %c0_i32_1 = arith.constant 0 : i32
    return %c0_i32, %c0_i32_0 : i32, i32
  }
  func.func @transform_4(%arg0: i32) -> (i32, i32) {
    %c0_i32 = arith.constant 0 : i32
    %c0_i32_0 = arith.constant 0 : i32
    %c0_i32_1 = arith.constant 0 : i32
    return %c0_i32, %c0_i32_0 : i32, i32
  }
  func.func @transform_5(%arg0: i32) -> (i32, i32) {
    %c0_i32 = arith.constant 0 : i32
    %c0_i32_0 = arith.constant 0 : i32
    %c0_i32_1 = arith.constant 0 : i32
    return %c0_i32, %c0_i32_0 : i32, i32
  }
  func.func @transform_6(%arg0: i32) -> (i32, i32) {
    %c0_i32 = arith.constant 0 : i32
    %c0_i32_0 = arith.constant 0 : i32
    %c0_i32_1 = arith.constant 0 : i32
    return %c0_i32, %c0_i32_0 : i32, i32
  }
  func.func @transform_7(%arg0: i32) -> (i32, i32) {
    %c0_i32 = arith.constant 0 : i32
    %c0_i32_0 = arith.constant 0 : i32
    %c0_i32_1 = arith.constant 0 : i32
    return %c0_i32, %c0_i32_0 : i32, i32
  }
  func.func @transform_8(%arg0: i32) -> (i32, i32) {
    %c0_i32 = arith.constant 0 : i32
    %c0_i32_0 = arith.constant 0 : i32
    %c0_i32_1 = arith.constant 0 : i32
    return %c0_i32, %c0_i32_0 : i32, i32
  }
  func.func @transform_9(%arg0: i32) -> (i32, i32) {
    %c0_i32 = arith.constant 0 : i32
    %c0_i32_0 = arith.constant 0 : i32
    %c0_i32_1 = arith.constant 0 : i32
    return %c0_i32, %c0_i32_0 : i32, i32
  }
  func.func @transform_10(%arg0: i32) -> (i32, i32) {
    %c0_i32 = arith.constant 0 : i32
    %c0_i32_0 = arith.constant 0 : i32
    %c0_i32_1 = arith.constant 0 : i32
    return %c0_i32, %c0_i32_0 : i32, i32
  }
  func.func @transform_11(%arg0: i32) -> (i32, i32) {
    %c0_i32 = arith.constant 0 : i32
    %c0_i32_0 = arith.constant 0 : i32
    %c0_i32_1 = arith.constant 0 : i32
    return %c0_i32, %c0_i32_0 : i32, i32
  }
  func.func @transform_12(%arg0: i32) -> (i32, i32) {
    %c0_i32 = arith.constant 0 : i32
    %c0_i32_0 = arith.constant 0 : i32
    %c0_i32_1 = arith.constant 0 : i32
    return %c0_i32, %c0_i32_0 : i32, i32
  }
  func.func @transform_13(%arg0: i32) -> (i32, i32) {
    %c0_i32 = arith.constant 0 : i32
    %c0_i32_0 = arith.constant 0 : i32
    %c0_i32_1 = arith.constant 0 : i32
    return %c0_i32, %c0_i32_0 : i32, i32
  }
  func.func @transform_14(%arg0: i32) -> (i32, i32) {
    %c0_i32 = arith.constant 0 : i32
    %c0_i32_0 = arith.constant 0 : i32
    %c0_i32_1 = arith.constant 0 : i32
    return %c0_i32, %c0_i32_0 : i32, i32
  }
  func.func @transform_15(%arg0: i32) -> (i32, i32) {
    %c0_i32 = arith.constant 0 : i32
    %c0_i32_0 = arith.constant 0 : i32
    return %arg0, %c0_i32 : i32, i32
  }
}

</mosaic_0001>

<llo_original>
// kernel: tpu_custom_call.1
$region0: #{tpu_custom_call.1}
  #allocation0 [shape = 'u32[]', space=smem, size = 0x4, offset = 0x4, fixed_abs, tag = 'smem constant byte address 0x4 - core index']
  #allocation1 [shape = 'u32[144,128]{1,0:T(1,128)}', space=vmem, size = 0x12000, scoped, tag = 'internal scratch']
  %s0 = inlined_call_operand.hbm [shape: f32[256,128], index: 0, kind: input, shape index: {}]
  %s1 = inlined_call_operand.hbm [shape: bf16[256,256], index: 1, kind: input, shape index: {}]
  %s2 = inlined_call_operand.vmem [shape: f32[1,256], index: 2, kind: input, shape index: {}]
  %s3 = inlined_call_operand.hbm [shape: bf16[256,128], index: 3, kind: input, shape index: {}]
  %s4 = inlined_call_operand.vmem [shape: f32[1,128], index: 4, kind: input, shape index: {}]
  %s5 = inlined_call_operand.hbm [shape: bf16[256,128], index: 5, kind: input, shape index: {}]
  %s6 = inlined_call_operand.vmem [shape: f32[1,128], index: 6, kind: input, shape index: {}]
  %s7 = inlined_call_operand.hbm [shape: bf16[256,128], index: 7, kind: input, shape index: {}]
  %s8 = inlined_call_operand.vmem [shape: f32[1,128], index: 8, kind: input, shape index: {}]
  %s9 = inlined_call_operand.hbm [shape: bf16[256,256], index: 9, kind: input, shape index: {}]
  %s10 = inlined_call_operand.vmem [shape: f32[1,256], index: 10, kind: input, shape index: {}]
  %s11 = inlined_call_operand.hbm [shape: bf16[256,128], index: 11, kind: input, shape index: {}]
  %s12 = inlined_call_operand.vmem [shape: f32[1,128], index: 12, kind: input, shape index: {}]
  %s13 = inlined_call_operand.hbm [shape: bf16[128,128], index: 13, kind: input, shape index: {}]
  %s14 = inlined_call_operand.vmem [shape: f32[1,128], index: 14, kind: input, shape index: {}]
  %s15 = inlined_call_operand.hbm [shape: f32[16,128], index: 15, kind: output, shape index: {}]
  %s16 = sld [smem:[#allocation0]]
  $region125: #{tpu_custom_call.1} parent=0
    _
  %s18 = ssub.s32 1, %s16
  %s19 = scalar_select 0, %s18, %s16
  $region1: #{tpu_custom_call.1} parent=0
    #allocation2 [shape = 'u8[131072]{0}', space=vmem, size = 0x20000, scoped, tag = 'input window, operand 0']
    #allocation3 [shape = 's32[2]{0}', space=sflag, size = 0x8, scoped, tag = 'scoped memory for tpu_custom_call.1']
    #allocation4 [shape = 's32[2]{0}', space=sflag, size = 0x8, scoped, tag = 'scoped memory for tpu_custom_call.1']
    #allocation5 [shape = 'u8[131072]{0}', space=vmem, size = 0x20000, scoped, tag = 'input window, operand 1, single buffered']
    #allocation6 [shape = 's32[1]{0}', space=sflag, size = 0x4, scoped, tag = 'scoped memory for tpu_custom_call.1']
    #allocation7 [shape = 'u8[65536]{0}', space=vmem, size = 0x10000, scoped, tag = 'input window, operand 3, single buffered']
    #allocation8 [shape = 'u8[65536]{0}', space=vmem, size = 0x10000, scoped, tag = 'input window, operand 5, single buffered']
    #allocation9 [shape = 's32[1]{0}', space=sflag, size = 0x4, scoped, tag = 'scoped memory for tpu_custom_call.1']
    #allocation10 [shape = 'u8[65536]{0}', space=vmem, size = 0x10000, scoped, tag = 'input window, operand 7, single buffered']
    #allocation11 [shape = 'u8[131072]{0}', space=vmem, size = 0x20000, scoped, tag = 'input window, operand 9, single buffered']
    #allocation12 [shape = 's32[1]{0}', space=sflag, size = 0x4, scoped, tag = 'scoped memory for tpu_custom_call.1']
    #allocation13 [shape = 'u8[65536]{0}', space=vmem, size = 0x10000, scoped, tag = 'input window, operand 11, single buffered']
    #allocation14 [shape = 'u8[32768]{0}', space=vmem, size = 0x8000, scoped, tag = 'input window, operand 13, single buffered']
    #allocation15 [shape = 's32[1]{0}', space=sflag, size = 0x4, scoped, tag = 'scoped memory for tpu_custom_call.1']
    #allocation16 [shape = 'u8[8192]{0}', space=vmem, size = 0x2000, scoped, tag = 'output window, operand 0']
    %20 = vsyncpa [#allocation3], 0
    %s21 = scalar_lea.sflag [#allocation3], 1
    %22 = vsyncpa %s21, 0
    %23 = vsyncpa [#allocation6], 0
    %24 = vsyncpa [#allocation9], 0
    %25 = vsyncpa [#allocation12], 0
    %26 = vsyncpa [#allocation15], 0
    %27 = vsyncpa [#allocation4], 0
    %s28 = scalar_lea.sflag [#allocation4], 1
    %29 = vsyncpa %s28, 0
    loop: start=0, step=1, limit=4
    $region2: #{tpu_custom_call.1} parent=1 // loop_pre_header
      _
    $region3: #{tpu_custom_call.1} parent=1 // loop_header
      %s31 = sphi 0, %s35
      %p32 = scmp.ge.s32.totalorder %s31, 4
      %s41 = sphi 0, %s43
      %s44 = sphi 0, %s41
      %s45 = sphi 0, %s44
      %s61 = sphi 0, %s45
      %s65 = sphi 0, %s65
      %s67 = sphi 0, %s65
      %s68 = sphi 0, %s67
      %s82 = sphi 0, %s68
      %s86 = sphi 0, %s86
      %s88 = sphi 0, %s86
      %s89 = sphi 0, %s88
      %s103 = sphi 0, %s89
      %s107 = sphi 0, %s107
      %s109 = sphi 0, %s107
      %s110 = sphi 0, %s109
      %s124 = sphi 0, %s110
      %s128 = sphi 0, %s128
      %s130 = sphi 0, %s128
      %s131 = sphi 0, %s130
      %s145 = sphi 0, %s131
      %s149 = sphi 0, %s149
      %s151 = sphi 0, %s149
      %s152 = sphi 0, %s151
      %s166 = sphi 0, %s152
      %s170 = sphi 0, %s170
      %s172 = sphi 0, %s170
      %s173 = sphi 0, %s172
      %s187 = sphi 0, %s173
      %s191 = sphi 0, %s191
      %s193 = sphi 0, %s191
      %s194 = sphi 0, %s193
      %s208 = sphi 0, %s194
      %s212 = sphi 0, %s212
      %s214 = sphi 0, %s212
      %s215 = sphi 0, %s214
      %s229 = sphi 0, %s215
      %s233 = sphi 0, %s233
      %s235 = sphi 0, %s233
      %s236 = sphi 0, %s235
      %s250 = sphi 0, %s236
      %s254 = sphi 0, %s254
      %s256 = sphi 0, %s254
      %s257 = sphi 0, %s256
      %s271 = sphi 0, %s257
      %s275 = sphi 0, %s275
      %s277 = sphi 0, %s275
      %s278 = sphi 0, %s277
      %s292 = sphi 0, %s278
      %s296 = sphi 0, %s296
      %s298 = sphi 0, %s296
      %s299 = sphi 0, %s298
      %s313 = sphi 0, %s299
      %s317 = sphi 0, %s317
      %s319 = sphi 0, %s317
      %s320 = sphi 0, %s319
      %s334 = sphi 0, %s320
      %s338 = sphi 0, %s338
      %s340 = sphi 0, %s338
      %s341 = sphi 0, %s340
      %s355 = sphi 0, %s341
      %s361 = sphi 0, %s363
      %s364 = sphi 0, %s361
      %s365 = sphi 0, %s364
      %s381 = sphi 0, %s365
    $region4: #{tpu_custom_call.1} parent=1 // loop_header_branch
      %34 = sbr.rel (%p32) target = $region8
    $region5: #{tpu_custom_call.1} parent=1 // loop_body
      %s36 = ssub.s32 %s31, 1
      %s37 = ssub.s32 %s31, 2
      %s38 = sadd.s32 %s31, 1
      %s39 = ssub.s32 %s31, %s38
      %p40 = scmp.eq.s32.totalorder %s39, 0
      %s42 = sadd.s32 %s41, 1
      %s43 = scalar_select %p40, %s41, %s42
      %p46 = pneg %p40
      %p47 = scmp.eq.s32.totalorder %s31, 1
      %p48 = por %p46, %p47
      %p49 = scmp.ne.s32.totalorder %s41, %s44
      %p50 = scmp.eq.s32.totalorder %s31, 0
      %p51 = por %p49, %p50
      %p52 = scmp.ne.s32.totalorder %s41, %s44
      %p53 = scmp.eq.s32.totalorder %s36, 1
      %p54 = por %p52, %p53
      %p55 = scmp.ne.s32.totalorder %s44, %s45
      %p56 = scmp.eq.s32.totalorder %s36, 0
      %p57 = por %p55, %p56
      %p58 = scmp.ne.s32.totalorder %s44, %s45
      %p59 = scmp.eq.s32.totalorder %s37, 1
      %p60 = por %p58, %p59
      %p62 = scmp.ne.s32.totalorder %s45, %s61
      %p63 = scmp.eq.s32.totalorder %s37, 0
      %p64 = por %p62, %p63
      %s66 = sadd.s32 %s65, 1
      %p69 = scmp.eq.s32.totalorder %s31, 1
      %p70 = scmp.ne.s32.totalorder %s65, %s67
      %p71 = scmp.eq.s32.totalorder %s31, 0
      %p72 = por %p70, %p71
      %p73 = scmp.ne.s32.totalorder %s65, %s67
      %p74 = scmp.eq.s32.totalorder %s36, 1
      %p75 = por %p73, %p74
      %p76 = scmp.ne.s32.totalorder %s67, %s68
      %p77 = scmp.eq.s32.totalorder %s36, 0
      %p78 = por %p76, %p77
      %p79 = scmp.ne.s32.totalorder %s67, %s68
      %p80 = scmp.eq.s32.totalorder %s37, 1
      %p81 = por %p79, %p80
      %p83 = scmp.ne.s32.totalorder %s68, %s82
      %p84 = scmp.eq.s32.totalorder %s37, 0
      %p85 = por %p83, %p84
      %s87 = sadd.s32 %s86, 1
      %p90 = scmp.eq.s32.totalorder %s31, 1
      %p91 = scmp.ne.s32.totalorder %s86, %s88
      %p92 = scmp.eq.s32.totalorder %s31, 0
      %p93 = por %p91, %p92
      %p94 = scmp.ne.s32.totalorder %s86, %s88
      %p95 = scmp.eq.s32.totalorder %s36, 1
      %p96 = por %p94, %p95
      %p97 = scmp.ne.s32.totalorder %s88, %s89
      %p98 = scmp.eq.s32.totalorder %s36, 0
      %p99 = por %p97, %p98
      %p100 = scmp.ne.s32.totalorder %s88, %s89
      %p101 = scmp.eq.s32.totalorder %s37, 1
      %p102 = por %p100, %p101
      %p104 = scmp.ne.s32.totalorder %s89, %s103
      %p105 = scmp.eq.s32.totalorder %s37, 0
      %p106 = por %p104, %p105
      %s108 = sadd.s32 %s107, 1
      %p111 = scmp.eq.s32.totalorder %s31, 1
      %p112 = scmp.ne.s32.totalorder %s107, %s109
      %p113 = scmp.eq.s32.totalorder %s31, 0
      %p114 = por %p112, %p113
      %p115 = scmp.ne.s32.totalorder %s107, %s109
      %p116 = scmp.eq.s32.totalorder %s36, 1
      %p117 = por %p115, %p116
      %p118 = scmp.ne.s32.totalorder %s109, %s110
      %p119 = scmp.eq.s32.totalorder %s36, 0
      %p120 = por %p118, %p119
      %p121 = scmp.ne.s32.totalorder %s109, %s110
      %p122 = scmp.eq.s32.totalorder %s37, 1
      %p123 = por %p121, %p122
      %p125 = scmp.ne.s32.totalorder %s110, %s124
      %p126 = scmp.eq.s32.totalorder %s37, 0
      %p127 = por %p125, %p126
      %s129 = sadd.s32 %s128, 1
      %p132 = scmp.eq.s32.totalorder %s31, 1
      %p133 = scmp.ne.s32.totalorder %s128, %s130
      %p134 = scmp.eq.s32.totalorder %s31, 0
      %p135 = por %p133, %p134
      %p136 = scmp.ne.s32.totalorder %s128, %s130
      %p137 = scmp.eq.s32.totalorder %s36, 1
      %p138 = por %p136, %p137
      %p139 = scmp.ne.s32.totalorder %s130, %s131
      %p140 = scmp.eq.s32.totalorder %s36, 0
      %p141 = por %p139, %p140
      %p142 = scmp.ne.s32.totalorder %s130, %s131
      %p143 = scmp.eq.s32.totalorder %s37, 1
      %p144 = por %p142, %p143
      %p146 = scmp.ne.s32.totalorder %s131, %s145
      %p147 = scmp.eq.s32.totalorder %s37, 0
      %p148 = por %p146, %p147
      %s150 = sadd.s32 %s149, 1
      %p153 = scmp.eq.s32.totalorder %s31, 1
      %p154 = scmp.ne.s32.totalorder %s149, %s151
      %p155 = scmp.eq.s32.totalorder %s31, 0
      %p156 = por %p154, %p155
      %p157 = scmp.ne.s32.totalorder %s149, %s151
      %p158 = scmp.eq.s32.totalorder %s36, 1
      %p159 = por %p157, %p158
      %p160 = scmp.ne.s32.totalorder %s151, %s152
      %p161 = scmp.eq.s32.totalorder %s36, 0
      %p162 = por %p160, %p161
      %p163 = scmp.ne.s32.totalorder %s151, %s152
      %p164 = scmp.eq.s32.totalorder %s37, 1
      %p165 = por %p163, %p164
      %p167 = scmp.ne.s32.totalorder %s152, %s166
      %p168 = scmp.eq.s32.totalorder %s37, 0
      %p169 = por %p167, %p168
      %s171 = sadd.s32 %s170, 1
      %p174 = scmp.eq.s32.totalorder %s31, 1
      %p175 = scmp.ne.s32.totalorder %s170, %s172
      %p176 = scmp.eq.s32.totalorder %s31, 0
      %p177 = por %p175, %p176
      %p178 = scmp.ne.s32.totalorder %s170, %s172
      %p179 = scmp.eq.s32.totalorder %s36, 1
      %p180 = por %p178, %p179
      %p181 = scmp.ne.s32.totalorder %s172, %s173
      %p182 = scmp.eq.s32.totalorder %s36, 0
      %p183 = por %p181, %p182
      %p184 = scmp.ne.s32.totalorder %s172, %s173
      %p185 = scmp.eq.s32.totalorder %s37, 1
      %p186 = por %p184, %p185
      %p188 = scmp.ne.s32.totalorder %s173, %s187
      %p189 = scmp.eq.s32.totalorder %s37, 0
      %p190 = por %p188, %p189
      %s192 = sadd.s32 %s191, 1
      %p195 = scmp.eq.s32.totalorder %s31, 1
      %p196 = scmp.ne.s32.totalorder %s191, %s193
      %p197 = scmp.eq.s32.totalorder %s31, 0
      %p198 = por %p196, %p197
      %p199 = scmp.ne.s32.totalorder %s191, %s193
      %p200 = scmp.eq.s32.totalorder %s36, 1
      %p201 = por %p199, %p200
      %p202 = scmp.ne.s32.totalorder %s193, %s194
      %p203 = scmp.eq.s32.totalorder %s36, 0
      %p204 = por %p202, %p203
      %p205 = scmp.ne.s32.totalorder %s193, %s194
      %p206 = scmp.eq.s32.totalorder %s37, 1
      %p207 = por %p205, %p206
      %p209 = scmp.ne.s32.totalorder %s194, %s208
      %p210 = scmp.eq.s32.totalorder %s37, 0
      %p211 = por %p209, %p210
      %s213 = sadd.s32 %s212, 1
      %p216 = scmp.eq.s32.totalorder %s31, 1
      %p217 = scmp.ne.s32.totalorder %s212, %s214
      %p218 = scmp.eq.s32.totalorder %s31, 0
      %p219 = por %p217, %p218
      %p220 = scmp.ne.s32.totalorder %s212, %s214
      %p221 = scmp.eq.s32.totalorder %s36, 1
      %p222 = por %p220, %p221
      %p223 = scmp.ne.s32.totalorder %s214, %s215
      %p224 = scmp.eq.s32.totalorder %s36, 0
      %p225 = por %p223, %p224
      %p226 = scmp.ne.s32.totalorder %s214, %s215
      %p227 = scmp.eq.s32.totalorder %s37, 1
      %p228 = por %p226, %p227
      %p230 = scmp.ne.s32.totalorder %s215, %s229
      %p231 = scmp.eq.s32.totalorder %s37, 0
      %p232 = por %p230, %p231
      %s234 = sadd.s32 %s233, 1
      %p237 = scmp.eq.s32.totalorder %s31, 1
      %p238 = scmp.ne.s32.totalorder %s233, %s235
      %p239 = scmp.eq.s32.totalorder %s31, 0
      %p240 = por %p238, %p239
      %p241 = scmp.ne.s32.totalorder %s233, %s235
      %p242 = scmp.eq.s32.totalorder %s36, 1
      %p243 = por %p241, %p242
      %p244 = scmp.ne.s32.totalorder %s235, %s236
      %p245 = scmp.eq.s32.totalorder %s36, 0
      %p246 = por %p244, %p245
      %p247 = scmp.ne.s32.totalorder %s235, %s236
      %p248 = scmp.eq.s32.totalorder %s37, 1
      %p249 = por %p247, %p248
      %p251 = scmp.ne.s32.totalorder %s236, %s250
      %p252 = scmp.eq.s32.totalorder %s37, 0
      %p253 = por %p251, %p252
      %s255 = sadd.s32 %s254, 1
      %p258 = scmp.eq.s32.totalorder %s31, 1
      %p259 = scmp.ne.s32.totalorder %s254, %s256
      %p260 = scmp.eq.s32.totalorder %s31, 0
      %p261 = por %p259, %p260
      %p262 = scmp.ne.s32.totalorder %s254, %s256
      %p263 = scmp.eq.s32.totalorder %s36, 1
      %p264 = por %p262, %p263
      %p265 = scmp.ne.s32.totalorder %s256, %s257
      %p266 = scmp.eq.s32.totalorder %s36, 0
      %p267 = por %p265, %p266
      %p268 = scmp.ne.s32.totalorder %s256, %s257
      %p269 = scmp.eq.s32.totalorder %s37, 1
      %p270 = por %p268, %p269
      %p272 = scmp.ne.s32.totalorder %s257, %s271
      %p273 = scmp.eq.s32.totalorder %s37, 0
      %p274 = por %p272, %p273
      %s276 = sadd.s32 %s275, 1
      %p279 = scmp.eq.s32.totalorder %s31, 1
      %p280 = scmp.ne.s32.totalorder %s275, %s277
      %p281 = scmp.eq.s32.totalorder %s31, 0
      %p282 = por %p280, %p281
      %p283 = scmp.ne.s32.totalorder %s275, %s277
      %p284 = scmp.eq.s32.totalorder %s36, 1
      %p285 = por %p283, %p284
      %p286 = scmp.ne.s32.totalorder %s277, %s278
      %p287 = scmp.eq.s32.totalorder %s36, 0
      %p288 = por %p286, %p287
      %p289 = scmp.ne.s32.totalorder %s277, %s278
      %p290 = scmp.eq.s32.totalorder %s37, 1
      %p291 = por %p289, %p290
      %p293 = scmp.ne.s32.totalorder %s278, %s292
      %p294 = scmp.eq.s32.totalorder %s37, 0
      %p295 = por %p293, %p294
      %s297 = sadd.s32 %s296, 1
      %p300 = scmp.eq.s32.totalorder %s31, 1
      %p301 = scmp.ne.s32.totalorder %s296, %s298
      %p302 = scmp.eq.s32.totalorder %s31, 0
      %p303 = por %p301, %p302
      %p304 = scmp.ne.s32.totalorder %s296, %s298
      %p305 = scmp.eq.s32.totalorder %s36, 1
      %p306 = por %p304, %p305
      %p307 = scmp.ne.s32.totalorder %s298, %s299
      %p308 = scmp.eq.s32.totalorder %s36, 0
      %p309 = por %p307, %p308
      %p310 = scmp.ne.s32.totalorder %s298, %s299
      %p311 = scmp.eq.s32.totalorder %s37, 1
      %p312 = por %p310, %p311
      %p314 = scmp.ne.s32.totalorder %s299, %s313
      %p315 = scmp.eq.s32.totalorder %s37, 0
      %p316 = por %p314, %p315
      %s318 = sadd.s32 %s317, 1
      %p321 = scmp.eq.s32.totalorder %s31, 1
      %p322 = scmp.ne.s32.totalorder %s317, %s319
      %p323 = scmp.eq.s32.totalorder %s31, 0
      %p324 = por %p322, %p323
      %p325 = scmp.ne.s32.totalorder %s317, %s319
      %p326 = scmp.eq.s32.totalorder %s36, 1
      %p327 = por %p325, %p326
      %p328 = scmp.ne.s32.totalorder %s319, %s320
      %p329 = scmp.eq.s32.totalorder %s36, 0
      %p330 = por %p328, %p329
      %p331 = scmp.ne.s32.totalorder %s319, %s320
      %p332 = scmp.eq.s32.totalorder %s37, 1
      %p333 = por %p331, %p332
      %p335 = scmp.ne.s32.totalorder %s320, %s334
      %p336 = scmp.eq.s32.totalorder %s37, 0
      %p337 = por %p335, %p336
      %s339 = sadd.s32 %s338, 1
      %p342 = scmp.eq.s32.totalorder %s31, 1
      %p343 = scmp.ne.s32.totalorder %s338, %s340
      %p344 = scmp.eq.s32.totalorder %s31, 0
      %p345 = por %p343, %p344
      %p346 = scmp.ne.s32.totalorder %s338, %s340
      %p347 = scmp.eq.s32.totalorder %s36, 1
      %p348 = por %p346, %p347
      %p349 = scmp.ne.s32.totalorder %s340, %s341
      %p350 = scmp.eq.s32.totalorder %s36, 0
      %p351 = por %p349, %p350
      %p352 = scmp.ne.s32.totalorder %s340, %s341
      %p353 = scmp.eq.s32.totalorder %s37, 1
      %p354 = por %p352, %p353
      %p356 = scmp.ne.s32.totalorder %s341, %s355
      %p357 = scmp.eq.s32.totalorder %s37, 0
      %p358 = por %p356, %p357
      %s359 = ssub.s32 %s31, %s38
      %p360 = scmp.eq.s32.totalorder %s359, 0
      %s362 = sadd.s32 %s361, 1
      %s363 = scalar_select %p360, %s361, %s362
      %p366 = pneg %p360
      %p367 = scmp.eq.s32.totalorder %s31, 1
      %p368 = por %p366, %p367
      %p369 = scmp.ne.s32.totalorder %s361, %s364
      %p370 = scmp.eq.s32.totalorder %s31, 0
      %p371 = por %p369, %p370
      %p372 = scmp.ne.s32.totalorder %s361, %s364
      %p373 = scmp.eq.s32.totalorder %s36, 1
      %p374 = por %p372, %p373
      %p375 = scmp.ne.s32.totalorder %s364, %s365
      %p376 = scmp.eq.s32.totalorder %s36, 0
      %p377 = por %p375, %p376
      %p378 = scmp.ne.s32.totalorder %s364, %s365
      %p379 = scmp.eq.s32.totalorder %s37, 1
      %p380 = por %p378, %p379
      %p382 = scmp.ne.s32.totalorder %s365, %s381
      %p383 = scmp.eq.s32.totalorder %s37, 0
      %p384 = por %p382, %p383
      %p385 = scmp.le.s32.totalorder 1, %s31
      %p386 = scmp.lt.s32.totalorder %s31, 3
      %p387 = pnand %p385, %p386
      %p388 = pneg %p387
      // Predicated region
      $region9: #{tpu_custom_call.1} parent=5 // pred_check
        _
      $region10: #{tpu_custom_call.1} parent=5 // pred_check_branch
        %390 = sbr.rel (%p387) target = $region12
      $region11: #{tpu_custom_call.1} parent=5 // pred_region
        %s391 = ssub.s32 %s31, 1
        // Predicated region
        $region13: #{tpu_custom_call.1} parent=11 // pred_check
          %p392 = pneg %p78
        $region14: #{tpu_custom_call.1} parent=11 // pred_check_branch
          %394 = sbr.rel (%p392) target = $region16
        $region15: #{tpu_custom_call.1} parent=11 // pred_region
          %s396 = ssub.s32 4096, 4096
          %397 = vsyncadd [#allocation6], %s396
          %s398 = sshll.u32 [#allocation5], 4
          %s399 = int_to_ptr.vmem [resolvable:$true] %s398
          %404 = dma.hbm_to_vmem [thread:$0]  %s1, 4096, %s399, [#allocation6], 128, 128, 8
        $region16: #{tpu_custom_call.1} parent=11 // pred_fallthru
          _
        // Predicated region
        $region17: #{tpu_custom_call.1} parent=11 // pred_check
          %p405 = pneg %p99
        $region18: #{tpu_custom_call.1} parent=11 // pred_check_branch
          %407 = sbr.rel (%p405) target = $region20
        $region19: #{tpu_custom_call.1} parent=11 // pred_region
          _
        $region20: #{tpu_custom_call.1} parent=11 // pred_fallthru
          _
        // Predicated region
        $region21: #{tpu_custom_call.1} parent=11 // pred_check
          %p408 = pneg %p120
        $region22: #{tpu_custom_call.1} parent=11 // pred_check_branch
          %410 = sbr.rel (%p408) target = $region24
        $region23: #{tpu_custom_call.1} parent=11 // pred_region
          %s412 = ssub.s32 2048, 2048
          %413 = vsyncadd [#allocation6], %s412
          %s414 = sshll.u32 [#allocation7], 4
          %s415 = int_to_ptr.vmem [resolvable:$true] %s414
          %420 = dma.hbm_to_vmem [thread:$0]  %s3, 2048, %s415, [#allocation6], 64, 64, 4
        $region24: #{tpu_custom_call.1} parent=11 // pred_fallthru
          _
        // Predicated region
        $region25: #{tpu_custom_call.1} parent=11 // pred_check
          %p421 = pneg %p141
        $region26: #{tpu_custom_call.1} parent=11 // pred_check_branch
          %423 = sbr.rel (%p421) target = $region28
        $region27: #{tpu_custom_call.1} parent=11 // pred_region
          _
        $region28: #{tpu_custom_call.1} parent=11 // pred_fallthru
          _
        // Predicated region
        $region29: #{tpu_custom_call.1} parent=11 // pred_check
          %p424 = pneg %p162
        $region30: #{tpu_custom_call.1} parent=11 // pred_check_branch
          %426 = sbr.rel (%p424) target = $region32
        $region31: #{tpu_custom_call.1} parent=11 // pred_region
          %s428 = ssub.s32 2048, 2048
          %429 = vsyncadd [#allocation9], %s428
          %s430 = sshll.u32 [#allocation8], 4
          %s431 = int_to_ptr.vmem [resolvable:$true] %s430
          %436 = dma.hbm_to_vmem [thread:$0]  %s5, 2048, %s431, [#allocation9], 64, 64, 4
        $region32: #{tpu_custom_call.1} parent=11 // pred_fallthru
          _
        // Predicated region
        $region33: #{tpu_custom_call.1} parent=11 // pred_check
          %p437 = pneg %p183
        $region34: #{tpu_custom_call.1} parent=11 // pred_check_branch
          %439 = sbr.rel (%p437) target = $region36
        $region35: #{tpu_custom_call.1} parent=11 // pred_region
          _
        $region36: #{tpu_custom_call.1} parent=11 // pred_fallthru
          _
        // Predicated region
        $region37: #{tpu_custom_call.1} parent=11 // pred_check
          %p440 = pneg %p204
        $region38: #{tpu_custom_call.1} parent=11 // pred_check_branch
          %442 = sbr.rel (%p440) target = $region40
        $region39: #{tpu_custom_call.1} parent=11 // pred_region
          %s444 = ssub.s32 2048, 2048
          %445 = vsyncadd [#allocation9], %s444
          %s446 = sshll.u32 [#allocation10], 4
          %s447 = int_to_ptr.vmem [resolvable:$true] %s446
          %452 = dma.hbm_to_vmem [thread:$0]  %s7, 2048, %s447, [#allocation9], 64, 64, 4
        $region40: #{tpu_custom_call.1} parent=11 // pred_fallthru
          _
        // Predicated region
        $region41: #{tpu_custom_call.1} parent=11 // pred_check
          %p453 = pneg %p225
        $region42: #{tpu_custom_call.1} parent=11 // pred_check_branch
          %455 = sbr.rel (%p453) target = $region44
        $region43: #{tpu_custom_call.1} parent=11 // pred_region
          _
        $region44: #{tpu_custom_call.1} parent=11 // pred_fallthru
          _
        // Predicated region
        $region45: #{tpu_custom_call.1} parent=11 // pred_check
          %p456 = pneg %p246
        $region46: #{tpu_custom_call.1} parent=11 // pred_check_branch
          %458 = sbr.rel (%p456) target = $region48
        $region47: #{tpu_custom_call.1} parent=11 // pred_region
          %s460 = ssub.s32 4096, 4096
          %461 = vsyncadd [#allocation12], %s460
          %s462 = sshll.u32 [#allocation11], 4
          %s463 = int_to_ptr.vmem [resolvable:$true] %s462
          %468 = dma.hbm_to_vmem [thread:$0]  %s9, 4096, %s463, [#allocation12], 128, 128, 8
        $region48: #{tpu_custom_call.1} parent=11 // pred_fallthru
          _
        // Predicated region
        $region49: #{tpu_custom_call.1} parent=11 // pred_check
          %p469 = pneg %p267
        $region50: #{tpu_custom_call.1} parent=11 // pred_check_branch
          %471 = sbr.rel (%p469) target = $region52
        $region51: #{tpu_custom_call.1} parent=11 // pred_region
          _
        $region52: #{tpu_custom_call.1} parent=11 // pred_fallthru
          _
        // Predicated region
        $region53: #{tpu_custom_call.1} parent=11 // pred_check
          %p472 = pneg %p288
        $region54: #{tpu_custom_call.1} parent=11 // pred_check_branch
          %474 = sbr.rel (%p472) target = $region56
        $region55: #{tpu_custom_call.1} parent=11 // pred_region
          %s476 = ssub.s32 2048, 2048
          %477 = vsyncadd [#allocation12], %s476
          %s478 = sshll.u32 [#allocation13], 4
          %s479 = int_to_ptr.vmem [resolvable:$true] %s478
          %484 = dma.hbm_to_vmem [thread:$0]  %s11, 2048, %s479, [#allocation12], 64, 64, 4
        $region56: #{tpu_custom_call.1} parent=11 // pred_fallthru
          _
        // Predicated region
        $region57: #{tpu_custom_call.1} parent=11 // pred_check
          %p485 = pneg %p309
        $region58: #{tpu_custom_call.1} parent=11 // pred_check_branch
          %487 = sbr.rel (%p485) target = $region60
        $region59: #{tpu_custom_call.1} parent=11 // pred_region
          _
        $region60: #{tpu_custom_call.1} parent=11 // pred_fallthru
          _
        // Predicated region
        $region61: #{tpu_custom_call.1} parent=11 // pred_check
          %p488 = pneg %p330
        $region62: #{tpu_custom_call.1} parent=11 // pred_check_branch
          %490 = sbr.rel (%p488) target = $region64
        $region63: #{tpu_custom_call.1} parent=11 // pred_region
          %s492 = ssub.s32 1024, 1024
          %493 = vsyncadd [#allocation15], %s492
          %s494 = sshll.u32 [#allocation14], 4
          %s495 = int_to_ptr.vmem [resolvable:$true] %s494
          %500 = dma.hbm_to_vmem [thread:$0]  %s13, 1024, %s495, [#allocation15], 64, 64, 4
        $region64: #{tpu_custom_call.1} parent=11 // pred_fallthru
          _
        // Predicated region
        $region65: #{tpu_custom_call.1} parent=11 // pred_check
          %p501 = pneg %p351
        $region66: #{tpu_custom_call.1} parent=11 // pred_check_branch
          %503 = sbr.rel (%p501) target = $region68
        $region67: #{tpu_custom_call.1} parent=11 // pred_region
          _
        $region68: #{tpu_custom_call.1} parent=11 // pred_fallthru
          _
      $region12: #{tpu_custom_call.1} parent=5 // pred_fallthru
        _
      %p504 = scmp.lt.s32.totalorder %s31, 2
      // Predicated region
      $region69: #{tpu_custom_call.1} parent=5 // pred_check
        %p505 = pneg %p504
      $region70: #{tpu_custom_call.1} parent=5 // pred_check_branch
        %507 = sbr.rel (%p505) target = $region72
      $region71: #{tpu_custom_call.1} parent=5 // pred_region
        // Predicated region
        $region73: #{tpu_custom_call.1} parent=71 // pred_check
          %p508 = pneg %p51
        $region74: #{tpu_custom_call.1} parent=71 // pred_check_branch
          %510 = sbr.rel (%p508) target = $region76
        $region75: #{tpu_custom_call.1} parent=71 // pred_region
          %s511 = sand.u32 %s41, 1
          %s512 = scalar_lea.sflag [#allocation3], %s511
          %s513 = sand.u32 %s41, 1
          %s514 = smul.addr %s513, 128
          %s515 = scalar_lea.vmem [#allocation2], %s514
          %s516 = smul.u32 16, %s31
          %s518 = ssub.s32 2048, 2048
          %519 = vsyncadd %s512, %s518
          %s520 = smul.addr %s516, 128
          %s521 = scalar_lea.hbm %s0, %s520
          %s522 = sshll.u32 %s515, 4
          %s523 = int_to_ptr.vmem [resolvable:$true] %s522
          %528 = dma.hbm_to_vmem [thread:$0]  %s521, 2048, %s523, %s512, 128, 128, 8
        $region76: #{tpu_custom_call.1} parent=71 // pred_fallthru
          _
      $region72: #{tpu_custom_call.1} parent=5 // pred_fallthru
        _
      %p529 = scmp.le.s32.totalorder 1, %s31
      %p530 = scmp.lt.s32.totalorder %s31, 3
      %p531 = pnand %p529, %p530
      %p532 = pneg %p531
      // Predicated region
      $region77: #{tpu_custom_call.1} parent=5 // pred_check
        _
      $region78: #{tpu_custom_call.1} parent=5 // pred_check_branch
        %534 = sbr.rel (%p531) target = $region80
      $region79: #{tpu_custom_call.1} parent=5 // pred_region
        %s535 = ssub.s32 %s31, 1
        %s536 = sand.u32 %s44, 1
        %s537 = scalar_lea.sflag [#allocation3], %s536
        %s538 = sand.u32 %s44, 1
        %s539 = smul.addr %s538, 128
        %s540 = scalar_lea.vmem [#allocation2], %s539
        // Predicated region
        $region81: #{tpu_custom_call.1} parent=79 // pred_check
          %p541 = pneg %p57
        $region82: #{tpu_custom_call.1} parent=79 // pred_check_branch
          %543 = sbr.rel (%p541) target = $region84
        $region83: #{tpu_custom_call.1} parent=79 // pred_region
          %544 = dma.done %s537, 2048
        $region84: #{tpu_custom_call.1} parent=79 // pred_fallthru
          _
        // Predicated region
        $region85: #{tpu_custom_call.1} parent=79 // pred_check
          %p545 = pneg %p78
        $region86: #{tpu_custom_call.1} parent=79 // pred_check_branch
          %547 = sbr.rel (%p545) target = $region88
        $region87: #{tpu_custom_call.1} parent=79 // pred_region
          %548 = dma.done [#allocation6], 4096
        $region88: #{tpu_custom_call.1} parent=79 // pred_fallthru
          _
        // Predicated region
        $region89: #{tpu_custom_call.1} parent=79 // pred_check
          %p549 = pneg %p120
        $region90: #{tpu_custom_call.1} parent=79 // pred_check_branch
          %551 = sbr.rel (%p549) target = $region92
        $region91: #{tpu_custom_call.1} parent=79 // pred_region
          %552 = dma.done [#allocation6], 2048
        $region92: #{tpu_custom_call.1} parent=79 // pred_fallthru
          _
        // Predicated region
        $region93: #{tpu_custom_call.1} parent=79 // pred_check
          %p553 = pneg %p162
        $region94: #{tpu_custom_call.1} parent=79 // pred_check_branch
          %555 = sbr.rel (%p553) target = $region96
        $region95: #{tpu_custom_call.1} parent=79 // pred_region
          %556 = dma.done [#allocation9], 2048
        $region96: #{tpu_custom_call.1} parent=79 // pred_fallthru
          _
        // Predicated region
        $region97: #{tpu_custom_call.1} parent=79 // pred_check
          %p557 = pneg %p204
        $region98: #{tpu_custom_call.1} parent=79 // pred_check_branch
          %559 = sbr.rel (%p557) target = $region100
        $region99: #{tpu_custom_call.1} parent=79 // pred_region
          %560 = dma.done [#allocation9], 2048
        $region100: #{tpu_custom_call.1} parent=79 // pred_fallthru
          _
        // Predicated region
        $region101: #{tpu_custom_call.1} parent=79 // pred_check
          %p561 = pneg %p246
        $region102: #{tpu_custom_call.1} parent=79 // pred_check_branch
          %563 = sbr.rel (%p561) target = $region104
        $region103: #{tpu_custom_call.1} parent=79 // pred_region
          %564 = dma.done [#allocation12], 4096
        $region104: #{tpu_custom_call.1} parent=79 // pred_fallthru
          _
        // Predicated region
        $region105: #{tpu_custom_call.1} parent=79 // pred_check
          %p565 = pneg %p288
        $region106: #{tpu_custom_call.1} parent=79 // pred_check_branch
          %567 = sbr.rel (%p565) target = $region108
        $region107: #{tpu_custom_call.1} parent=79 // pred_region
          %568 = dma.done [#allocation12], 2048
        $region108: #{tpu_custom_call.1} parent=79 // pred_fallthru
          _
        // Predicated region
        $region109: #{tpu_custom_call.1} parent=79 // pred_check
          %p569 = pneg %p330
        $region110: #{tpu_custom_call.1} parent=79 // pred_check_branch
          %571 = sbr.rel (%p569) target = $region112
        $region111: #{tpu_custom_call.1} parent=79 // pred_region
          %572 = dma.done [#allocation15], 1024
        $region112: #{tpu_custom_call.1} parent=79 // pred_fallthru
          _
        %s573 = sand.u32 %s44, 1
        %s574 = scalar_lea.sflag [#allocation3], %s573
        %s575 = sand.u32 %s44, 1
        %s576 = smul.addr %s575, 128
        %s577 = scalar_lea.vmem [#allocation2], %s576
        %p578 = pneg %p57
        %p579 = pneg %p54
        %p580 = pneg %p78
        %p581 = pneg %p75
        %p582 = pneg %p99
        %p583 = pneg %p96
        %p584 = pneg %p120
        %p585 = pneg %p117
        %p586 = pneg %p141
        %p587 = pneg %p138
        %p588 = pneg %p162
        %p589 = pneg %p159
        %p590 = pneg %p183
        %p591 = pneg %p180
        %p592 = pneg %p204
        %p593 = pneg %p201
        %p594 = pneg %p225
        %p595 = pneg %p222
        %p596 = pneg %p246
        %p597 = pneg %p243
        %p598 = pneg %p267
        %p599 = pneg %p264
        %p600 = pneg %p288
        %p601 = pneg %p285
        %p602 = pneg %p309
        %p603 = pneg %p306
        %p604 = pneg %p330
        %p605 = pneg %p327
        %p606 = pneg %p351
        %p607 = pneg %p348
        %p608 = pneg %p377
        %p609 = pneg %p374
        %s610 = sand.u32 %s364, 1
        %s611 = scalar_lea.sflag [#allocation4], %s610
        %s612 = sand.u32 %s364, 1
        %s613 = smul.addr %s612, 8
        %s614 = scalar_lea.vmem [#allocation16], %s613
        %s615 = smul.u32 16, %s36
        %v617 = vlaneseq
        %v618 = vshrl.u32 %v617, 7
        %v619 = vadd.s32 %v618, 8
        %v620 = vadd.s32 %v618, 16
        %v621 = vadd.s32 %v618, 24
        %v622 = vadd.s32 %v618, 32
        %v623 = vadd.s32 %v618, 40
        %v624 = vadd.s32 %v618, 48
        %v625 = vadd.s32 %v618, 56
        %v626 = vadd.s32 %v618, 64
        %v627 = vadd.s32 %v618, 72
        %v628 = vadd.s32 %v618, 80
        %v629 = vadd.s32 %v618, 88
        %v630 = vadd.s32 %v618, 96
        %v631 = vadd.s32 %v618, 104
        %v632 = vadd.s32 %v618, 112
        %v633 = vadd.s32 %v618, 120
        %v634 = vand.u32 %v618, 15
        %v635 = vand.u32 %v619, 15
        %v636 = vand.u32 %v620, 15
        %v637 = vand.u32 %v621, 15
        %v638 = vand.u32 %v622, 15
        %v639 = vand.u32 %v623, 15
        %v640 = vand.u32 %v624, 15
        %v641 = vand.u32 %v625, 15
        %v642 = vand.u32 %v626, 15
        %v643 = vand.u32 %v627, 15
        %v644 = vand.u32 %v628, 15
        %v645 = vand.u32 %v629, 15
        %v646 = vand.u32 %v630, 15
        %v647 = vand.u32 %v631, 15
        %v648 = vand.u32 %v632, 15
        %v649 = vand.u32 %v633, 15
        %v650 = vld [vmem:[%s540] sm:$0xff]
        %v651 = vld [vmem:[%s540 + $0x8] sm:$0xff]
        %v652 = vld [vmem:[%s540 + $0x10] sm:$0xff]
        %v653 = vld [vmem:[%s540 + $0x18] sm:$0xff]
        %v654 = vld [vmem:[%s540 + $0x20] sm:$0xff]
        %v655 = vld [vmem:[%s540 + $0x28] sm:$0xff]
        %v656 = vld [vmem:[%s540 + $0x30] sm:$0xff]
        %v657 = vld [vmem:[%s540 + $0x38] sm:$0xff]
        %v658 = vld [vmem:[%s540 + $0x40] sm:$0xff]
        %v659 = vld [vmem:[%s540 + $0x48] sm:$0xff]
        %v660 = vld [vmem:[%s540 + $0x50] sm:$0xff]
        %v661 = vld [vmem:[%s540 + $0x58] sm:$0xff]
        %v662 = vld [vmem:[%s540 + $0x60] sm:$0xff]
        %v663 = vld [vmem:[%s540 + $0x68] sm:$0xff]
        %v664 = vld [vmem:[%s540 + $0x70] sm:$0xff]
        %v665 = vld [vmem:[%s540 + $0x78] sm:$0xff]
        %v666 = vpack.c.bf16 %v651, %v650
        %v667 = vpack.c.bf16 %v653, %v652
        %v668 = vpack.c.bf16 %v655, %v654
        %v669 = vpack.c.bf16 %v657, %v656
        %v670 = vpack.c.bf16 %v659, %v658
        %v671 = vpack.c.bf16 %v661, %v660
        %v672 = vpack.c.bf16 %v663, %v662
        %v673 = vpack.c.bf16 %v665, %v664
        %vm674 = vcmp.ge.s32.totalorder %v634, 1
        %vm675 = vcmp.ge.s32.totalorder %v635, 1
        %vm676 = vcmp.ge.s32.totalorder %v636, 1
        %vm677 = vcmp.ge.s32.totalorder %v637, 1
        %vm678 = vcmp.ge.s32.totalorder %v638, 1
        %vm679 = vcmp.ge.s32.totalorder %v639, 1
        %vm680 = vcmp.ge.s32.totalorder %v640, 1
        %vm681 = vcmp.ge.s32.totalorder %v641, 1
        %vm682 = vcmp.ge.s32.totalorder %v642, 1
        %vm683 = vcmp.ge.s32.totalorder %v643, 1
        %vm684 = vcmp.ge.s32.totalorder %v644, 1
        %vm685 = vcmp.ge.s32.totalorder %v645, 1
        %vm686 = vcmp.ge.s32.totalorder %v646, 1
        %vm687 = vcmp.ge.s32.totalorder %v647, 1
        %vm688 = vcmp.ge.s32.totalorder %v648, 1
        %vm689 = vcmp.ge.s32.totalorder %v649, 1
        %v690 = vrot.slane %v650, 7
        %v691 = vrot.slane %v651, 7
        %v692 = vrot.slane %v652, 7
        %v693 = vrot.slane %v653, 7
        %v694 = vrot.slane %v654, 7
        %v695 = vrot.slane %v655, 7
        %v696 = vrot.slane %v656, 7
        %v697 = vrot.slane %v657, 7
        %v698 = vrot.slane %v658, 7
        %v699 = vrot.slane %v659, 7
        %v700 = vrot.slane %v660, 7
        %v701 = vrot.slane %v661, 7
        %v702 = vrot.slane %v662, 7
        %v703 = vrot.slane %v663, 7
        %v704 = vrot.slane %v664, 7
        %v705 = vrot.slane %v665, 7
        %vm706 = vcmp.lt.s32.totalorder %v618, 1
        %v707 = vsel %vm706, %v704, %v705
        %v708 = vsel %vm706, %v703, %v704
        %v709 = vsel %vm706, %v702, %v703
        %v710 = vsel %vm706, %v701, %v702
        %v711 = vsel %vm706, %v700, %v701
        %v712 = vsel %vm706, %v699, %v700
        %v713 = vsel %vm706, %v698, %v699
        %v714 = vsel %vm706, %v697, %v698
        %v715 = vsel %vm706, %v696, %v697
        %v716 = vsel %vm706, %v695, %v696
        %v717 = vsel %vm706, %v694, %v695
        %v718 = vsel %vm706, %v693, %v694
        %v719 = vsel %vm706, %v692, %v693
        %v720 = vsel %vm706, %v691, %v692
        %v721 = vsel %vm706, %v690, %v691
        %v722 = vsel %vm706, %v705, %v690
        %v723 = vsel %vm674, %v722, 0.0
        %v724 = vsel %vm675, %v721, 0.0
        %v725 = vsel %vm676, %v720, 0.0
        %v726 = vsel %vm677, %v719, 0.0
        %v727 = vsel %vm678, %v718, 0.0
        %v728 = vsel %vm679, %v717, 0.0
        %v729 = vsel %vm680, %v716, 0.0
        %v730 = vsel %vm681, %v715, 0.0
        %v731 = vsel %vm682, %v714, 0.0
        %v732 = vsel %vm683, %v713, 0.0
        %v733 = vsel %vm684, %v712, 0.0
        %v734 = vsel %vm685, %v711, 0.0
        %v735 = vsel %vm686, %v710, 0.0
        %v736 = vsel %vm687, %v709, 0.0
        %v737 = vsel %vm688, %v708, 0.0
        %v738 = vsel %vm689, %v707, 0.0
        %v739 = vpack.c.bf16 %v724, %v723
        %v740 = vpack.c.bf16 %v726, %v725
        %v741 = vpack.c.bf16 %v728, %v727
        %v742 = vpack.c.bf16 %v730, %v729
        %v743 = vpack.c.bf16 %v732, %v731
        %v744 = vpack.c.bf16 %v734, %v733
        %v745 = vpack.c.bf16 %v736, %v735
        %v746 = vpack.c.bf16 %v738, %v737
        %v747 = vld [vmem:[#allocation5] sm:$0xff]
        %v748 = vld [vmem:[#allocation5 + $0x8] sm:$0xff]
        %v749 = vld [vmem:[#allocation5 + $0x10] sm:$0xff]
        %v750 = vld [vmem:[#allocation5 + $0x18] sm:$0xff]
        %v751 = vld [vmem:[#allocation5 + $0x20] sm:$0xff]
        %v752 = vld [vmem:[#allocation5 + $0x28] sm:$0xff]
        %v753 = vld [vmem:[#allocation5 + $0x30] sm:$0xff]
        %v754 = vld [vmem:[#allocation5 + $0x38] sm:$0xff]
        %v755 = vld [vmem:[#allocation5 + $0x40] sm:$0xff]
        %v756 = vld [vmem:[#allocation5 + $0x48] sm:$0xff]
        %v757 = vld [vmem:[#allocation5 + $0x50] sm:$0xff]
        %v758 = vld [vmem:[#allocation5 + $0x58] sm:$0xff]
        %v759 = vld [vmem:[#allocation5 + $0x60] sm:$0xff]
        %v760 = vld [vmem:[#allocation5 + $0x68] sm:$0xff]
        %v761 = vld [vmem:[#allocation5 + $0x70] sm:$0xff]
        %v762 = vld [vmem:[#allocation5 + $0x78] sm:$0xff]
        %v763 = vld [vmem:[#allocation5 + $0x80] sm:$0xff]
        %v764 = vld [vmem:[#allocation5 + $0x88] sm:$0xff]
        %v765 = vld [vmem:[#allocation5 + $0x90] sm:$0xff]
        %v766 = vld [vmem:[#allocation5 + $0x98] sm:$0xff]
        %v767 = vld [vmem:[#allocation5 + $0xa0] sm:$0xff]
        %v768 = vld [vmem:[#allocation5 + $0xa8] sm:$0xff]
        %v769 = vld [vmem:[#allocation5 + $0xb0] sm:$0xff]
        %v770 = vld [vmem:[#allocation5 + $0xb8] sm:$0xff]
        %v771 = vld [vmem:[#allocation5 + $0xc0] sm:$0xff]
        %v772 = vld [vmem:[#allocation5 + $0xc8] sm:$0xff]
        %v773 = vld [vmem:[#allocation5 + $0xd0] sm:$0xff]
        %v774 = vld [vmem:[#allocation5 + $0xd8] sm:$0xff]
        %v775 = vld [vmem:[#allocation5 + $0xe0] sm:$0xff]
        %v776 = vld [vmem:[#allocation5 + $0xe8] sm:$0xff]
        %v777 = vld [vmem:[#allocation5 + $0xf0] sm:$0xff]
        %v778 = vld [vmem:[#allocation5 + $0xf8] sm:$0xff]
        %v779 = vld [vmem:[%s2] sm:$0x3]
        %v781 = vlaneseq
        %v782 = vshrl.u32 %v781, 7
        %v783 = vsub.s32 0, %v782
        %v784 = vrot.slane %v779, %v783
        %v785 = vlaneseq
        %v786 = vshrl.u32 %v785, 7
        %v787 = vsub.s32 1, %v786
        %v788 = vrot.slane %v779, %v787
        %v823 = vunpack.c.l.b16 %v747
        %v824 = vunpack.c.h.b16 %v747
        %v825 = vunpack.c.l.b16 %v748
        %v826 = vunpack.c.h.b16 %v748
        %v827 = vunpack.c.l.b16 %v749
        %v828 = vunpack.c.h.b16 %v749
        %v829 = vunpack.c.l.b16 %v750
        %v830 = vunpack.c.h.b16 %v750
        %v831 = vunpack.c.l.b16 %v751
        %v832 = vunpack.c.h.b16 %v751
        %v833 = vunpack.c.l.b16 %v752
        %v834 = vunpack.c.h.b16 %v752
        %v835 = vunpack.c.l.b16 %v753
        %v836 = vunpack.c.h.b16 %v753
        %v837 = vunpack.c.l.b16 %v754
        %v838 = vunpack.c.h.b16 %v754
        %v839 = vunpack.c.l.b16 %v755
        %v840 = vunpack.c.h.b16 %v755
        %v841 = vunpack.c.l.b16 %v756
        %v842 = vunpack.c.h.b16 %v756
        %v843 = vunpack.c.l.b16 %v757
        %v844 = vunpack.c.h.b16 %v757
        %v845 = vunpack.c.l.b16 %v758
        %v846 = vunpack.c.h.b16 %v758
        %v847 = vunpack.c.l.b16 %v759
        %v848 = vunpack.c.h.b16 %v759
        %v849 = vunpack.c.l.b16 %v760
        %v850 = vunpack.c.h.b16 %v760
        %v851 = vunpack.c.l.b16 %v761
        %v852 = vunpack.c.h.b16 %v761
        %v853 = vunpack.c.l.b16 %v762
        %v854 = vunpack.c.h.b16 %v762
        %v855 = vunpack.c.l.b16 %v763
        %v856 = vunpack.c.h.b16 %v763
        %v857 = vunpack.c.l.b16 %v764
        %v858 = vunpack.c.h.b16 %v764
        %v859 = vunpack.c.l.b16 %v765
        %v860 = vunpack.c.h.b16 %v765
        %v861 = vunpack.c.l.b16 %v766
        %v862 = vunpack.c.h.b16 %v766
        %v863 = vunpack.c.l.b16 %v767
        %v864 = vunpack.c.h.b16 %v767
        %v865 = vunpack.c.l.b16 %v768
        %v866 = vunpack.c.h.b16 %v768
        %v867 = vunpack.c.l.b16 %v769
        %v868 = vunpack.c.h.b16 %v769
        %v869 = vunpack.c.l.b16 %v770
        %v870 = vunpack.c.h.b16 %v770
        %v871 = vunpack.c.l.b16 %v771
        %v872 = vunpack.c.h.b16 %v771
        %v873 = vunpack.c.l.b16 %v772
        %v874 = vunpack.c.h.b16 %v772
        %v875 = vunpack.c.l.b16 %v773
        %v876 = vunpack.c.h.b16 %v773
        %v877 = vunpack.c.l.b16 %v774
        %v878 = vunpack.c.h.b16 %v774
        %v879 = vunpack.c.l.b16 %v775
        %v880 = vunpack.c.h.b16 %v775
        %v881 = vunpack.c.l.b16 %v776
        %v882 = vunpack.c.h.b16 %v776
        %v883 = vunpack.c.l.b16 %v777
        %v884 = vunpack.c.h.b16 %v777
        %v885 = vunpack.c.l.b16 %v778
        %v886 = vunpack.c.h.b16 %v778
        %v887 = vpack.c.b16 %v825, %v823
        %v888 = vpack.c.b16 %v826, %v824
        %v889 = vpack.c.b16 %v829, %v827
        %v890 = vpack.c.b16 %v830, %v828
        %v891 = vpack.c.b16 %v833, %v831
        %v892 = vpack.c.b16 %v834, %v832
        %v893 = vpack.c.b16 %v837, %v835
        %v894 = vpack.c.b16 %v838, %v836
        %v895 = vpack.c.b16 %v841, %v839
        %v896 = vpack.c.b16 %v842, %v840
        %v897 = vpack.c.b16 %v845, %v843
        %v898 = vpack.c.b16 %v846, %v844
        %v899 = vpack.c.b16 %v849, %v847
        %v900 = vpack.c.b16 %v850, %v848
        %v901 = vpack.c.b16 %v853, %v851
        %v902 = vpack.c.b16 %v854, %v852
        %v903 = vpack.c.b16 %v857, %v855
        %v904 = vpack.c.b16 %v858, %v856
        %v905 = vpack.c.b16 %v861, %v859
        %v906 = vpack.c.b16 %v862, %v860
        %v907 = vpack.c.b16 %v865, %v863
        %v908 = vpack.c.b16 %v866, %v864
        %v909 = vpack.c.b16 %v869, %v867
        %v910 = vpack.c.b16 %v870, %v868
        %v911 = vpack.c.b16 %v873, %v871
        %v912 = vpack.c.b16 %v874, %v872
        %v913 = vpack.c.b16 %v877, %v875
        %v914 = vpack.c.b16 %v878, %v876
        %v915 = vpack.c.b16 %v881, %v879
        %v916 = vpack.c.b16 %v882, %v880
        %v917 = vpack.c.b16 %v885, %v883
        %v918 = vpack.c.b16 %v886, %v884
        %951 = vmatprep.subr.bf16.mxu0 %v888
        %952 = vmatpush1.bf16.msra.mxu0 %v887
        %953 = vmatprep.subr.bf16.mxu0 %v890
        %954 = vmatpush1.bf16.msra.mxu0 %v889
        %955 = vmatprep.subr.bf16.mxu0 %v892
        %956 = vmatpush1.bf16.msra.mxu0 %v891
        %957 = vmatprep.subr.bf16.mxu0 %v894
        %958 = vmatpush1.bf16.msra.mxu0 %v893
        %959 = vmatprep.subr.bf16.mxu0 %v896
        %960 = vmatpush1.bf16.msra.mxu0 %v895
        %961 = vmatprep.subr.bf16.mxu0 %v898
        %962 = vmatpush1.bf16.msra.mxu0 %v897
        %963 = vmatprep.subr.bf16.mxu0 %v900
        %964 = vmatpush1.bf16.msra.mxu0 %v899
        %965 = vmatprep.subr.bf16.mxu0 %v902
        %966 = vmatpush1.bf16.msra.mxu0 %v901
        %967 = vmatprep.subr.bf16.mxu0 %v904
        %968 = vmatpush1.bf16.msra.mxu0 %v903
        %969 = vmatprep.subr.bf16.mxu0 %v906
        %970 = vmatpush1.bf16.msra.mxu0 %v905
        %971 = vmatprep.subr.bf16.mxu0 %v908
        %972 = vmatpush1.bf16.msra.mxu0 %v907
        %973 = vmatprep.subr.bf16.mxu0 %v910
        %974 = vmatpush1.bf16.msra.mxu0 %v909
        %975 = vmatprep.subr.bf16.mxu0 %v912
        %976 = vmatpush1.bf16.msra.mxu0 %v911
        %977 = vmatprep.subr.bf16.mxu0 %v914
        %978 = vmatpush1.bf16.msra.mxu0 %v913
        %979 = vmatprep.subr.bf16.mxu0 %v916
        %980 = vmatpush1.bf16.msra.mxu0 %v915
        %981 = vmatprep.subr.bf16.mxu0 %v918
        %982 = vmatpush1.bf16.msra.mxu0 %v917
        %983 = vmatprep.mubr.bf16.mxu0 %v666
        %984 = vmatmul.mubr.bf16.gmra.mrb[0].mxu0 %v739
        %v985 = vpop.f32.mrb[0].mxu0
        %v986 = vadd.f32 %v784, %v985
        %v987 = vpop.f32.mrb[0].mxu0
        %v988 = vadd.f32 %v788, %v987
        %v989 = vpop.f32.mrb[0].mxu0
        %v990 = vadd.f32 %v784, %v989
        %v991 = vpop.f32.mrb[0].mxu0
        %v992 = vadd.f32 %v788, %v991
        %993 = vmatprep.mubr.bf16.mxu0 %v667
        %994 = vmatmul.mubr.bf16.gmra.mrb[0].mxu0 %v740
        %v995 = vpop.f32.mrb[0].mxu0
        %v996 = vadd.f32 %v784, %v995
        %v997 = vpop.f32.mrb[0].mxu0
        %v998 = vadd.f32 %v788, %v997
        %v999 = vpop.f32.mrb[0].mxu0
        %v1000 = vadd.f32 %v784, %v999
        %v1001 = vpop.f32.mrb[0].mxu0
        %v1002 = vadd.f32 %v788, %v1001
        %1003 = vmatprep.mubr.bf16.mxu0 %v668
        %1004 = vmatmul.mubr.bf16.gmra.mrb[0].mxu0 %v741
        %v1005 = vpop.f32.mrb[0].mxu0
        %v1006 = vadd.f32 %v784, %v1005
        %v1007 = vpop.f32.mrb[0].mxu0
        %v1008 = vadd.f32 %v788, %v1007
        %v1009 = vpop.f32.mrb[0].mxu0
        %v1010 = vadd.f32 %v784, %v1009
        %v1011 = vpop.f32.mrb[0].mxu0
        %v1012 = vadd.f32 %v788, %v1011
        %1013 = vmatprep.mubr.bf16.mxu0 %v669
        %1014 = vmatmul.mubr.bf16.gmra.mrb[0].mxu0 %v742
        %v1015 = vpop.f32.mrb[0].mxu0
        %v1016 = vadd.f32 %v784, %v1015
        %v1017 = vpop.f32.mrb[0].mxu0
        %v1018 = vadd.f32 %v788, %v1017
        %v1019 = vpop.f32.mrb[0].mxu0
        %v1020 = vadd.f32 %v784, %v1019
        %v1021 = vpop.f32.mrb[0].mxu0
        %v1022 = vadd.f32 %v788, %v1021
        %1023 = vmatprep.mubr.bf16.mxu0 %v670
        %1024 = vmatmul.mubr.bf16.gmra.mrb[0].mxu0 %v743
        %v1025 = vpop.f32.mrb[0].mxu0
        %v1026 = vadd.f32 %v784, %v1025
        %v1027 = vpop.f32.mrb[0].mxu0
        %v1028 = vadd.f32 %v788, %v1027
        %v1029 = vpop.f32.mrb[0].mxu0
        %v1030 = vadd.f32 %v784, %v1029
        %v1031 = vpop.f32.mrb[0].mxu0
        %v1032 = vadd.f32 %v788, %v1031
        %1033 = vmatprep.mubr.bf16.mxu0 %v671
        %1034 = vmatmul.mubr.bf16.gmra.mrb[0].mxu0 %v744
        %v1035 = vpop.f32.mrb[0].mxu0
        %v1036 = vadd.f32 %v784, %v1035
        %v1037 = vpop.f32.mrb[0].mxu0
        %v1038 = vadd.f32 %v788, %v1037
        %v1039 = vpop.f32.mrb[0].mxu0
        %v1040 = vadd.f32 %v784, %v1039
        %v1041 = vpop.f32.mrb[0].mxu0
        %v1042 = vadd.f32 %v788, %v1041
        %1043 = vmatprep.mubr.bf16.mxu0 %v672
        %1044 = vmatmul.mubr.bf16.gmra.mrb[0].mxu0 %v745
        %v1045 = vpop.f32.mrb[0].mxu0
        %v1046 = vadd.f32 %v784, %v1045
        %v1047 = vpop.f32.mrb[0].mxu0
        %v1048 = vadd.f32 %v788, %v1047
        %v1049 = vpop.f32.mrb[0].mxu0
        %v1050 = vadd.f32 %v784, %v1049
        %v1051 = vpop.f32.mrb[0].mxu0
        %v1052 = vadd.f32 %v788, %v1051
        %1053 = vmatprep.mubr.bf16.mxu0 %v673
        %1054 = vmatmul.mubr.bf16.gmra.mrb[0].mxu0 %v746
        %v1055 = vpop.f32.mrb[0].mxu0
        %v1056 = vadd.f32 %v784, %v1055
        %v1057 = vpop.f32.mrb[0].mxu0
        %v1058 = vadd.f32 %v788, %v1057
        %v1059 = vpop.f32.mrb[0].mxu0
        %v1060 = vadd.f32 %v784, %v1059
        %v1061 = vpop.f32.mrb[0].mxu0
        %v1062 = vadd.f32 %v788, %v1061
        %1063 = vdwg.mxu0
        %v1064 = vmax.f32 %v986, 0.0
        %v1065 = vmax.f32 %v990, 0.0
        %v1066 = vmax.f32 %v996, 0.0
        %v1067 = vmax.f32 %v1000, 0.0
        %v1068 = vmax.f32 %v1006, 0.0
        %v1069 = vmax.f32 %v1010, 0.0
        %v1070 = vmax.f32 %v1016, 0.0
        %v1071 = vmax.f32 %v1020, 0.0
        %v1072 = vmax.f32 %v1026, 0.0
        %v1073 = vmax.f32 %v1030, 0.0
        %v1074 = vmax.f32 %v1036, 0.0
        %v1075 = vmax.f32 %v1040, 0.0
        %v1076 = vmax.f32 %v1046, 0.0
        %v1077 = vmax.f32 %v1050, 0.0
        %v1078 = vmax.f32 %v1056, 0.0
        %v1079 = vmax.f32 %v1060, 0.0
        %v1080 = vpack.c.bf16 %v1065, %v1064
        %v1081 = vpack.c.bf16 %v1067, %v1066
        %v1082 = vpack.c.bf16 %v1069, %v1068
        %v1083 = vpack.c.bf16 %v1071, %v1070
        %v1084 = vpack.c.bf16 %v1073, %v1072
        %v1085 = vpack.c.bf16 %v1075, %v1074
        %v1086 = vpack.c.bf16 %v1077, %v1076
        %v1087 = vpack.c.bf16 %v1079, %v1078
        %v1088 = vrot.slane %v1064, 7
        %v1089 = vrot.slane %v1065, 7
        %v1090 = vrot.slane %v1066, 7
        %v1091 = vrot.slane %v1067, 7
        %v1092 = vrot.slane %v1068, 7
        %v1093 = vrot.slane %v1069, 7
        %v1094 = vrot.slane %v1070, 7
        %v1095 = vrot.slane %v1071, 7
        %v1096 = vrot.slane %v1072, 7
        %v1097 = vrot.slane %v1073, 7
        %v1098 = vrot.slane %v1074, 7
        %v1099 = vrot.slane %v1075, 7
        %v1100 = vrot.slane %v1076, 7
        %v1101 = vrot.slane %v1077, 7
        %v1102 = vrot.slane %v1078, 7
        %v1103 = vrot.slane %v1079, 7
        %v1104 = vsel %vm706, %v1102, %v1103
        %v1105 = vsel %vm706, %v1101, %v1102
        %v1106 = vsel %vm706, %v1100, %v1101
        %v1107 = vsel %vm706, %v1099, %v1100
        %v1108 = vsel %vm706, %v1098, %v1099
        %v1109 = vsel %vm706, %v1097, %v1098
        %v1110 = vsel %vm706, %v1096, %v1097
        %v1111 = vsel %vm706, %v1095, %v1096
        %v1112 = vsel %vm706, %v1094, %v1095
        %v1113 = vsel %vm706, %v1093, %v1094
        %v1114 = vsel %vm706, %v1092, %v1093
        %v1115 = vsel %vm706, %v1091, %v1092
        %v1116 = vsel %vm706, %v1090, %v1091
        %v1117 = vsel %vm706, %v1089, %v1090
        %v1118 = vsel %vm706, %v1088, %v1089
        %v1119 = vsel %vm706, %v1103, %v1088
        %v1120 = vsel %vm674, %v1119, 0.0
        %v1121 = vsel %vm675, %v1118, 0.0
        %v1122 = vsel %vm676, %v1117, 0.0
        %v1123 = vsel %vm677, %v1116, 0.0
        %v1124 = vsel %vm678, %v1115, 0.0
        %v1125 = vsel %vm679, %v1114, 0.0
        %v1126 = vsel %vm680, %v1113, 0.0
        %v1127 = vsel %vm681, %v1112, 0.0
        %v1128 = vsel %vm682, %v1111, 0.0
        %v1129 = vsel %vm683, %v1110, 0.0
        %v1130 = vsel %vm684, %v1109, 0.0
        %v1131 = vsel %vm685, %v1108, 0.0
        %v1132 = vsel %vm686, %v1107, 0.0
        %v1133 = vsel %vm687, %v1106, 0.0
        %v1134 = vsel %vm688, %v1105, 0.0
        %v1135 = vsel %vm689, %v1104, 0.0
        %v1136 = vpack.c.bf16 %v1121, %v1120
        %v1137 = vpack.c.bf16 %v1123, %v1122
        %v1138 = vpack.c.bf16 %v1125, %v1124
        %v1139 = vpack.c.bf16 %v1127, %v1126
        %v1140 = vpack.c.bf16 %v1129, %v1128
        %v1141 = vpack.c.bf16 %v1131, %v1130
        %v1142 = vpack.c.bf16 %v1133, %v1132
        %v1143 = vpack.c.bf16 %v1135, %v1134
        %v1144 = vld [vmem:[#allocation7] sm:$0xf]
        %v1145 = vld [vmem:[#allocation7 + $0x4] sm:$0xf]
        %v1146 = vld [vmem:[#allocation7 + $0x8] sm:$0xf]
        %v1147 = vld [vmem:[#allocation7 + $0xc] sm:$0xf]
        %v1148 = vld [vmem:[#allocation7 + $0x10] sm:$0xf]
        %v1149 = vld [vmem:[#allocation7 + $0x14] sm:$0xf]
        %v1150 = vld [vmem:[#allocation7 + $0x18] sm:$0xf]
        %v1151 = vld [vmem:[#allocation7 + $0x1c] sm:$0xf]
        %v1152 = vld [vmem:[#allocation7 + $0x20] sm:$0xf]
        %v1153 = vld [vmem:[#allocation7 + $0x24] sm:$0xf]
        %v1154 = vld [vmem:[#allocation7 + $0x28] sm:$0xf]
        %v1155 = vld [vmem:[#allocation7 + $0x2c] sm:$0xf]
        %v1156 = vld [vmem:[#allocation7 + $0x30] sm:$0xf]
        %v1157 = vld [vmem:[#allocation7 + $0x34] sm:$0xf]
        %v1158 = vld [vmem:[#allocation7 + $0x38] sm:$0xf]
        %v1159 = vld [vmem:[#allocation7 + $0x3c] sm:$0xf]
        %v1160 = vld [vmem:[#allocation7 + $0x40] sm:$0xf]
        %v1161 = vld [vmem:[#allocation7 + $0x44] sm:$0xf]
        %v1162 = vld [vmem:[#allocation7 + $0x48] sm:$0xf]
        %v1163 = vld [vmem:[#allocation7 + $0x4c] sm:$0xf]
        %v1164 = vld [vmem:[#allocation7 + $0x50] sm:$0xf]
        %v1165 = vld [vmem:[#allocation7 + $0x54] sm:$0xf]
        %v1166 = vld [vmem:[#allocation7 + $0x58] sm:$0xf]
        %v1167 = vld [vmem:[#allocation7 + $0x5c] sm:$0xf]
        %v1168 = vld [vmem:[#allocation7 + $0x60] sm:$0xf]
        %v1169 = vld [vmem:[#allocation7 + $0x64] sm:$0xf]
        %v1170 = vld [vmem:[#allocation7 + $0x68] sm:$0xf]
        %v1171 = vld [vmem:[#allocation7 + $0x6c] sm:$0xf]
        %v1172 = vld [vmem:[#allocation7 + $0x70] sm:$0xf]
        %v1173 = vld [vmem:[#allocation7 + $0x74] sm:$0xf]
        %v1174 = vld [vmem:[#allocation7 + $0x78] sm:$0xf]
        %v1175 = vld [vmem:[#allocation7 + $0x7c] sm:$0xf]
        %v1176 = vld [vmem:[%s4] sm:$0x1]
        %v1178 = vlaneseq
        %v1179 = vshrl.u32 %v1178, 7
        %v1180 = vsub.s32 0, %v1179
        %v1181 = vrot.slane %v1176, %v1180
        %v1215 = vunpack.c.l.b16 %v1144
        %v1216 = vunpack.c.l.b16 %v1145
        %v1217 = vunpack.c.l.b16 %v1146
        %v1218 = vunpack.c.l.b16 %v1147
        %v1219 = vunpack.c.l.b16 %v1148
        %v1220 = vunpack.c.l.b16 %v1149
        %v1221 = vunpack.c.l.b16 %v1150
        %v1222 = vunpack.c.l.b16 %v1151
        %v1223 = vunpack.c.l.b16 %v1152
        %v1224 = vunpack.c.l.b16 %v1153
        %v1225 = vunpack.c.l.b16 %v1154
        %v1226 = vunpack.c.l.b16 %v1155
        %v1227 = vunpack.c.l.b16 %v1156
        %v1228 = vunpack.c.l.b16 %v1157
        %v1229 = vunpack.c.l.b16 %v1158
        %v1230 = vunpack.c.l.b16 %v1159
        %v1231 = vunpack.c.l.b16 %v1160
        %v1232 = vunpack.c.l.b16 %v1161
        %v1233 = vunpack.c.l.b16 %v1162
        %v1234 = vunpack.c.l.b16 %v1163
        %v1235 = vunpack.c.l.b16 %v1164
        %v1236 = vunpack.c.l.b16 %v1165
        %v1237 = vunpack.c.l.b16 %v1166
        %v1238 = vunpack.c.l.b16 %v1167
        %v1239 = vunpack.c.l.b16 %v1168
        %v1240 = vunpack.c.l.b16 %v1169
        %v1241 = vunpack.c.l.b16 %v1170
        %v1242 = vunpack.c.l.b16 %v1171
        %v1243 = vunpack.c.l.b16 %v1172
        %v1244 = vunpack.c.l.b16 %v1173
        %v1245 = vunpack.c.l.b16 %v1174
        %v1246 = vunpack.c.l.b16 %v1175
        %v1247 = vpack.c.b16 %v1216, %v1215
        %v1248 = vpack.c.b16 %v1218, %v1217
        %v1249 = vpack.c.b16 %v1220, %v1219
        %v1250 = vpack.c.b16 %v1222, %v1221
        %v1251 = vpack.c.b16 %v1224, %v1223
        %v1252 = vpack.c.b16 %v1226, %v1225
        %v1253 = vpack.c.b16 %v1228, %v1227
        %v1254 = vpack.c.b16 %v1230, %v1229
        %v1255 = vpack.c.b16 %v1232, %v1231
        %v1256 = vpack.c.b16 %v1234, %v1233
        %v1257 = vpack.c.b16 %v1236, %v1235
        %v1258 = vpack.c.b16 %v1238, %v1237
        %v1259 = vpack.c.b16 %v1240, %v1239
        %v1260 = vpack.c.b16 %v1242, %v1241
        %v1261 = vpack.c.b16 %v1244, %v1243
        %v1262 = vpack.c.b16 %v1246, %v1245
        %1279 = vmatprep.subr.bf16.mxu0 0
        %1280 = vmatpush1.bf16.msra.mxu0 %v1247
        %1281 = vmatprep.subr.bf16.mxu0 0
        %1282 = vmatpush1.bf16.msra.mxu0 %v1248
        %1283 = vmatprep.subr.bf16.mxu0 0
        %1284 = vmatpush1.bf16.msra.mxu0 %v1249
        %1285 = vmatprep.subr.bf16.mxu0 0
        %1286 = vmatpush1.bf16.msra.mxu0 %v1250
        %1287 = vmatprep.subr.bf16.mxu0 0
        %1288 = vmatpush1.bf16.msra.mxu0 %v1251
        %1289 = vmatprep.subr.bf16.mxu0 0
        %1290 = vmatpush1.bf16.msra.mxu0 %v1252
        %1291 = vmatprep.subr.bf16.mxu0 0
        %1292 = vmatpush1.bf16.msra.mxu0 %v1253
        %1293 = vmatprep.subr.bf16.mxu0 0
        %1294 = vmatpush1.bf16.msra.mxu0 %v1254
        %1295 = vmatprep.subr.bf16.mxu0 0
        %1296 = vmatpush1.bf16.msra.mxu0 %v1255
        %1297 = vmatprep.subr.bf16.mxu0 0
        %1298 = vmatpush1.bf16.msra.mxu0 %v1256
        %1299 = vmatprep.subr.bf16.mxu0 0
        %1300 = vmatpush1.bf16.msra.mxu0 %v1257
        %1301 = vmatprep.subr.bf16.mxu0 0
        %1302 = vmatpush1.bf16.msra.mxu0 %v1258
        %1303 = vmatprep.subr.bf16.mxu0 0
        %1304 = vmatpush1.bf16.msra.mxu0 %v1259
        %1305 = vmatprep.subr.bf16.mxu0 0
        %1306 = vmatpush1.bf16.msra.mxu0 %v1260
        %1307 = vmatprep.subr.bf16.mxu0 0
        %1308 = vmatpush1.bf16.msra.mxu0 %v1261
        %1309 = vmatprep.subr.bf16.mxu0 0
        %1310 = vmatpush1.bf16.msra.mxu0 %v1262
        %1311 = vmatprep.mubr.bf16.mxu0 %v1080
        %1312 = vmatmul.mubr.bf16.gmra.mrb[0].mxu0 %v1136
        %v1313 = vpop.f32.mrb[0].mxu0
        %v1314 = vadd.f32 %v1181, %v1313
        %v1315 = vpop.f32.mrb[0].mxu0
        %v1316 = vpop.f32.mrb[0].mxu0
        %v1317 = vadd.f32 %v1181, %v1316
        %v1318 = vpop.f32.mrb[0].mxu0
        %1319 = vmatprep.mubr.bf16.mxu0 %v1081
        %1320 = vmatmul.mubr.bf16.gmra.mrb[0].mxu0 %v1137
        %v1321 = vpop.f32.mrb[0].mxu0
        %v1322 = vadd.f32 %v1181, %v1321
        %v1323 = vpop.f32.mrb[0].mxu0
        %v1324 = vpop.f32.mrb[0].mxu0
        %v1325 = vadd.f32 %v1181, %v1324
        %v1326 = vpop.f32.mrb[0].mxu0
        %1327 = vmatprep.mubr.bf16.mxu0 %v1082
        %1328 = vmatmul.mubr.bf16.gmra.mrb[0].mxu0 %v1138
        %v1329 = vpop.f32.mrb[0].mxu0
        %v1330 = vadd.f32 %v1181, %v1329
        %v1331 = vpop.f32.mrb[0].mxu0
        %v1332 = vpop.f32.mrb[0].mxu0
        %v1333 = vadd.f32 %v1181, %v1332
        %v1334 = vpop.f32.mrb[0].mxu0
        %1335 = vmatprep.mubr.bf16.mxu0 %v1083
        %1336 = vmatmul.mubr.bf16.gmra.mrb[0].mxu0 %v1139
        %v1337 = vpop.f32.mrb[0].mxu0
        %v1338 = vadd.f32 %v1181, %v1337
        %v1339 = vpop.f32.mrb[0].mxu0
        %v1340 = vpop.f32.mrb[0].mxu0
        %v1341 = vadd.f32 %v1181, %v1340
        %v1342 = vpop.f32.mrb[0].mxu0
        %1343 = vmatprep.mubr.bf16.mxu0 %v1084
        %1344 = vmatmul.mubr.bf16.gmra.mrb[0].mxu0 %v1140
        %v1345 = vpop.f32.mrb[0].mxu0
        %v1346 = vadd.f32 %v1181, %v1345
        %v1347 = vpop.f32.mrb[0].mxu0
        %v1348 = vpop.f32.mrb[0].mxu0
        %v1349 = vadd.f32 %v1181, %v1348
        %v1350 = vpop.f32.mrb[0].mxu0
        %1351 = vmatprep.mubr.bf16.mxu0 %v1085
        %1352 = vmatmul.mubr.bf16.gmra.mrb[0].mxu0 %v1141
        %v1353 = vpop.f32.mrb[0].mxu0
        %v1354 = vadd.f32 %v1181, %v1353
        %v1355 = vpop.f32.mrb[0].mxu0
        %v1356 = vpop.f32.mrb[0].mxu0
        %v1357 = vadd.f32 %v1181, %v1356
        %v1358 = vpop.f32.mrb[0].mxu0
        %1359 = vmatprep.mubr.bf16.mxu0 %v1086
        %1360 = vmatmul.mubr.bf16.gmra.mrb[0].mxu0 %v1142
        %v1361 = vpop.f32.mrb[0].mxu0
        %v1362 = vadd.f32 %v1181, %v1361
        %v1363 = vpop.f32.mrb[0].mxu0
        %v1364 = vpop.f32.mrb[0].mxu0
        %v1365 = vadd.f32 %v1181, %v1364
        %v1366 = vpop.f32.mrb[0].mxu0
        %1367 = vmatprep.mubr.bf16.mxu0 %v1087
        %1368 = vmatmul.mubr.bf16.gmra.mrb[0].mxu0 %v1143
        %v1369 = vpop.f32.mrb[0].mxu0
        %v1370 = vadd.f32 %v1181, %v1369
        %v1371 = vpop.f32.mrb[0].mxu0
        %v1372 = vpop.f32.mrb[0].mxu0
        %v1373 = vadd.f32 %v1181, %v1372
        %v1374 = vpop.f32.mrb[0].mxu0
        %1375 = vdwg.mxu0
        %v1376 = vmax.f32 %v1314, 0.0
        %v1377 = vmax.f32 %v1317, 0.0
        %v1378 = vmax.f32 %v1322, 0.0
        %v1379 = vmax.f32 %v1325, 0.0
        %v1380 = vmax.f32 %v1330, 0.0
        %v1381 = vmax.f32 %v1333, 0.0
        %v1382 = vmax.f32 %v1338, 0.0
        %v1383 = vmax.f32 %v1341, 0.0
        %v1384 = vmax.f32 %v1346, 0.0
        %v1385 = vmax.f32 %v1349, 0.0
        %v1386 = vmax.f32 %v1354, 0.0
        %v1387 = vmax.f32 %v1357, 0.0
        %v1388 = vmax.f32 %v1362, 0.0
        %v1389 = vmax.f32 %v1365, 0.0
        %v1390 = vmax.f32 %v1370, 0.0
        %v1391 = vmax.f32 %v1373, 0.0
        %v1392 = vadd.f32 %v1376, %v988
        %v1393 = vadd.f32 %v1377, %v992
        %v1394 = vadd.f32 %v1378, %v998
        %v1395 = vadd.f32 %v1379, %v1002
        %v1396 = vadd.f32 %v1380, %v1008
        %v1397 = vadd.f32 %v1381, %v1012
        %v1398 = vadd.f32 %v1382, %v1018
        %v1399 = vadd.f32 %v1383, %v1022
        %v1400 = vadd.f32 %v1384, %v1028
        %v1401 = vadd.f32 %v1385, %v1032
        %v1402 = vadd.f32 %v1386, %v1038
        %v1403 = vadd.f32 %v1387, %v1042
        %v1404 = vadd.f32 %v1388, %v1048
        %v1405 = vadd.f32 %v1389, %v1052
        %v1406 = vadd.f32 %v1390, %v1058
        %v1407 = vadd.f32 %v1391, %v1062
        %v1408 = vmax.f32 %v1392, 0.0
        %v1409 = vmax.f32 %v1393, 0.0
        %v1410 = vmax.f32 %v1394, 0.0
        %v1411 = vmax.f32 %v1395, 0.0
        %v1412 = vmax.f32 %v1396, 0.0
        %v1413 = vmax.f32 %v1397, 0.0
        %v1414 = vmax.f32 %v1398, 0.0
        %v1415 = vmax.f32 %v1399, 0.0
        %v1416 = vmax.f32 %v1400, 0.0
        %v1417 = vmax.f32 %v1401, 0.0
        %v1418 = vmax.f32 %v1402, 0.0
        %v1419 = vmax.f32 %v1403, 0.0
        %v1420 = vmax.f32 %v1404, 0.0
        %v1421 = vmax.f32 %v1405, 0.0
        %v1422 = vmax.f32 %v1406, 0.0
        %v1423 = vmax.f32 %v1407, 0.0
        %v1424 = vpack.c.bf16 %v1409, %v1408
        %v1425 = vpack.c.bf16 %v1411, %v1410
        %v1426 = vpack.c.bf16 %v1413, %v1412
        %v1427 = vpack.c.bf16 %v1415, %v1414
        %v1428 = vpack.c.bf16 %v1417, %v1416
        %v1429 = vpack.c.bf16 %v1419, %v1418
        %v1430 = vpack.c.bf16 %v1421, %v1420
        %v1431 = vpack.c.bf16 %v1423, %v1422
        %vm1432 = vcmp.ge.s32.totalorder %v634, 2
        %vm1433 = vcmp.ge.s32.totalorder %v635, 2
        %vm1434 = vcmp.ge.s32.totalorder %v636, 2
        %vm1435 = vcmp.ge.s32.totalorder %v637, 2
        %vm1436 = vcmp.ge.s32.totalorder %v638, 2
        %vm1437 = vcmp.ge.s32.totalorder %v639, 2
        %vm1438 = vcmp.ge.s32.totalorder %v640, 2
        %vm1439 = vcmp.ge.s32.totalorder %v641, 2
        %vm1440 = vcmp.ge.s32.totalorder %v642, 2
        %vm1441 = vcmp.ge.s32.totalorder %v643, 2
        %vm1442 = vcmp.ge.s32.totalorder %v644, 2
        %vm1443 = vcmp.ge.s32.totalorder %v645, 2
        %vm1444 = vcmp.ge.s32.totalorder %v646, 2
        %vm1445 = vcmp.ge.s32.totalorder %v647, 2
        %vm1446 = vcmp.ge.s32.totalorder %v648, 2
        %vm1447 = vcmp.ge.s32.totalorder %v649, 2
        %v1448 = vrot.slane %v1408, 6
        %v1449 = vrot.slane %v1409, 6
        %v1450 = vrot.slane %v1410, 6
        %v1451 = vrot.slane %v1411, 6
        %v1452 = vrot.slane %v1412, 6
        %v1453 = vrot.slane %v1413, 6
        %v1454 = vrot.slane %v1414, 6
        %v1455 = vrot.slane %v1415, 6
        %v1456 = vrot.slane %v1416, 6
        %v1457 = vrot.slane %v1417, 6
        %v1458 = vrot.slane %v1418, 6
        %v1459 = vrot.slane %v1419, 6
        %v1460 = vrot.slane %v1420, 6
        %v1461 = vrot.slane %v1421, 6
        %v1462 = vrot.slane %v1422, 6
        %v1463 = vrot.slane %v1423, 6
        %vm1464 = vcmp.lt.s32.totalorder %v618, 2
        %v1465 = vsel %vm1464, %v1462, %v1463
        %v1466 = vsel %vm1464, %v1461, %v1462
        %v1467 = vsel %vm1464, %v1460, %v1461
        %v1468 = vsel %vm1464, %v1459, %v1460
        %v1469 = vsel %vm1464, %v1458, %v1459
        %v1470 = vsel %vm1464, %v1457, %v1458
        %v1471 = vsel %vm1464, %v1456, %v1457
        %v1472 = vsel %vm1464, %v1455, %v1456
        %v1473 = vsel %vm1464, %v1454, %v1455
        %v1474 = vsel %vm1464, %v1453, %v1454
        %v1475 = vsel %vm1464, %v1452, %v1453
        %v1476 = vsel %vm1464, %v1451, %v1452
        %v1477 = vsel %vm1464, %v1450, %v1451
        %v1478 = vsel %vm1464, %v1449, %v1450
        %v1479 = vsel %vm1464, %v1448, %v1449
        %v1480 = vsel %vm1464, %v1463, %v1448
        %v1481 = vsel %vm1432, %v1480, 0.0
        %v1482 = vsel %vm1433, %v1479, 0.0
        %v1483 = vsel %vm1434, %v1478, 0.0
        %v1484 = vsel %vm1435, %v1477, 0.0
        %v1485 = vsel %vm1436, %v1476, 0.0
        %v1486 = vsel %vm1437, %v1475, 0.0
        %v1487 = vsel %vm1438, %v1474, 0.0
        %v1488 = vsel %vm1439, %v1473, 0.0
        %v1489 = vsel %vm1440, %v1472, 0.0
        %v1490 = vsel %vm1441, %v1471, 0.0
        %v1491 = vsel %vm1442, %v1470, 0.0
        %v1492 = vsel %vm1443, %v1469, 0.0
        %v1493 = vsel %vm1444, %v1468, 0.0
        %v1494 = vsel %vm1445, %v1467, 0.0
        %v1495 = vsel %vm1446, %v1466, 0.0
        %v1496 = vsel %vm1447, %v1465, 0.0
        %v1497 = vpack.c.bf16 %v1482, %v1481
        %v1498 = vpack.c.bf16 %v1484, %v1483
        %v1499 = vpack.c.bf16 %v1486, %v1485
        %v1500 = vpack.c.bf16 %v1488, %v1487
        %v1501 = vpack.c.bf16 %v1490, %v1489
        %v1502 = vpack.c.bf16 %v1492, %v1491
        %v1503 = vpack.c.bf16 %v1494, %v1493
        %v1504 = vpack.c.bf16 %v1496, %v1495
        %v1505 = vld [vmem:[#allocation8] sm:$0xf]
        %v1506 = vld [vmem:[#allocation8 + $0x4] sm:$0xf]
        %v1507 = vld [vmem:[#allocation8 + $0x8] sm:$0xf]
        %v1508 = vld [vmem:[#allocation8 + $0xc] sm:$0xf]
        %v1509 = vld [vmem:[#allocation8 + $0x10] sm:$0xf]
        %v1510 = vld [vmem:[#allocation8 + $0x14] sm:$0xf]
        %v1511 = vld [vmem:[#allocation8 + $0x18] sm:$0xf]
        %v1512 = vld [vmem:[#allocation8 + $0x1c] sm:$0xf]
        %v1513 = vld [vmem:[#allocation8 + $0x20] sm:$0xf]
        %v1514 = vld [vmem:[#allocation8 + $0x24] sm:$0xf]
        %v1515 = vld [vmem:[#allocation8 + $0x28] sm:$0xf]
        %v1516 = vld [vmem:[#allocation8 + $0x2c] sm:$0xf]
        %v1517 = vld [vmem:[#allocation8 + $0x30] sm:$0xf]
        %v1518 = vld [vmem:[#allocation8 + $0x34] sm:$0xf]
        %v1519 = vld [vmem:[#allocation8 + $0x38] sm:$0xf]
        %v1520 = vld [vmem:[#allocation8 + $0x3c] sm:$0xf]
        %v1521 = vld [vmem:[#allocation8 + $0x40] sm:$0xf]
        %v1522 = vld [vmem:[#allocation8 + $0x44] sm:$0xf]
        %v1523 = vld [vmem:[#allocation8 + $0x48] sm:$0xf]
        %v1524 = vld [vmem:[#allocation8 + $0x4c] sm:$0xf]
        %v1525 = vld [vmem:[#allocation8 + $0x50] sm:$0xf]
        %v1526 = vld [vmem:[#allocation8 + $0x54] sm:$0xf]
        %v1527 = vld [vmem:[#allocation8 + $0x58] sm:$0xf]
        %v1528 = vld [vmem:[#allocation8 + $0x5c] sm:$0xf]
        %v1529 = vld [vmem:[#allocation8 + $0x60] sm:$0xf]
        %v1530 = vld [vmem:[#allocation8 + $0x64] sm:$0xf]
        %v1531 = vld [vmem:[#allocation8 + $0x68] sm:$0xf]
        %v1532 = vld [vmem:[#allocation8 + $0x6c] sm:$0xf]
        %v1533 = vld [vmem:[#allocation8 + $0x70] sm:$0xf]
        %v1534 = vld [vmem:[#allocation8 + $0x74] sm:$0xf]
        %v1535 = vld [vmem:[#allocation8 + $0x78] sm:$0xf]
        %v1536 = vld [vmem:[#allocation8 + $0x7c] sm:$0xf]
        %v1537 = vld [vmem:[%s6] sm:$0x1]
        %v1539 = vlaneseq
        %v1540 = vshrl.u32 %v1539, 7
        %v1541 = vsub.s32 0, %v1540
        %v1542 = vrot.slane %v1537, %v1541
        %v1576 = vunpack.c.l.b16 %v1505
        %v1577 = vunpack.c.l.b16 %v1506
        %v1578 = vunpack.c.l.b16 %v1507
        %v1579 = vunpack.c.l.b16 %v1508
        %v1580 = vunpack.c.l.b16 %v1509
        %v1581 = vunpack.c.l.b16 %v1510
        %v1582 = vunpack.c.l.b16 %v1511
        %v1583 = vunpack.c.l.b16 %v1512
        %v1584 = vunpack.c.l.b16 %v1513
        %v1585 = vunpack.c.l.b16 %v1514
        %v1586 = vunpack.c.l.b16 %v1515
        %v1587 = vunpack.c.l.b16 %v1516
        %v1588 = vunpack.c.l.b16 %v1517
        %v1589 = vunpack.c.l.b16 %v1518
        %v1590 = vunpack.c.l.b16 %v1519
        %v1591 = vunpack.c.l.b16 %v1520
        %v1592 = vunpack.c.l.b16 %v1521
        %v1593 = vunpack.c.l.b16 %v1522
        %v1594 = vunpack.c.l.b16 %v1523
        %v1595 = vunpack.c.l.b16 %v1524
        %v1596 = vunpack.c.l.b16 %v1525
        %v1597 = vunpack.c.l.b16 %v1526
        %v1598 = vunpack.c.l.b16 %v1527
        %v1599 = vunpack.c.l.b16 %v1528
        %v1600 = vunpack.c.l.b16 %v1529
        %v1601 = vunpack.c.l.b16 %v1530
        %v1602 = vunpack.c.l.b16 %v1531
        %v1603 = vunpack.c.l.b16 %v1532
        %v1604 = vunpack.c.l.b16 %v1533
        %v1605 = vunpack.c.l.b16 %v1534
        %v1606 = vunpack.c.l.b16 %v1535
        %v1607 = vunpack.c.l.b16 %v1536
        %v1608 = vpack.c.b16 %v1577, %v1576
        %v1609 = vpack.c.b16 %v1579, %v1578
        %v1610 = vpack.c.b16 %v1581, %v1580
        %v1611 = vpack.c.b16 %v1583, %v1582
        %v1612 = vpack.c.b16 %v1585, %v1584
        %v1613 = vpack.c.b16 %v1587, %v1586
        %v1614 = vpack.c.b16 %v1589, %v1588
        %v1615 = vpack.c.b16 %v1591, %v1590
        %v1616 = vpack.c.b16 %v1593, %v1592
        %v1617 = vpack.c.b16 %v1595, %v1594
        %v1618 = vpack.c.b16 %v1597, %v1596
        %v1619 = vpack.c.b16 %v1599, %v1598
        %v1620 = vpack.c.b16 %v1601, %v1600
        %v1621 = vpack.c.b16 %v1603, %v1602
        %v1622 = vpack.c.b16 %v1605, %v1604
        %v1623 = vpack.c.b16 %v1607, %v1606
        %1640 = vmatprep.subr.bf16.mxu0 0
        %1641 = vmatpush1.bf16.msra.mxu0 %v1608
        %1642 = vmatprep.subr.bf16.mxu0 0
        %1643 = vmatpush1.bf16.msra.mxu0 %v1609
        %1644 = vmatprep.subr.bf16.mxu0 0
        %1645 = vmatpush1.bf16.msra.mxu0 %v1610
        %1646 = vmatprep.subr.bf16.mxu0 0
        %1647 = vmatpush1.bf16.msra.mxu0 %v1611
        %1648 = vmatprep.subr.bf16.mxu0 0
        %1649 = vmatpush1.bf16.msra.mxu0 %v1612
        %1650 = vmatprep.subr.bf16.mxu0 0
        %1651 = vmatpush1.bf16.msra.mxu0 %v1613
        %1652 = vmatprep.subr.bf16.mxu0 0
        %1653 = vmatpush1.bf16.msra.mxu0 %v1614
        %1654 = vmatprep.subr.bf16.mxu0 0
        %1655 = vmatpush1.bf16.msra.mxu0 %v1615
        %1656 = vmatprep.subr.bf16.mxu0 0
        %1657 = vmatpush1.bf16.msra.mxu0 %v1616
        %1658 = vmatprep.subr.bf16.mxu0 0
        %1659 = vmatpush1.bf16.msra.mxu0 %v1617
        %1660 = vmatprep.subr.bf16.mxu0 0
        %1661 = vmatpush1.bf16.msra.mxu0 %v1618
        %1662 = vmatprep.subr.bf16.mxu0 0
        %1663 = vmatpush1.bf16.msra.mxu0 %v1619
        %1664 = vmatprep.subr.bf16.mxu0 0
        %1665 = vmatpush1.bf16.msra.mxu0 %v1620
        %1666 = vmatprep.subr.bf16.mxu0 0
        %1667 = vmatpush1.bf16.msra.mxu0 %v1621
        %1668 = vmatprep.subr.bf16.mxu0 0
        %1669 = vmatpush1.bf16.msra.mxu0 %v1622
        %1670 = vmatprep.subr.bf16.mxu0 0
        %1671 = vmatpush1.bf16.msra.mxu0 %v1623
        %1672 = vmatprep.mubr.bf16.mxu0 %v1424
        %1673 = vmatmul.mubr.bf16.gmra.mrb[0].mxu0 %v1497
        %v1674 = vpop.f32.mrb[0].mxu0
        %v1675 = vadd.f32 %v1542, %v1674
        %v1676 = vpop.f32.mrb[0].mxu0
        %v1677 = vpop.f32.mrb[0].mxu0
        %v1678 = vadd.f32 %v1542, %v1677
        %v1679 = vpop.f32.mrb[0].mxu0
        %1680 = vmatprep.mubr.bf16.mxu0 %v1425
        %1681 = vmatmul.mubr.bf16.gmra.mrb[0].mxu0 %v1498
        %v1682 = vpop.f32.mrb[0].mxu0
        %v1683 = vadd.f32 %v1542, %v1682
        %v1684 = vpop.f32.mrb[0].mxu0
        %v1685 = vpop.f32.mrb[0].mxu0
        %v1686 = vadd.f32 %v1542, %v1685
        %v1687 = vpop.f32.mrb[0].mxu0
        %1688 = vmatprep.mubr.bf16.mxu0 %v1426
        %1689 = vmatmul.mubr.bf16.gmra.mrb[0].mxu0 %v1499
        %v1690 = vpop.f32.mrb[0].mxu0
        %v1691 = vadd.f32 %v1542, %v1690
        %v1692 = vpop.f32.mrb[0].mxu0
        %v1693 = vpop.f32.mrb[0].mxu0
        %v1694 = vadd.f32 %v1542, %v1693
        %v1695 = vpop.f32.mrb[0].mxu0
        %1696 = vmatprep.mubr.bf16.mxu0 %v1427
        %1697 = vmatmul.mubr.bf16.gmra.mrb[0].mxu0 %v1500
        %v1698 = vpop.f32.mrb[0].mxu0
        %v1699 = vadd.f32 %v1542, %v1698
        %v1700 = vpop.f32.mrb[0].mxu0
        %v1701 = vpop.f32.mrb[0].mxu0
        %v1702 = vadd.f32 %v1542, %v1701
        %v1703 = vpop.f32.mrb[0].mxu0
        %1704 = vmatprep.mubr.bf16.mxu0 %v1428
        %1705 = vmatmul.mubr.bf16.gmra.mrb[0].mxu0 %v1501
        %v1706 = vpop.f32.mrb[0].mxu0
        %v1707 = vadd.f32 %v1542, %v1706
        %v1708 = vpop.f32.mrb[0].mxu0
        %v1709 = vpop.f32.mrb[0].mxu0
        %v1710 = vadd.f32 %v1542, %v1709
        %v1711 = vpop.f32.mrb[0].mxu0
        %1712 = vmatprep.mubr.bf16.mxu0 %v1429
        %1713 = vmatmul.mubr.bf16.gmra.mrb[0].mxu0 %v1502
        %v1714 = vpop.f32.mrb[0].mxu0
        %v1715 = vadd.f32 %v1542, %v1714
        %v1716 = vpop.f32.mrb[0].mxu0
        %v1717 = vpop.f32.mrb[0].mxu0
        %v1718 = vadd.f32 %v1542, %v1717
        %v1719 = vpop.f32.mrb[0].mxu0
        %1720 = vmatprep.mubr.bf16.mxu0 %v1430
        %1721 = vmatmul.mubr.bf16.gmra.mrb[0].mxu0 %v1503
        %v1722 = vpop.f32.mrb[0].mxu0
        %v1723 = vadd.f32 %v1542, %v1722
        %v1724 = vpop.f32.mrb[0].mxu0
        %v1725 = vpop.f32.mrb[0].mxu0
        %v1726 = vadd.f32 %v1542, %v1725
        %v1727 = vpop.f32.mrb[0].mxu0
        %1728 = vmatprep.mubr.bf16.mxu0 %v1431
        %1729 = vmatmul.mubr.bf16.gmra.mrb[0].mxu0 %v1504
        %v1730 = vpop.f32.mrb[0].mxu0
        %v1731 = vadd.f32 %v1542, %v1730
        %v1732 = vpop.f32.mrb[0].mxu0
        %v1733 = vpop.f32.mrb[0].mxu0
        %v1734 = vadd.f32 %v1542, %v1733
        %v1735 = vpop.f32.mrb[0].mxu0
        %1736 = vdwg.mxu0
        %v1737 = vmax.f32 %v1675, 0.0
        %v1738 = vmax.f32 %v1678, 0.0
        %v1739 = vmax.f32 %v1683, 0.0
        %v1740 = vmax.f32 %v1686, 0.0
        %v1741 = vmax.f32 %v1691, 0.0
        %v1742 = vmax.f32 %v1694, 0.0
        %v1743 = vmax.f32 %v1699, 0.0
        %v1744 = vmax.f32 %v1702, 0.0
        %v1745 = vmax.f32 %v1707, 0.0
        %v1746 = vmax.f32 %v1710, 0.0
        %v1747 = vmax.f32 %v1715, 0.0
        %v1748 = vmax.f32 %v1718, 0.0
        %v1749 = vmax.f32 %v1723, 0.0
        %v1750 = vmax.f32 %v1726, 0.0
        %v1751 = vmax.f32 %v1731, 0.0
        %v1752 = vmax.f32 %v1734, 0.0
        %v1753 = vpack.c.bf16 %v1738, %v1737
        %v1754 = vpack.c.bf16 %v1740, %v1739
        %v1755 = vpack.c.bf16 %v1742, %v1741
        %v1756 = vpack.c.bf16 %v1744, %v1743
        %v1757 = vpack.c.bf16 %v1746, %v1745
        %v1758 = vpack.c.bf16 %v1748, %v1747
        %v1759 = vpack.c.bf16 %v1750, %v1749
        %v1760 = vpack.c.bf16 %v1752, %v1751
        %v1761 = vrot.slane %v1737, 6
        %v1762 = vrot.slane %v1738, 6
        %v1763 = vrot.slane %v1739, 6
        %v1764 = vrot.slane %v1740, 6
        %v1765 = vrot.slane %v1741, 6
        %v1766 = vrot.slane %v1742, 6
        %v1767 = vrot.slane %v1743, 6
        %v1768 = vrot.slane %v1744, 6
        %v1769 = vrot.slane %v1745, 6
        %v1770 = vrot.slane %v1746, 6
        %v1771 = vrot.slane %v1747, 6
        %v1772 = vrot.slane %v1748, 6
        %v1773 = vrot.slane %v1749, 6
        %v1774 = vrot.slane %v1750, 6
        %v1775 = vrot.slane %v1751, 6
        %v1776 = vrot.slane %v1752, 6
        %v1777 = vsel %vm1464, %v1775, %v1776
        %v1778 = vsel %vm1464, %v1774, %v1775
        %v1779 = vsel %vm1464, %v1773, %v1774
        %v1780 = vsel %vm1464, %v1772, %v1773
        %v1781 = vsel %vm1464, %v1771, %v1772
        %v1782 = vsel %vm1464, %v1770, %v1771
        %v1783 = vsel %vm1464, %v1769, %v1770
        %v1784 = vsel %vm1464, %v1768, %v1769
        %v1785 = vsel %vm1464, %v1767, %v1768
        %v1786 = vsel %vm1464, %v1766, %v1767
        %v1787 = vsel %vm1464, %v1765, %v1766
        %v1788 = vsel %vm1464, %v1764, %v1765
        %v1789 = vsel %vm1464, %v1763, %v1764
        %v1790 = vsel %vm1464, %v1762, %v1763
        %v1791 = vsel %vm1464, %v1761, %v1762
        %v1792 = vsel %vm1464, %v1776, %v1761
        %v1793 = vsel %vm1432, %v1792, 0.0
        %v1794 = vsel %vm1433, %v1791, 0.0
        %v1795 = vsel %vm1434, %v1790, 0.0
        %v1796 = vsel %vm1435, %v1789, 0.0
        %v1797 = vsel %vm1436, %v1788, 0.0
        %v1798 = vsel %vm1437, %v1787, 0.0
        %v1799 = vsel %vm1438, %v1786, 0.0
        %v1800 = vsel %vm1439, %v1785, 0.0
        %v1801 = vsel %vm1440, %v1784, 0.0
        %v1802 = vsel %vm1441, %v1783, 0.0
        %v1803 = vsel %vm1442, %v1782, 0.0
        %v1804 = vsel %vm1443, %v1781, 0.0
        %v1805 = vsel %vm1444, %v1780, 0.0
        %v1806 = vsel %vm1445, %v1779, 0.0
        %v1807 = vsel %vm1446, %v1778, 0.0
        %v1808 = vsel %vm1447, %v1777, 0.0
        %v1809 = vpack.c.bf16 %v1794, %v1793
        %v1810 = vpack.c.bf16 %v1796, %v1795
        %v1811 = vpack.c.bf16 %v1798, %v1797
        %v1812 = vpack.c.bf16 %v1800, %v1799
        %v1813 = vpack.c.bf16 %v1802, %v1801
        %v1814 = vpack.c.bf16 %v1804, %v1803
        %v1815 = vpack.c.bf16 %v1806, %v1805
        %v1816 = vpack.c.bf16 %v1808, %v1807
        %v1817 = vld [vmem:[#allocation10] sm:$0xf]
        %v1818 = vld [vmem:[#allocation10 + $0x4] sm:$0xf]
        %v1819 = vld [vmem:[#allocation10 + $0x8] sm:$0xf]
        %v1820 = vld [vmem:[#allocation10 + $0xc] sm:$0xf]
        %v1821 = vld [vmem:[#allocation10 + $0x10] sm:$0xf]
        %v1822 = vld [vmem:[#allocation10 + $0x14] sm:$0xf]
        %v1823 = vld [vmem:[#allocation10 + $0x18] sm:$0xf]
        %v1824 = vld [vmem:[#allocation10 + $0x1c] sm:$0xf]
        %v1825 = vld [vmem:[#allocation10 + $0x20] sm:$0xf]
        %v1826 = vld [vmem:[#allocation10 + $0x24] sm:$0xf]
        %v1827 = vld [vmem:[#allocation10 + $0x28] sm:$0xf]
        %v1828 = vld [vmem:[#allocation10 + $0x2c] sm:$0xf]
        %v1829 = vld [vmem:[#allocation10 + $0x30] sm:$0xf]
        %v1830 = vld [vmem:[#allocation10 + $0x34] sm:$0xf]
        %v1831 = vld [vmem:[#allocation10 + $0x38] sm:$0xf]
        %v1832 = vld [vmem:[#allocation10 + $0x3c] sm:$0xf]
        %v1833 = vld [vmem:[#allocation10 + $0x40] sm:$0xf]
        %v1834 = vld [vmem:[#allocation10 + $0x44] sm:$0xf]
        %v1835 = vld [vmem:[#allocation10 + $0x48] sm:$0xf]
        %v1836 = vld [vmem:[#allocation10 + $0x4c] sm:$0xf]
        %v1837 = vld [vmem:[#allocation10 + $0x50] sm:$0xf]
        %v1838 = vld [vmem:[#allocation10 + $0x54] sm:$0xf]
        %v1839 = vld [vmem:[#allocation10 + $0x58] sm:$0xf]
        %v1840 = vld [vmem:[#allocation10 + $0x5c] sm:$0xf]
        %v1841 = vld [vmem:[#allocation10 + $0x60] sm:$0xf]
        %v1842 = vld [vmem:[#allocation10 + $0x64] sm:$0xf]
        %v1843 = vld [vmem:[#allocation10 + $0x68] sm:$0xf]
        %v1844 = vld [vmem:[#allocation10 + $0x6c] sm:$0xf]
        %v1845 = vld [vmem:[#allocation10 + $0x70] sm:$0xf]
        %v1846 = vld [vmem:[#allocation10 + $0x74] sm:$0xf]
        %v1847 = vld [vmem:[#allocation10 + $0x78] sm:$0xf]
        %v1848 = vld [vmem:[#allocation10 + $0x7c] sm:$0xf]
        %v1849 = vld [vmem:[%s8] sm:$0x1]
        %v1851 = vlaneseq
        %v1852 = vshrl.u32 %v1851, 7
        %v1853 = vsub.s32 0, %v1852
        %v1854 = vrot.slane %v1849, %v1853
        %v1888 = vunpack.c.l.b16 %v1817
        %v1889 = vunpack.c.l.b16 %v1818
        %v1890 = vunpack.c.l.b16 %v1819
        %v1891 = vunpack.c.l.b16 %v1820
        %v1892 = vunpack.c.l.b16 %v1821
        %v1893 = vunpack.c.l.b16 %v1822
        %v1894 = vunpack.c.l.b16 %v1823
        %v1895 = vunpack.c.l.b16 %v1824
        %v1896 = vunpack.c.l.b16 %v1825
        %v1897 = vunpack.c.l.b16 %v1826
        %v1898 = vunpack.c.l.b16 %v1827
        %v1899 = vunpack.c.l.b16 %v1828
        %v1900 = vunpack.c.l.b16 %v1829
        %v1901 = vunpack.c.l.b16 %v1830
        %v1902 = vunpack.c.l.b16 %v1831
        %v1903 = vunpack.c.l.b16 %v1832
        %v1904 = vunpack.c.l.b16 %v1833
        %v1905 = vunpack.c.l.b16 %v1834
        %v1906 = vunpack.c.l.b16 %v1835
        %v1907 = vunpack.c.l.b16 %v1836
        %v1908 = vunpack.c.l.b16 %v1837
        %v1909 = vunpack.c.l.b16 %v1838
        %v1910 = vunpack.c.l.b16 %v1839
        %v1911 = vunpack.c.l.b16 %v1840
        %v1912 = vunpack.c.l.b16 %v1841
        %v1913 = vunpack.c.l.b16 %v1842
        %v1914 = vunpack.c.l.b16 %v1843
        %v1915 = vunpack.c.l.b16 %v1844
        %v1916 = vunpack.c.l.b16 %v1845
        %v1917 = vunpack.c.l.b16 %v1846
        %v1918 = vunpack.c.l.b16 %v1847
        %v1919 = vunpack.c.l.b16 %v1848
        %v1920 = vpack.c.b16 %v1889, %v1888
        %v1921 = vpack.c.b16 %v1891, %v1890
        %v1922 = vpack.c.b16 %v1893, %v1892
        %v1923 = vpack.c.b16 %v1895, %v1894
        %v1924 = vpack.c.b16 %v1897, %v1896
        %v1925 = vpack.c.b16 %v1899, %v1898
        %v1926 = vpack.c.b16 %v1901, %v1900
        %v1927 = vpack.c.b16 %v1903, %v1902
        %v1928 = vpack.c.b16 %v1905, %v1904
        %v1929 = vpack.c.b16 %v1907, %v1906
        %v1930 = vpack.c.b16 %v1909, %v1908
        %v1931 = vpack.c.b16 %v1911, %v1910
        %v1932 = vpack.c.b16 %v1913, %v1912
        %v1933 = vpack.c.b16 %v1915, %v1914
        %v1934 = vpack.c.b16 %v1917, %v1916
        %v1935 = vpack.c.b16 %v1919, %v1918
        %1952 = vmatprep.subr.bf16.mxu0 0
        %1953 = vmatpush1.bf16.msra.mxu0 %v1920
        %1954 = vmatprep.subr.bf16.mxu0 0
        %1955 = vmatpush1.bf16.msra.mxu0 %v1921
        %1956 = vmatprep.subr.bf16.mxu0 0
        %1957 = vmatpush1.bf16.msra.mxu0 %v1922
        %1958 = vmatprep.subr.bf16.mxu0 0
        %1959 = vmatpush1.bf16.msra.mxu0 %v1923
        %1960 = vmatprep.subr.bf16.mxu0 0
        %1961 = vmatpush1.bf16.msra.mxu0 %v1924
        %1962 = vmatprep.subr.bf16.mxu0 0
        %1963 = vmatpush1.bf16.msra.mxu0 %v1925
        %1964 = vmatprep.subr.bf16.mxu0 0
        %1965 = vmatpush1.bf16.msra.mxu0 %v1926
        %1966 = vmatprep.subr.bf16.mxu0 0
        %1967 = vmatpush1.bf16.msra.mxu0 %v1927
        %1968 = vmatprep.subr.bf16.mxu0 0
        %1969 = vmatpush1.bf16.msra.mxu0 %v1928
        %1970 = vmatprep.subr.bf16.mxu0 0
        %1971 = vmatpush1.bf16.msra.mxu0 %v1929
        %1972 = vmatprep.subr.bf16.mxu0 0
        %1973 = vmatpush1.bf16.msra.mxu0 %v1930
        %1974 = vmatprep.subr.bf16.mxu0 0
        %1975 = vmatpush1.bf16.msra.mxu0 %v1931
        %1976 = vmatprep.subr.bf16.mxu0 0
        %1977 = vmatpush1.bf16.msra.mxu0 %v1932
        %1978 = vmatprep.subr.bf16.mxu0 0
        %1979 = vmatpush1.bf16.msra.mxu0 %v1933
        %1980 = vmatprep.subr.bf16.mxu0 0
        %1981 = vmatpush1.bf16.msra.mxu0 %v1934
        %1982 = vmatprep.subr.bf16.mxu0 0
        %1983 = vmatpush1.bf16.msra.mxu0 %v1935
        %1984 = vmatprep.mubr.bf16.mxu0 %v1753
        %1985 = vmatmul.mubr.bf16.gmra.mrb[0].mxu0 %v1809
        %v1986 = vpop.f32.mrb[0].mxu0
        %v1987 = vadd.f32 %v1854, %v1986
        %v1988 = vpop.f32.mrb[0].mxu0
        %v1989 = vpop.f32.mrb[0].mxu0
        %v1990 = vadd.f32 %v1854, %v1989
        %v1991 = vpop.f32.mrb[0].mxu0
        %1992 = vmatprep.mubr.bf16.mxu0 %v1754
        %1993 = vmatmul.mubr.bf16.gmra.mrb[0].mxu0 %v1810
        %v1994 = vpop.f32.mrb[0].mxu0
        %v1995 = vadd.f32 %v1854, %v1994
        %v1996 = vpop.f32.mrb[0].mxu0
        %v1997 = vpop.f32.mrb[0].mxu0
        %v1998 = vadd.f32 %v1854, %v1997
        %v1999 = vpop.f32.mrb[0].mxu0
        %2000 = vmatprep.mubr.bf16.mxu0 %v1755
        %2001 = vmatmul.mubr.bf16.gmra.mrb[0].mxu0 %v1811
        %v2002 = vpop.f32.mrb[0].mxu0
        %v2003 = vadd.f32 %v1854, %v2002
        %v2004 = vpop.f32.mrb[0].mxu0
        %v2005 = vpop.f32.mrb[0].mxu0
        %v2006 = vadd.f32 %v1854, %v2005
        %v2007 = vpop.f32.mrb[0].mxu0
        %2008 = vmatprep.mubr.bf16.mxu0 %v1756
        %2009 = vmatmul.mubr.bf16.gmra.mrb[0].mxu0 %v1812
        %v2010 = vpop.f32.mrb[0].mxu0
        %v2011 = vadd.f32 %v1854, %v2010
        %v2012 = vpop.f32.mrb[0].mxu0
        %v2013 = vpop.f32.mrb[0].mxu0
        %v2014 = vadd.f32 %v1854, %v2013
        %v2015 = vpop.f32.mrb[0].mxu0
        %2016 = vmatprep.mubr.bf16.mxu0 %v1757
        %2017 = vmatmul.mubr.bf16.gmra.mrb[0].mxu0 %v1813
        %v2018 = vpop.f32.mrb[0].mxu0
        %v2019 = vadd.f32 %v1854, %v2018
        %v2020 = vpop.f32.mrb[0].mxu0
        %v2021 = vpop.f32.mrb[0].mxu0
        %v2022 = vadd.f32 %v1854, %v2021
        %v2023 = vpop.f32.mrb[0].mxu0
        %2024 = vmatprep.mubr.bf16.mxu0 %v1758
        %2025 = vmatmul.mubr.bf16.gmra.mrb[0].mxu0 %v1814
        %v2026 = vpop.f32.mrb[0].mxu0
        %v2027 = vadd.f32 %v1854, %v2026
        %v2028 = vpop.f32.mrb[0].mxu0
        %v2029 = vpop.f32.mrb[0].mxu0
        %v2030 = vadd.f32 %v1854, %v2029
        %v2031 = vpop.f32.mrb[0].mxu0
        %2032 = vmatprep.mubr.bf16.mxu0 %v1759
        %2033 = vmatmul.mubr.bf16.gmra.mrb[0].mxu0 %v1815
        %v2034 = vpop.f32.mrb[0].mxu0
        %v2035 = vadd.f32 %v1854, %v2034
        %v2036 = vpop.f32.mrb[0].mxu0
        %v2037 = vpop.f32.mrb[0].mxu0
        %v2038 = vadd.f32 %v1854, %v2037
        %v2039 = vpop.f32.mrb[0].mxu0
        %2040 = vmatprep.mubr.bf16.mxu0 %v1760
        %2041 = vmatmul.mubr.bf16.gmra.mrb[0].mxu0 %v1816
        %v2042 = vpop.f32.mrb[0].mxu0
        %v2043 = vadd.f32 %v1854, %v2042
        %v2044 = vpop.f32.mrb[0].mxu0
        %v2045 = vpop.f32.mrb[0].mxu0
        %v2046 = vadd.f32 %v1854, %v2045
        %v2047 = vpop.f32.mrb[0].mxu0
        %2048 = vdwg.mxu0
        %v2049 = vmax.f32 %v1987, 0.0
        %v2050 = vmax.f32 %v1990, 0.0
        %v2051 = vmax.f32 %v1995, 0.0
        %v2052 = vmax.f32 %v1998, 0.0
        %v2053 = vmax.f32 %v2003, 0.0
        %v2054 = vmax.f32 %v2006, 0.0
        %v2055 = vmax.f32 %v2011, 0.0
        %v2056 = vmax.f32 %v2014, 0.0
        %v2057 = vmax.f32 %v2019, 0.0
        %v2058 = vmax.f32 %v2022, 0.0
        %v2059 = vmax.f32 %v2027, 0.0
        %v2060 = vmax.f32 %v2030, 0.0
        %v2061 = vmax.f32 %v2035, 0.0
        %v2062 = vmax.f32 %v2038, 0.0
        %v2063 = vmax.f32 %v2043, 0.0
        %v2064 = vmax.f32 %v2046, 0.0
        %v2065 = vadd.f32 %v2049, %v1408
        %v2066 = vadd.f32 %v2050, %v1409
        %v2067 = vadd.f32 %v2051, %v1410
        %v2068 = vadd.f32 %v2052, %v1411
        %v2069 = vadd.f32 %v2053, %v1412
        %v2070 = vadd.f32 %v2054, %v1413
        %v2071 = vadd.f32 %v2055, %v1414
        %v2072 = vadd.f32 %v2056, %v1415
        %v2073 = vadd.f32 %v2057, %v1416
        %v2074 = vadd.f32 %v2058, %v1417
        %v2075 = vadd.f32 %v2059, %v1418
        %v2076 = vadd.f32 %v2060, %v1419
        %v2077 = vadd.f32 %v2061, %v1420
        %v2078 = vadd.f32 %v2062, %v1421
        %v2079 = vadd.f32 %v2063, %v1422
        %v2080 = vadd.f32 %v2064, %v1423
        %v2081 = vmax.f32 %v2065, 0.0
        %v2082 = vmax.f32 %v2066, 0.0
        %v2083 = vmax.f32 %v2067, 0.0
        %v2084 = vmax.f32 %v2068, 0.0
        %v2085 = vmax.f32 %v2069, 0.0
        %v2086 = vmax.f32 %v2070, 0.0
        %v2087 = vmax.f32 %v2071, 0.0
        %v2088 = vmax.f32 %v2072, 0.0
        %v2089 = vmax.f32 %v2073, 0.0
        %v2090 = vmax.f32 %v2074, 0.0
        %v2091 = vmax.f32 %v2075, 0.0
        %v2092 = vmax.f32 %v2076, 0.0
        %v2093 = vmax.f32 %v2077, 0.0
        %v2094 = vmax.f32 %v2078, 0.0
        %v2095 = vmax.f32 %v2079, 0.0
        %v2096 = vmax.f32 %v2080, 0.0
        %v2097 = vpack.c.bf16 %v2082, %v2081
        %v2098 = vpack.c.bf16 %v2084, %v2083
        %v2099 = vpack.c.bf16 %v2086, %v2085
        %v2100 = vpack.c.bf16 %v2088, %v2087
        %v2101 = vpack.c.bf16 %v2090, %v2089
        %v2102 = vpack.c.bf16 %v2092, %v2091
        %v2103 = vpack.c.bf16 %v2094, %v2093
        %v2104 = vpack.c.bf16 %v2096, %v2095
        %vm2105 = vcmp.ge.s32.totalorder %v634, 4
        %vm2106 = vcmp.ge.s32.totalorder %v635, 4
        %vm2107 = vcmp.ge.s32.totalorder %v636, 4
        %vm2108 = vcmp.ge.s32.totalorder %v637, 4
        %vm2109 = vcmp.ge.s32.totalorder %v638, 4
        %vm2110 = vcmp.ge.s32.totalorder %v639, 4
        %vm2111 = vcmp.ge.s32.totalorder %v640, 4
        %vm2112 = vcmp.ge.s32.totalorder %v641, 4
        %vm2113 = vcmp.ge.s32.totalorder %v642, 4
        %vm2114 = vcmp.ge.s32.totalorder %v643, 4
        %vm2115 = vcmp.ge.s32.totalorder %v644, 4
        %vm2116 = vcmp.ge.s32.totalorder %v645, 4
        %vm2117 = vcmp.ge.s32.totalorder %v646, 4
        %vm2118 = vcmp.ge.s32.totalorder %v647, 4
        %vm2119 = vcmp.ge.s32.totalorder %v648, 4
        %vm2120 = vcmp.ge.s32.totalorder %v649, 4
        %v2121 = vrot.slane %v2081, 4
        %v2122 = vrot.slane %v2082, 4
        %v2123 = vrot.slane %v2083, 4
        %v2124 = vrot.slane %v2084, 4
        %v2125 = vrot.slane %v2085, 4
        %v2126 = vrot.slane %v2086, 4
        %v2127 = vrot.slane %v2087, 4
        %v2128 = vrot.slane %v2088, 4
        %v2129 = vrot.slane %v2089, 4
        %v2130 = vrot.slane %v2090, 4
        %v2131 = vrot.slane %v2091, 4
        %v2132 = vrot.slane %v2092, 4
        %v2133 = vrot.slane %v2093, 4
        %v2134 = vrot.slane %v2094, 4
        %v2135 = vrot.slane %v2095, 4
        %v2136 = vrot.slane %v2096, 4
        %vm2137 = vcmp.lt.s32.totalorder %v618, 4
        %v2138 = vsel %vm2137, %v2135, %v2136
        %v2139 = vsel %vm2137, %v2134, %v2135
        %v2140 = vsel %vm2137, %v2133, %v2134
        %v2141 = vsel %vm2137, %v2132, %v2133
        %v2142 = vsel %vm2137, %v2131, %v2132
        %v2143 = vsel %vm2137, %v2130, %v2131
        %v2144 = vsel %vm2137, %v2129, %v2130
        %v2145 = vsel %vm2137, %v2128, %v2129
        %v2146 = vsel %vm2137, %v2127, %v2128
        %v2147 = vsel %vm2137, %v2126, %v2127
        %v2148 = vsel %vm2137, %v2125, %v2126
        %v2149 = vsel %vm2137, %v2124, %v2125
        %v2150 = vsel %vm2137, %v2123, %v2124
        %v2151 = vsel %vm2137, %v2122, %v2123
        %v2152 = vsel %vm2137, %v2121, %v2122
        %v2153 = vsel %vm2137, %v2136, %v2121
        %v2154 = vsel %vm2105, %v2153, 0.0
        %v2155 = vsel %vm2106, %v2152, 0.0
        %v2156 = vsel %vm2107, %v2151, 0.0
        %v2157 = vsel %vm2108, %v2150, 0.0
        %v2158 = vsel %vm2109, %v2149, 0.0
        %v2159 = vsel %vm2110, %v2148, 0.0
        %v2160 = vsel %vm2111, %v2147, 0.0
        %v2161 = vsel %vm2112, %v2146, 0.0
        %v2162 = vsel %vm2113, %v2145, 0.0
        %v2163 = vsel %vm2114, %v2144, 0.0
        %v2164 = vsel %vm2115, %v2143, 0.0
        %v2165 = vsel %vm2116, %v2142, 0.0
        %v2166 = vsel %vm2117, %v2141, 0.0
        %v2167 = vsel %vm2118, %v2140, 0.0
        %v2168 = vsel %vm2119, %v2139, 0.0
        %v2169 = vsel %vm2120, %v2138, 0.0
        %v2170 = vpack.c.bf16 %v2155, %v2154
        %v2171 = vpack.c.bf16 %v2157, %v2156
        %v2172 = vpack.c.bf16 %v2159, %v2158
        %v2173 = vpack.c.bf16 %v2161, %v2160
        %v2174 = vpack.c.bf16 %v2163, %v2162
        %v2175 = vpack.c.bf16 %v2165, %v2164
        %v2176 = vpack.c.bf16 %v2167, %v2166
        %v2177 = vpack.c.bf16 %v2169, %v2168
        %v2178 = vld [vmem:[#allocation11] sm:$0xff]
        %v2179 = vld [vmem:[#allocation11 + $0x8] sm:$0xff]
        %v2180 = vld [vmem:[#allocation11 + $0x10] sm:$0xff]
        %v2181 = vld [vmem:[#allocation11 + $0x18] sm:$0xff]
        %v2182 = vld [vmem:[#allocation11 + $0x20] sm:$0xff]
        %v2183 = vld [vmem:[#allocation11 + $0x28] sm:$0xff]
        %v2184 = vld [vmem:[#allocation11 + $0x30] sm:$0xff]
        %v2185 = vld [vmem:[#allocation11 + $0x38] sm:$0xff]
        %v2186 = vld [vmem:[#allocation11 + $0x40] sm:$0xff]
        %v2187 = vld [vmem:[#allocation11 + $0x48] sm:$0xff]
        %v2188 = vld [vmem:[#allocation11 + $0x50] sm:$0xff]
        %v2189 = vld [vmem:[#allocation11 + $0x58] sm:$0xff]
        %v2190 = vld [vmem:[#allocation11 + $0x60] sm:$0xff]
        %v2191 = vld [vmem:[#allocation11 + $0x68] sm:$0xff]
        %v2192 = vld [vmem:[#allocation11 + $0x70] sm:$0xff]
        %v2193 = vld [vmem:[#allocation11 + $0x78] sm:$0xff]
        %v2194 = vld [vmem:[#allocation11 + $0x80] sm:$0xff]
        %v2195 = vld [vmem:[#allocation11 + $0x88] sm:$0xff]
        %v2196 = vld [vmem:[#allocation11 + $0x90] sm:$0xff]
        %v2197 = vld [vmem:[#allocation11 + $0x98] sm:$0xff]
        %v2198 = vld [vmem:[#allocation11 + $0xa0] sm:$0xff]
        %v2199 = vld [vmem:[#allocation11 + $0xa8] sm:$0xff]
        %v2200 = vld [vmem:[#allocation11 + $0xb0] sm:$0xff]
        %v2201 = vld [vmem:[#allocation11 + $0xb8] sm:$0xff]
        %v2202 = vld [vmem:[#allocation11 + $0xc0] sm:$0xff]
        %v2203 = vld [vmem:[#allocation11 + $0xc8] sm:$0xff]
        %v2204 = vld [vmem:[#allocation11 + $0xd0] sm:$0xff]
        %v2205 = vld [vmem:[#allocation11 + $0xd8] sm:$0xff]
        %v2206 = vld [vmem:[#allocation11 + $0xe0] sm:$0xff]
        %v2207 = vld [vmem:[#allocation11 + $0xe8] sm:$0xff]
        %v2208 = vld [vmem:[#allocation11 + $0xf0] sm:$0xff]
        %v2209 = vld [vmem:[#allocation11 + $0xf8] sm:$0xff]
        %v2210 = vld [vmem:[%s10] sm:$0x3]
        %v2212 = vlaneseq
        %v2213 = vshrl.u32 %v2212, 7
        %v2214 = vsub.s32 0, %v2213
        %v2215 = vrot.slane %v2210, %v2214
        %v2216 = vlaneseq
        %v2217 = vshrl.u32 %v2216, 7
        %v2218 = vsub.s32 1, %v2217
        %v2219 = vrot.slane %v2210, %v2218
        %v2254 = vunpack.c.l.b16 %v2178
        %v2255 = vunpack.c.h.b16 %v2178
        %v2256 = vunpack.c.l.b16 %v2179
        %v2257 = vunpack.c.h.b16 %v2179
        %v2258 = vunpack.c.l.b16 %v2180
        %v2259 = vunpack.c.h.b16 %v2180
        %v2260 = vunpack.c.l.b16 %v2181
        %v2261 = vunpack.c.h.b16 %v2181
        %v2262 = vunpack.c.l.b16 %v2182
        %v2263 = vunpack.c.h.b16 %v2182
        %v2264 = vunpack.c.l.b16 %v2183
        %v2265 = vunpack.c.h.b16 %v2183
        %v2266 = vunpack.c.l.b16 %v2184
        %v2267 = vunpack.c.h.b16 %v2184
        %v2268 = vunpack.c.l.b16 %v2185
        %v2269 = vunpack.c.h.b16 %v2185
        %v2270 = vunpack.c.l.b16 %v2186
        %v2271 = vunpack.c.h.b16 %v2186
        %v2272 = vunpack.c.l.b16 %v2187
        %v2273 = vunpack.c.h.b16 %v2187
        %v2274 = vunpack.c.l.b16 %v2188
        %v2275 = vunpack.c.h.b16 %v2188
        %v2276 = vunpack.c.l.b16 %v2189
        %v2277 = vunpack.c.h.b16 %v2189
        %v2278 = vunpack.c.l.b16 %v2190
        %v2279 = vunpack.c.h.b16 %v2190
        %v2280 = vunpack.c.l.b16 %v2191
        %v2281 = vunpack.c.h.b16 %v2191
        %v2282 = vunpack.c.l.b16 %v2192
        %v2283 = vunpack.c.h.b16 %v2192
        %v2284 = vunpack.c.l.b16 %v2193
        %v2285 = vunpack.c.h.b16 %v2193
        %v2286 = vunpack.c.l.b16 %v2194
        %v2287 = vunpack.c.h.b16 %v2194
        %v2288 = vunpack.c.l.b16 %v2195
        %v2289 = vunpack.c.h.b16 %v2195
        %v2290 = vunpack.c.l.b16 %v2196
        %v2291 = vunpack.c.h.b16 %v2196
        %v2292 = vunpack.c.l.b16 %v2197
        %v2293 = vunpack.c.h.b16 %v2197
        %v2294 = vunpack.c.l.b16 %v2198
        %v2295 = vunpack.c.h.b16 %v2198
        %v2296 = vunpack.c.l.b16 %v2199
        %v2297 = vunpack.c.h.b16 %v2199
        %v2298 = vunpack.c.l.b16 %v2200
        %v2299 = vunpack.c.h.b16 %v2200
        %v2300 = vunpack.c.l.b16 %v2201
        %v2301 = vunpack.c.h.b16 %v2201
        %v2302 = vunpack.c.l.b16 %v2202
        %v2303 = vunpack.c.h.b16 %v2202
        %v2304 = vunpack.c.l.b16 %v2203
        %v2305 = vunpack.c.h.b16 %v2203
        %v2306 = vunpack.c.l.b16 %v2204
        %v2307 = vunpack.c.h.b16 %v2204
        %v2308 = vunpack.c.l.b16 %v2205
        %v2309 = vunpack.c.h.b16 %v2205
        %v2310 = vunpack.c.l.b16 %v2206
        %v2311 = vunpack.c.h.b16 %v2206
        %v2312 = vunpack.c.l.b16 %v2207
        %v2313 = vunpack.c.h.b16 %v2207
        %v2314 = vunpack.c.l.b16 %v2208
        %v2315 = vunpack.c.h.b16 %v2208
        %v2316 = vunpack.c.l.b16 %v2209
        %v2317 = vunpack.c.h.b16 %v2209
        %v2318 = vpack.c.b16 %v2256, %v2254
        %v2319 = vpack.c.b16 %v2257, %v2255
        %v2320 = vpack.c.b16 %v2260, %v2258
        %v2321 = vpack.c.b16 %v2261, %v2259
        %v2322 = vpack.c.b16 %v2264, %v2262
        %v2323 = vpack.c.b16 %v2265, %v2263
        %v2324 = vpack.c.b16 %v2268, %v2266
        %v2325 = vpack.c.b16 %v2269, %v2267
        %v2326 = vpack.c.b16 %v2272, %v2270
        %v2327 = vpack.c.b16 %v2273, %v2271
        %v2328 = vpack.c.b16 %v2276, %v2274
        %v2329 = vpack.c.b16 %v2277, %v2275
        %v2330 = vpack.c.b16 %v2280, %v2278
        %v2331 = vpack.c.b16 %v2281, %v2279
        %v2332 = vpack.c.b16 %v2284, %v2282
        %v2333 = vpack.c.b16 %v2285, %v2283
        %v2334 = vpack.c.b16 %v2288, %v2286
        %v2335 = vpack.c.b16 %v2289, %v2287
        %v2336 = vpack.c.b16 %v2292, %v2290
        %v2337 = vpack.c.b16 %v2293, %v2291
        %v2338 = vpack.c.b16 %v2296, %v2294
        %v2339 = vpack.c.b16 %v2297, %v2295
        %v2340 = vpack.c.b16 %v2300, %v2298
        %v2341 = vpack.c.b16 %v2301, %v2299
        %v2342 = vpack.c.b16 %v2304, %v2302
        %v2343 = vpack.c.b16 %v2305, %v2303
        %v2344 = vpack.c.b16 %v2308, %v2306
        %v2345 = vpack.c.b16 %v2309, %v2307
        %v2346 = vpack.c.b16 %v2312, %v2310
        %v2347 = vpack.c.b16 %v2313, %v2311
        %v2348 = vpack.c.b16 %v2316, %v2314
        %v2349 = vpack.c.b16 %v2317, %v2315
        %2382 = vmatprep.subr.bf16.mxu0 %v2319
        %2383 = vmatpush1.bf16.msra.mxu0 %v2318
        %2384 = vmatprep.subr.bf16.mxu0 %v2321
        %2385 = vmatpush1.bf16.msra.mxu0 %v2320
        %2386 = vmatprep.subr.bf16.mxu0 %v2323
        %2387 = vmatpush1.bf16.msra.mxu0 %v2322
        %2388 = vmatprep.subr.bf16.mxu0 %v2325
        %2389 = vmatpush1.bf16.msra.mxu0 %v2324
        %2390 = vmatprep.subr.bf16.mxu0 %v2327
        %2391 = vmatpush1.bf16.msra.mxu0 %v2326
        %2392 = vmatprep.subr.bf16.mxu0 %v2329
        %2393 = vmatpush1.bf16.msra.mxu0 %v2328
        %2394 = vmatprep.subr.bf16.mxu0 %v2331
        %2395 = vmatpush1.bf16.msra.mxu0 %v2330
        %2396 = vmatprep.subr.bf16.mxu0 %v2333
        %2397 = vmatpush1.bf16.msra.mxu0 %v2332
        %2398 = vmatprep.subr.bf16.mxu0 %v2335
        %2399 = vmatpush1.bf16.msra.mxu0 %v2334
        %2400 = vmatprep.subr.bf16.mxu0 %v2337
        %2401 = vmatpush1.bf16.msra.mxu0 %v2336
        %2402 = vmatprep.subr.bf16.mxu0 %v2339
        %2403 = vmatpush1.bf16.msra.mxu0 %v2338
        %2404 = vmatprep.subr.bf16.mxu0 %v2341
        %2405 = vmatpush1.bf16.msra.mxu0 %v2340
        %2406 = vmatprep.subr.bf16.mxu0 %v2343
        %2407 = vmatpush1.bf16.msra.mxu0 %v2342
        %2408 = vmatprep.subr.bf16.mxu0 %v2345
        %2409 = vmatpush1.bf16.msra.mxu0 %v2344
        %2410 = vmatprep.subr.bf16.mxu0 %v2347
        %2411 = vmatpush1.bf16.msra.mxu0 %v2346
        %2412 = vmatprep.subr.bf16.mxu0 %v2349
        %2413 = vmatpush1.bf16.msra.mxu0 %v2348
        %2414 = vmatprep.mubr.bf16.mxu0 %v2097
        %2415 = vmatmul.mubr.bf16.gmra.mrb[0].mxu0 %v2170
        %v2416 = vpop.f32.mrb[0].mxu0
        %v2417 = vadd.f32 %v2215, %v2416
        %v2418 = vpop.f32.mrb[0].mxu0
        %v2419 = vadd.f32 %v2219, %v2418
        %v2420 = vpop.f32.mrb[0].mxu0
        %v2421 = vadd.f32 %v2215, %v2420
        %v2422 = vpop.f32.mrb[0].mxu0
        %v2423 = vadd.f32 %v2219, %v2422
        %2424 = vmatprep.mubr.bf16.mxu0 %v2098
        %2425 = vmatmul.mubr.bf16.gmra.mrb[0].mxu0 %v2171
        %v2426 = vpop.f32.mrb[0].mxu0
        %v2427 = vadd.f32 %v2215, %v2426
        %v2428 = vpop.f32.mrb[0].mxu0
        %v2429 = vadd.f32 %v2219, %v2428
        %v2430 = vpop.f32.mrb[0].mxu0
        %v2431 = vadd.f32 %v2215, %v2430
        %v2432 = vpop.f32.mrb[0].mxu0
        %v2433 = vadd.f32 %v2219, %v2432
        %2434 = vmatprep.mubr.bf16.mxu0 %v2099
        %2435 = vmatmul.mubr.bf16.gmra.mrb[0].mxu0 %v2172
        %v2436 = vpop.f32.mrb[0].mxu0
        %v2437 = vadd.f32 %v2215, %v2436
        %v2438 = vpop.f32.mrb[0].mxu0
        %v2439 = vadd.f32 %v2219, %v2438
        %v2440 = vpop.f32.mrb[0].mxu0
        %v2441 = vadd.f32 %v2215, %v2440
        %v2442 = vpop.f32.mrb[0].mxu0
        %v2443 = vadd.f32 %v2219, %v2442
        %2444 = vmatprep.mubr.bf16.mxu0 %v2100
        %2445 = vmatmul.mubr.bf16.gmra.mrb[0].mxu0 %v2173
        %v2446 = vpop.f32.mrb[0].mxu0
        %v2447 = vadd.f32 %v2215, %v2446
        %v2448 = vpop.f32.mrb[0].mxu0
        %v2449 = vadd.f32 %v2219, %v2448
        %v2450 = vpop.f32.mrb[0].mxu0
        %v2451 = vadd.f32 %v2215, %v2450
        %v2452 = vpop.f32.mrb[0].mxu0
        %v2453 = vadd.f32 %v2219, %v2452
        %2454 = vmatprep.mubr.bf16.mxu0 %v2101
        %2455 = vmatmul.mubr.bf16.gmra.mrb[0].mxu0 %v2174
        %v2456 = vpop.f32.mrb[0].mxu0
        %v2457 = vadd.f32 %v2215, %v2456
        %v2458 = vpop.f32.mrb[0].mxu0
        %v2459 = vadd.f32 %v2219, %v2458
        %v2460 = vpop.f32.mrb[0].mxu0
        %v2461 = vadd.f32 %v2215, %v2460
        %v2462 = vpop.f32.mrb[0].mxu0
        %v2463 = vadd.f32 %v2219, %v2462
        %2464 = vmatprep.mubr.bf16.mxu0 %v2102
        %2465 = vmatmul.mubr.bf16.gmra.mrb[0].mxu0 %v2175
        %v2466 = vpop.f32.mrb[0].mxu0
        %v2467 = vadd.f32 %v2215, %v2466
        %v2468 = vpop.f32.mrb[0].mxu0
        %v2469 = vadd.f32 %v2219, %v2468
        %v2470 = vpop.f32.mrb[0].mxu0
        %v2471 = vadd.f32 %v2215, %v2470
        %v2472 = vpop.f32.mrb[0].mxu0
        %v2473 = vadd.f32 %v2219, %v2472
        %2474 = vmatprep.mubr.bf16.mxu0 %v2103
        %2475 = vmatmul.mubr.bf16.gmra.mrb[0].mxu0 %v2176
        %v2476 = vpop.f32.mrb[0].mxu0
        %v2477 = vadd.f32 %v2215, %v2476
        %v2478 = vpop.f32.mrb[0].mxu0
        %v2479 = vadd.f32 %v2219, %v2478
        %v2480 = vpop.f32.mrb[0].mxu0
        %v2481 = vadd.f32 %v2215, %v2480
        %v2482 = vpop.f32.mrb[0].mxu0
        %v2483 = vadd.f32 %v2219, %v2482
        %2484 = vmatprep.mubr.bf16.mxu0 %v2104
        %2485 = vmatmul.mubr.bf16.gmra.mrb[0].mxu0 %v2177
        %v2486 = vpop.f32.mrb[0].mxu0
        %v2487 = vadd.f32 %v2215, %v2486
        %v2488 = vpop.f32.mrb[0].mxu0
        %v2489 = vadd.f32 %v2219, %v2488
        %v2490 = vpop.f32.mrb[0].mxu0
        %v2491 = vadd.f32 %v2215, %v2490
        %v2492 = vpop.f32.mrb[0].mxu0
        %v2493 = vadd.f32 %v2219, %v2492
        %2494 = vdwg.mxu0
        %v2495 = vmax.f32 %v2417, 0.0
        %v2496 = vmax.f32 %v2421, 0.0
        %v2497 = vmax.f32 %v2427, 0.0
        %v2498 = vmax.f32 %v2431, 0.0
        %v2499 = vmax.f32 %v2437, 0.0
        %v2500 = vmax.f32 %v2441, 0.0
        %v2501 = vmax.f32 %v2447, 0.0
        %v2502 = vmax.f32 %v2451, 0.0
        %v2503 = vmax.f32 %v2457, 0.0
        %v2504 = vmax.f32 %v2461, 0.0
        %v2505 = vmax.f32 %v2467, 0.0
        %v2506 = vmax.f32 %v2471, 0.0
        %v2507 = vmax.f32 %v2477, 0.0
        %v2508 = vmax.f32 %v2481, 0.0
        %v2509 = vmax.f32 %v2487, 0.0
        %v2510 = vmax.f32 %v2491, 0.0
        %v2511 = vpack.c.bf16 %v2496, %v2495
        %v2512 = vpack.c.bf16 %v2498, %v2497
        %v2513 = vpack.c.bf16 %v2500, %v2499
        %v2514 = vpack.c.bf16 %v2502, %v2501
        %v2515 = vpack.c.bf16 %v2504, %v2503
        %v2516 = vpack.c.bf16 %v2506, %v2505
        %v2517 = vpack.c.bf16 %v2508, %v2507
        %v2518 = vpack.c.bf16 %v2510, %v2509
        %v2519 = vrot.slane %v2495, 4
        %v2520 = vrot.slane %v2496, 4
        %v2521 = vrot.slane %v2497, 4
        %v2522 = vrot.slane %v2498, 4
        %v2523 = vrot.slane %v2499, 4
        %v2524 = vrot.slane %v2500, 4
        %v2525 = vrot.slane %v2501, 4
        %v2526 = vrot.slane %v2502, 4
        %v2527 = vrot.slane %v2503, 4
        %v2528 = vrot.slane %v2504, 4
        %v2529 = vrot.slane %v2505, 4
        %v2530 = vrot.slane %v2506, 4
        %v2531 = vrot.slane %v2507, 4
        %v2532 = vrot.slane %v2508, 4
        %v2533 = vrot.slane %v2509, 4
        %v2534 = vrot.slane %v2510, 4
        %v2535 = vsel %vm2137, %v2533, %v2534
        %v2536 = vsel %vm2137, %v2532, %v2533
        %v2537 = vsel %vm2137, %v2531, %v2532
        %v2538 = vsel %vm2137, %v2530, %v2531
        %v2539 = vsel %vm2137, %v2529, %v2530
        %v2540 = vsel %vm2137, %v2528, %v2529
        %v2541 = vsel %vm2137, %v2527, %v2528
        %v2542 = vsel %vm2137, %v2526, %v2527
        %v2543 = vsel %vm2137, %v2525, %v2526
        %v2544 = vsel %vm2137, %v2524, %v2525
        %v2545 = vsel %vm2137, %v2523, %v2524
        %v2546 = vsel %vm2137, %v2522, %v2523
        %v2547 = vsel %vm2137, %v2521, %v2522
        %v2548 = vsel %vm2137, %v2520, %v2521
        %v2549 = vsel %vm2137, %v2519, %v2520
        %v2550 = vsel %vm2137, %v2534, %v2519
        %v2551 = vsel %vm2105, %v2550, 0.0
        %v2552 = vsel %vm2106, %v2549, 0.0
        %v2553 = vsel %vm2107, %v2548, 0.0
        %v2554 = vsel %vm2108, %v2547, 0.0
        %v2555 = vsel %vm2109, %v2546, 0.0
        %v2556 = vsel %vm2110, %v2545, 0.0
        %v2557 = vsel %vm2111, %v2544, 0.0
        %v2558 = vsel %vm2112, %v2543, 0.0
        %v2559 = vsel %vm2113, %v2542, 0.0
        %v2560 = vsel %vm2114, %v2541, 0.0
        %v2561 = vsel %vm2115, %v2540, 0.0
        %v2562 = vsel %vm2116, %v2539, 0.0
        %v2563 = vsel %vm2117, %v2538, 0.0
        %v2564 = vsel %vm2118, %v2537, 0.0
        %v2565 = vsel %vm2119, %v2536, 0.0
        %v2566 = vsel %vm2120, %v2535, 0.0
        %v2567 = vpack.c.bf16 %v2552, %v2551
        %v2568 = vpack.c.bf16 %v2554, %v2553
        %v2569 = vpack.c.bf16 %v2556, %v2555
        %v2570 = vpack.c.bf16 %v2558, %v2557
        %v2571 = vpack.c.bf16 %v2560, %v2559
        %v2572 = vpack.c.bf16 %v2562, %v2561
        %v2573 = vpack.c.bf16 %v2564, %v2563
        %v2574 = vpack.c.bf16 %v2566, %v2565
        %v2575 = vld [vmem:[#allocation13] sm:$0xf]
        %v2576 = vld [vmem:[#allocation13 + $0x4] sm:$0xf]
        %v2577 = vld [vmem:[#allocation13 + $0x8] sm:$0xf]
        %v2578 = vld [vmem:[#allocation13 + $0xc] sm:$0xf]
        %v2579 = vld [vmem:[#allocation13 + $0x10] sm:$0xf]
        %v2580 = vld [vmem:[#allocation13 + $0x14] sm:$0xf]
        %v2581 = vld [vmem:[#allocation13 + $0x18] sm:$0xf]
        %v2582 = vld [vmem:[#allocation13 + $0x1c] sm:$0xf]
        %v2583 = vld [vmem:[#allocation13 + $0x20] sm:$0xf]
        %v2584 = vld [vmem:[#allocation13 + $0x24] sm:$0xf]
        %v2585 = vld [vmem:[#allocation13 + $0x28] sm:$0xf]
        %v2586 = vld [vmem:[#allocation13 + $0x2c] sm:$0xf]
        %v2587 = vld [vmem:[#allocation13 + $0x30] sm:$0xf]
        %v2588 = vld [vmem:[#allocation13 + $0x34] sm:$0xf]
        %v2589 = vld [vmem:[#allocation13 + $0x38] sm:$0xf]
        %v2590 = vld [vmem:[#allocation13 + $0x3c] sm:$0xf]
        %v2591 = vld [vmem:[#allocation13 + $0x40] sm:$0xf]
        %v2592 = vld [vmem:[#allocation13 + $0x44] sm:$0xf]
        %v2593 = vld [vmem:[#allocation13 + $0x48] sm:$0xf]
        %v2594 = vld [vmem:[#allocation13 + $0x4c] sm:$0xf]
        %v2595 = vld [vmem:[#allocation13 + $0x50] sm:$0xf]
        %v2596 = vld [vmem:[#allocation13 + $0x54] sm:$0xf]
        %v2597 = vld [vmem:[#allocation13 + $0x58] sm:$0xf]
        %v2598 = vld [vmem:[#allocation13 + $0x5c] sm:$0xf]
        %v2599 = vld [vmem:[#allocation13 + $0x60] sm:$0xf]
        %v2600 = vld [vmem:[#allocation13 + $0x64] sm:$0xf]
        %v2601 = vld [vmem:[#allocation13 + $0x68] sm:$0xf]
        %v2602 = vld [vmem:[#allocation13 + $0x6c] sm:$0xf]
        %v2603 = vld [vmem:[#allocation13 + $0x70] sm:$0xf]
        %v2604 = vld [vmem:[#allocation13 + $0x74] sm:$0xf]
        %v2605 = vld [vmem:[#allocation13 + $0x78] sm:$0xf]
        %v2606 = vld [vmem:[#allocation13 + $0x7c] sm:$0xf]
        %v2607 = vld [vmem:[%s12] sm:$0x1]
        %v2609 = vlaneseq
        %v2610 = vshrl.u32 %v2609, 7
        %v2611 = vsub.s32 0, %v2610
        %v2612 = vrot.slane %v2607, %v2611
        %v2646 = vunpack.c.l.b16 %v2575
        %v2647 = vunpack.c.l.b16 %v2576
        %v2648 = vunpack.c.l.b16 %v2577
        %v2649 = vunpack.c.l.b16 %v2578
        %v2650 = vunpack.c.l.b16 %v2579
        %v2651 = vunpack.c.l.b16 %v2580
        %v2652 = vunpack.c.l.b16 %v2581
        %v2653 = vunpack.c.l.b16 %v2582
        %v2654 = vunpack.c.l.b16 %v2583
        %v2655 = vunpack.c.l.b16 %v2584
        %v2656 = vunpack.c.l.b16 %v2585
        %v2657 = vunpack.c.l.b16 %v2586
        %v2658 = vunpack.c.l.b16 %v2587
        %v2659 = vunpack.c.l.b16 %v2588
        %v2660 = vunpack.c.l.b16 %v2589
        %v2661 = vunpack.c.l.b16 %v2590
        %v2662 = vunpack.c.l.b16 %v2591
        %v2663 = vunpack.c.l.b16 %v2592
        %v2664 = vunpack.c.l.b16 %v2593
        %v2665 = vunpack.c.l.b16 %v2594
        %v2666 = vunpack.c.l.b16 %v2595
        %v2667 = vunpack.c.l.b16 %v2596
        %v2668 = vunpack.c.l.b16 %v2597
        %v2669 = vunpack.c.l.b16 %v2598
        %v2670 = vunpack.c.l.b16 %v2599
        %v2671 = vunpack.c.l.b16 %v2600
        %v2672 = vunpack.c.l.b16 %v2601
        %v2673 = vunpack.c.l.b16 %v2602
        %v2674 = vunpack.c.l.b16 %v2603
        %v2675 = vunpack.c.l.b16 %v2604
        %v2676 = vunpack.c.l.b16 %v2605
        %v2677 = vunpack.c.l.b16 %v2606
        %v2678 = vpack.c.b16 %v2647, %v2646
        %v2679 = vpack.c.b16 %v2649, %v2648
        %v2680 = vpack.c.b16 %v2651, %v2650
        %v2681 = vpack.c.b16 %v2653, %v2652
        %v2682 = vpack.c.b16 %v2655, %v2654
        %v2683 = vpack.c.b16 %v2657, %v2656
        %v2684 = vpack.c.b16 %v2659, %v2658
        %v2685 = vpack.c.b16 %v2661, %v2660
        %v2686 = vpack.c.b16 %v2663, %v2662
        %v2687 = vpack.c.b16 %v2665, %v2664
        %v2688 = vpack.c.b16 %v2667, %v2666
        %v2689 = vpack.c.b16 %v2669, %v2668
        %v2690 = vpack.c.b16 %v2671, %v2670
        %v2691 = vpack.c.b16 %v2673, %v2672
        %v2692 = vpack.c.b16 %v2675, %v2674
        %v2693 = vpack.c.b16 %v2677, %v2676
        %2710 = vmatprep.subr.bf16.mxu0 0
        %2711 = vmatpush1.bf16.msra.mxu0 %v2678
        %2712 = vmatprep.subr.bf16.mxu0 0
        %2713 = vmatpush1.bf16.msra.mxu0 %v2679
        %2714 = vmatprep.subr.bf16.mxu0 0
        %2715 = vmatpush1.bf16.msra.mxu0 %v2680
        %2716 = vmatprep.subr.bf16.mxu0 0
        %2717 = vmatpush1.bf16.msra.mxu0 %v2681
        %2718 = vmatprep.subr.bf16.mxu0 0
        %2719 = vmatpush1.bf16.msra.mxu0 %v2682
        %2720 = vmatprep.subr.bf16.mxu0 0
        %2721 = vmatpush1.bf16.msra.mxu0 %v2683
        %2722 = vmatprep.subr.bf16.mxu0 0
        %2723 = vmatpush1.bf16.msra.mxu0 %v2684
        %2724 = vmatprep.subr.bf16.mxu0 0
        %2725 = vmatpush1.bf16.msra.mxu0 %v2685
        %2726 = vmatprep.subr.bf16.mxu0 0
        %2727 = vmatpush1.bf16.msra.mxu0 %v2686
        %2728 = vmatprep.subr.bf16.mxu0 0
        %2729 = vmatpush1.bf16.msra.mxu0 %v2687
        %2730 = vmatprep.subr.bf16.mxu0 0
        %2731 = vmatpush1.bf16.msra.mxu0 %v2688
        %2732 = vmatprep.subr.bf16.mxu0 0
        %2733 = vmatpush1.bf16.msra.mxu0 %v2689
        %2734 = vmatprep.subr.bf16.mxu0 0
        %2735 = vmatpush1.bf16.msra.mxu0 %v2690
        %2736 = vmatprep.subr.bf16.mxu0 0
        %2737 = vmatpush1.bf16.msra.mxu0 %v2691
        %2738 = vmatprep.subr.bf16.mxu0 0
        %2739 = vmatpush1.bf16.msra.mxu0 %v2692
        %2740 = vmatprep.subr.bf16.mxu0 0
        %2741 = vmatpush1.bf16.msra.mxu0 %v2693
        %2742 = vmatprep.mubr.bf16.mxu0 %v2511
        %2743 = vmatmul.mubr.bf16.gmra.mrb[0].mxu0 %v2567
        %v2744 = vpop.f32.mrb[0].mxu0
        %v2745 = vadd.f32 %v2612, %v2744
        %v2746 = vpop.f32.mrb[0].mxu0
        %v2747 = vpop.f32.mrb[0].mxu0
        %v2748 = vadd.f32 %v2612, %v2747
        %v2749 = vpop.f32.mrb[0].mxu0
        %2750 = vmatprep.mubr.bf16.mxu0 %v2512
        %2751 = vmatmul.mubr.bf16.gmra.mrb[0].mxu0 %v2568
        %v2752 = vpop.f32.mrb[0].mxu0
        %v2753 = vadd.f32 %v2612, %v2752
        %v2754 = vpop.f32.mrb[0].mxu0
        %v2755 = vpop.f32.mrb[0].mxu0
        %v2756 = vadd.f32 %v2612, %v2755
        %v2757 = vpop.f32.mrb[0].mxu0
        %2758 = vmatprep.mubr.bf16.mxu0 %v2513
        %2759 = vmatmul.mubr.bf16.gmra.mrb[0].mxu0 %v2569
        %v2760 = vpop.f32.mrb[0].mxu0
        %v2761 = vadd.f32 %v2612, %v2760
        %v2762 = vpop.f32.mrb[0].mxu0
        %v2763 = vpop.f32.mrb[0].mxu0
        %v2764 = vadd.f32 %v2612, %v2763
        %v2765 = vpop.f32.mrb[0].mxu0
        %2766 = vmatprep.mubr.bf16.mxu0 %v2514
        %2767 = vmatmul.mubr.bf16.gmra.mrb[0].mxu0 %v2570
        %v2768 = vpop.f32.mrb[0].mxu0
        %v2769 = vadd.f32 %v2612, %v2768
        %v2770 = vpop.f32.mrb[0].mxu0
        %v2771 = vpop.f32.mrb[0].mxu0
        %v2772 = vadd.f32 %v2612, %v2771
        %v2773 = vpop.f32.mrb[0].mxu0
        %2774 = vmatprep.mubr.bf16.mxu0 %v2515
        %2775 = vmatmul.mubr.bf16.gmra.mrb[0].mxu0 %v2571
        %v2776 = vpop.f32.mrb[0].mxu0
        %v2777 = vadd.f32 %v2612, %v2776
        %v2778 = vpop.f32.mrb[0].mxu0
        %v2779 = vpop.f32.mrb[0].mxu0
        %v2780 = vadd.f32 %v2612, %v2779
        %v2781 = vpop.f32.mrb[0].mxu0
        %2782 = vmatprep.mubr.bf16.mxu0 %v2516
        %2783 = vmatmul.mubr.bf16.gmra.mrb[0].mxu0 %v2572
        %v2784 = vpop.f32.mrb[0].mxu0
        %v2785 = vadd.f32 %v2612, %v2784
        %v2786 = vpop.f32.mrb[0].mxu0
        %v2787 = vpop.f32.mrb[0].mxu0
        %v2788 = vadd.f32 %v2612, %v2787
        %v2789 = vpop.f32.mrb[0].mxu0
        %2790 = vmatprep.mubr.bf16.mxu0 %v2517
        %2791 = vmatmul.mubr.bf16.gmra.mrb[0].mxu0 %v2573
        %v2792 = vpop.f32.mrb[0].mxu0
        %v2793 = vadd.f32 %v2612, %v2792
        %v2794 = vpop.f32.mrb[0].mxu0
        %v2795 = vpop.f32.mrb[0].mxu0
        %v2796 = vadd.f32 %v2612, %v2795
        %v2797 = vpop.f32.mrb[0].mxu0
        %2798 = vmatprep.mubr.bf16.mxu0 %v2518
        %2799 = vmatmul.mubr.bf16.gmra.mrb[0].mxu0 %v2574
        %v2800 = vpop.f32.mrb[0].mxu0
        %v2801 = vadd.f32 %v2612, %v2800
        %v2802 = vpop.f32.mrb[0].mxu0
        %v2803 = vpop.f32.mrb[0].mxu0
        %v2804 = vadd.f32 %v2612, %v2803
        %v2805 = vpop.f32.mrb[0].mxu0
        %2806 = vdwg.mxu0
        %v2807 = vmax.f32 %v2745, 0.0
        %v2808 = vmax.f32 %v2748, 0.0
        %v2809 = vmax.f32 %v2753, 0.0
        %v2810 = vmax.f32 %v2756, 0.0
        %v2811 = vmax.f32 %v2761, 0.0
        %v2812 = vmax.f32 %v2764, 0.0
        %v2813 = vmax.f32 %v2769, 0.0
        %v2814 = vmax.f32 %v2772, 0.0
        %v2815 = vmax.f32 %v2777, 0.0
        %v2816 = vmax.f32 %v2780, 0.0
        %v2817 = vmax.f32 %v2785, 0.0
        %v2818 = vmax.f32 %v2788, 0.0
        %v2819 = vmax.f32 %v2793, 0.0
        %v2820 = vmax.f32 %v2796, 0.0
        %v2821 = vmax.f32 %v2801, 0.0
        %v2822 = vmax.f32 %v2804, 0.0
        %v2823 = vadd.f32 %v2807, %v2419
        %v2824 = vadd.f32 %v2808, %v2423
        %v2825 = vadd.f32 %v2809, %v2429
        %v2826 = vadd.f32 %v2810, %v2433
        %v2827 = vadd.f32 %v2811, %v2439
        %v2828 = vadd.f32 %v2812, %v2443
        %v2829 = vadd.f32 %v2813, %v2449
        %v2830 = vadd.f32 %v2814, %v2453
        %v2831 = vadd.f32 %v2815, %v2459
        %v2832 = vadd.f32 %v2816, %v2463
        %v2833 = vadd.f32 %v2817, %v2469
        %v2834 = vadd.f32 %v2818, %v2473
        %v2835 = vadd.f32 %v2819, %v2479
        %v2836 = vadd.f32 %v2820, %v2483
        %v2837 = vadd.f32 %v2821, %v2489
        %v2838 = vadd.f32 %v2822, %v2493
        %v2839 = vmax.f32 %v2823, 0.0
        %v2840 = vmax.f32 %v2824, 0.0
        %v2841 = vmax.f32 %v2825, 0.0
        %v2842 = vmax.f32 %v2826, 0.0
        %v2843 = vmax.f32 %v2827, 0.0
        %v2844 = vmax.f32 %v2828, 0.0
        %v2845 = vmax.f32 %v2829, 0.0
        %v2846 = vmax.f32 %v2830, 0.0
        %v2847 = vmax.f32 %v2831, 0.0
        %v2848 = vmax.f32 %v2832, 0.0
        %v2849 = vmax.f32 %v2833, 0.0
        %v2850 = vmax.f32 %v2834, 0.0
        %v2851 = vmax.f32 %v2835, 0.0
        %v2852 = vmax.f32 %v2836, 0.0
        %v2853 = vmax.f32 %v2837, 0.0
        %v2854 = vmax.f32 %v2838, 0.0
        %v2855 = vlaneseq
        %v2856 = vand.u32 %v2855, 127
        %v2857 = vmul.u32 %v618, 16
        %v2858 = vadd.s32 %v2857, 15
        %vm2859 = vcmp.eq.s32.totalorder %v2856, %v2858
        %v2860 = vsel %vm2859, 1, 0
        %v2861 = vcvt.s32.f32 %v2860
        %v2862 = vpack.c.bf16 %v2861, %v2861
        %v2863 = vpack.c.bf16 %v2840, %v2839
        %v2864 = vpack.c.bf16 %v2842, %v2841
        %v2865 = vpack.c.bf16 %v2844, %v2843
        %v2866 = vpack.c.bf16 %v2846, %v2845
        %v2867 = vpack.c.bf16 %v2848, %v2847
        %v2868 = vpack.c.bf16 %v2850, %v2849
        %v2869 = vpack.c.bf16 %v2852, %v2851
        %v2870 = vpack.c.bf16 %v2854, %v2853
        %2871 = vmatprep.subr.bf16.mxu0 0
        %2872 = vmatpush1.bf16.msra.mxu0 %v2863
        %2873 = vmatprep.subr.bf16.mxu0 0
        %2874 = vmatpush1.bf16.msra.mxu0 %v2864
        %2875 = vmatprep.subr.bf16.mxu0 0
        %2876 = vmatpush1.bf16.msra.mxu0 %v2865
        %2877 = vmatprep.subr.bf16.mxu0 0
        %2878 = vmatpush1.bf16.msra.mxu0 %v2866
        %2879 = vmatprep.subr.bf16.mxu0 0
        %2880 = vmatpush1.bf16.msra.mxu0 %v2867
        %2881 = vmatprep.subr.bf16.mxu0 0
        %2882 = vmatpush1.bf16.msra.mxu0 %v2868
        %2883 = vmatprep.subr.bf16.mxu0 0
        %2884 = vmatpush1.bf16.msra.mxu0 %v2869
        %2885 = vmatprep.subr.bf16.mxu0 0
        %2886 = vmatpush1.bf16.msra.mxu0 %v2870
        %2887 = vmatprep.subr.bf16.mxu0 0
        %2888 = vmatpush1.bf16.msra.mxu0 0
        %2889 = vmatprep.subr.bf16.mxu0 0
        %2890 = vmatpush1.bf16.msra.mxu0 0
        %2891 = vmatprep.subr.bf16.mxu0 0
        %2892 = vmatpush1.bf16.msra.mxu0 0
        %2893 = vmatprep.subr.bf16.mxu0 0
        %2894 = vmatpush1.bf16.msra.mxu0 0
        %2895 = vmatprep.subr.bf16.mxu0 0
        %2896 = vmatpush1.bf16.msra.mxu0 0
        %2897 = vmatprep.subr.bf16.mxu0 0
        %2898 = vmatpush1.bf16.msra.mxu0 0
        %2899 = vmatprep.subr.bf16.mxu0 0
        %2900 = vmatpush1.bf16.msra.mxu0 0
        %2901 = vmatprep.subr.bf16.mxu0 0
        %2902 = vmatpush1.bf16.msra.mxu0 0
        %2903 = vmatprep.mubr.bf16.mxu0 0
        %2904 = vmatmul.mubr.bf16.gmra.mrb[0].mxu0 %v2862
        %v2905 = vpop.f32.mrb[0].mxu0
        %v2906 = vadd.f32 0.0, %v2905
        %v2907 = vpop.f32.mrb[0].mxu0
        %v2908 = vpop.f32.mrb[0].mxu0
        %v2909 = vpop.f32.mrb[0].mxu0
        %2910 = vdwg.mxu0
        %v2911 = vpack.c.bf16 %v2906, %v2906
        %v2912 = vld [vmem:[#allocation14] sm:$0xf]
        %v2913 = vld [vmem:[#allocation14 + $0x4] sm:$0xf]
        %v2914 = vld [vmem:[#allocation14 + $0x8] sm:$0xf]
        %v2915 = vld [vmem:[#allocation14 + $0xc] sm:$0xf]
        %v2916 = vld [vmem:[#allocation14 + $0x10] sm:$0xf]
        %v2917 = vld [vmem:[#allocation14 + $0x14] sm:$0xf]
        %v2918 = vld [vmem:[#allocation14 + $0x18] sm:$0xf]
        %v2919 = vld [vmem:[#allocation14 + $0x1c] sm:$0xf]
        %v2920 = vld [vmem:[#allocation14 + $0x20] sm:$0xf]
        %v2921 = vld [vmem:[#allocation14 + $0x24] sm:$0xf]
        %v2922 = vld [vmem:[#allocation14 + $0x28] sm:$0xf]
        %v2923 = vld [vmem:[#allocation14 + $0x2c] sm:$0xf]
        %v2924 = vld [vmem:[#allocation14 + $0x30] sm:$0xf]
        %v2925 = vld [vmem:[#allocation14 + $0x34] sm:$0xf]
        %v2926 = vld [vmem:[#allocation14 + $0x38] sm:$0xf]
        %v2927 = vld [vmem:[#allocation14 + $0x3c] sm:$0xf]
        %v2928 = vld [vmem:[%s14] sm:$0x1]
        %v2930 = vlaneseq
        %v2931 = vshrl.u32 %v2930, 7
        %v2932 = vsub.s32 0, %v2931
        %v2933 = vrot.slane %v2928, %v2932
        %v2951 = vunpack.c.l.b16 %v2912
        %v2952 = vunpack.c.l.b16 %v2913
        %v2953 = vunpack.c.l.b16 %v2914
        %v2954 = vunpack.c.l.b16 %v2915
        %v2955 = vunpack.c.l.b16 %v2916
        %v2956 = vunpack.c.l.b16 %v2917
        %v2957 = vunpack.c.l.b16 %v2918
        %v2958 = vunpack.c.l.b16 %v2919
        %v2959 = vunpack.c.l.b16 %v2920
        %v2960 = vunpack.c.l.b16 %v2921
        %v2961 = vunpack.c.l.b16 %v2922
        %v2962 = vunpack.c.l.b16 %v2923
        %v2963 = vunpack.c.l.b16 %v2924
        %v2964 = vunpack.c.l.b16 %v2925
        %v2965 = vunpack.c.l.b16 %v2926
        %v2966 = vunpack.c.l.b16 %v2927
        %v2967 = vpack.c.b16 %v2952, %v2951
        %v2968 = vpack.c.b16 %v2954, %v2953
        %v2969 = vpack.c.b16 %v2956, %v2955
        %v2970 = vpack.c.b16 %v2958, %v2957
        %v2971 = vpack.c.b16 %v2960, %v2959
        %v2972 = vpack.c.b16 %v2962, %v2961
        %v2973 = vpack.c.b16 %v2964, %v2963
        %v2974 = vpack.c.b16 %v2966, %v2965
        %2983 = vmatprep.subr.bf16.mxu0 0
        %2984 = vmatpush1.bf16.msra.mxu0 %v2967
        %2985 = vmatprep.subr.bf16.mxu0 0
        %2986 = vmatpush1.bf16.msra.mxu0 %v2968
        %2987 = vmatprep.subr.bf16.mxu0 0
        %2988 = vmatpush1.bf16.msra.mxu0 %v2969
        %2989 = vmatprep.subr.bf16.mxu0 0
        %2990 = vmatpush1.bf16.msra.mxu0 %v2970
        %2991 = vmatprep.subr.bf16.mxu0 0
        %2992 = vmatpush1.bf16.msra.mxu0 %v2971
        %2993 = vmatprep.subr.bf16.mxu0 0
        %2994 = vmatpush1.bf16.msra.mxu0 %v2972
        %2995 = vmatprep.subr.bf16.mxu0 0
        %2996 = vmatpush1.bf16.msra.mxu0 %v2973
        %2997 = vmatprep.subr.bf16.mxu0 0
        %2998 = vmatpush1.bf16.msra.mxu0 %v2974
        %2999 = vmatprep.subr.bf16.mxu0 0
        %3000 = vmatpush1.bf16.msra.mxu0 0
        %3001 = vmatprep.subr.bf16.mxu0 0
        %3002 = vmatpush1.bf16.msra.mxu0 0
        %3003 = vmatprep.subr.bf16.mxu0 0
        %3004 = vmatpush1.bf16.msra.mxu0 0
        %3005 = vmatprep.subr.bf16.mxu0 0
        %3006 = vmatpush1.bf16.msra.mxu0 0
        %3007 = vmatprep.subr.bf16.mxu0 0
        %3008 = vmatpush1.bf16.msra.mxu0 0
        %3009 = vmatprep.subr.bf16.mxu0 0
        %3010 = vmatpush1.bf16.msra.mxu0 0
        %3011 = vmatprep.subr.bf16.mxu0 0
        %3012 = vmatpush1.bf16.msra.mxu0 0
        %3013 = vmatprep.subr.bf16.mxu0 0
        %3014 = vmatpush1.bf16.msra.mxu0 0
        %3015 = vmatprep.mubr.bf16.mxu0 0
        %3016 = vmatmul.mubr.bf16.gmra.mrb[0].mxu0 %v2911
        %v3017 = vpop.f32.mrb[0].mxu0
        %v3018 = vadd.f32 %v2933, %v3017
        %v3019 = vpop.f32.mrb[0].mxu0
        %v3020 = vpop.f32.mrb[0].mxu0
        %v3021 = vpop.f32.mrb[0].mxu0
        %3022 = vdwg.mxu0
        %3023 = vst [vmem:[%s614] sm:$0xff] %v3018
        %s3024 = sand.u32 %s364, 1
        %s3025 = scalar_lea.sflag [#allocation4], %s3024
        %s3026 = sand.u32 %s364, 1
        %s3027 = smul.addr %s3026, 8
        %s3028 = scalar_lea.vmem [#allocation16], %s3027
        // Predicated region
        $region113: #{tpu_custom_call.1} parent=79 // pred_check
          %p3029 = pneg %p374
        $region114: #{tpu_custom_call.1} parent=79 // pred_check_branch
          %3031 = sbr.rel (%p3029) target = $region116
        $region115: #{tpu_custom_call.1} parent=79 // pred_region
          %s3033 = ssub.s32 128, 128
          %3034 = vsyncadd %s3025, %s3033
          %s3035 = smul.addr %s36, 128
          %s3036 = scalar_lea.hbm %s15, %s3035
          %s3038 = sshll.u32 %s3028, 4
          %s3039 = int_to_ptr.vmem [resolvable:$true] %s3038
          %3041 = dma.vmem_to_hbm [thread:$0]  %s3039, 128, %s3036, %s3025
        $region116: #{tpu_custom_call.1} parent=79 // pred_fallthru
          _
      $region80: #{tpu_custom_call.1} parent=5 // pred_fallthru
        _
      %p3042 = scmp.le.s32.totalorder 2, %s31
      // Predicated region
      $region117: #{tpu_custom_call.1} parent=5 // pred_check
        %p3043 = pneg %p3042
      $region118: #{tpu_custom_call.1} parent=5 // pred_check_branch
        %3045 = sbr.rel (%p3043) target = $region120
      $region119: #{tpu_custom_call.1} parent=5 // pred_region
        %s3046 = ssub.s32 %s31, 2
        // Predicated region
        $region121: #{tpu_custom_call.1} parent=119 // pred_check
          %p3047 = pneg %p380
        $region122: #{tpu_custom_call.1} parent=119 // pred_check_branch
          %3049 = sbr.rel (%p3047) target = $region124
        $region123: #{tpu_custom_call.1} parent=119 // pred_region
          %s3050 = sand.u32 %s365, 1
          %s3051 = scalar_lea.sflag [#allocation4], %s3050
          %s3052 = sand.u32 %s365, 1
          %s3053 = smul.addr %s3052, 8
          %s3054 = scalar_lea.vmem [#allocation16], %s3053
          %3055 = dma.done %s3051, 128
        $region124: #{tpu_custom_call.1} parent=119 // pred_fallthru
          _
      $region120: #{tpu_custom_call.1} parent=5 // pred_fallthru
        _
    $region6: #{tpu_custom_call.1} parent=1 // loop_footer
      %s35 = sadd.s32 1, %s31
    $region7: #{tpu_custom_call.1} parent=1 // loop_footer_branch
      %30 = sbr.rel target = $region3
    $region8: #{tpu_custom_call.1} parent=1 // loop_exit
      _
    %3056 = vsyncpa [#allocation3], 1
    %s3057 = scalar_lea.sflag [#allocation3], 1
    %3058 = vsyncpa %s3057, 1
    %3059 = vsyncpa [#allocation6], 1
    %3060 = vsyncpa [#allocation9], 1
    %3061 = vsyncpa [#allocation12], 1
    %3062 = vsyncpa [#allocation15], 1
    %3063 = vsyncpa [#allocation4], 1
    %s3064 = scalar_lea.sflag [#allocation4], 1
    %3065 = vsyncpa %s3064, 1

</llo_original>
